<compile_context>
chip_gen: v5e
topology: v5e:2x2
jax: 0.10.0
libtpu: 0.0.40
codegen_flags: <defaults>
</compile_context>

<pallas_src>
import functools

import jax
import jax.numpy as jnp
from jax.experimental import pallas as pl
from jax.experimental.pallas import tpu as pltpu


NEG_SLOPE = 0.2
BN_EPS = 1e-5
FC_TILE_F = 512          # feature-axis tile for the final linear layer
LANE = 128

_TAPS = ((0, 0), (0, 1), (1, 0), (1, 1))   # 2x2 conv taps on the space-to-depth view


# ---------------------------------------------------------------------------
# Hardware-aware sizing helpers
# ---------------------------------------------------------------------------
@functools.lru_cache(maxsize=None)
def _tpu_vmem_bytes():
    try:
        return int(pltpu.get_tpu_info().vmem_capacity_bytes)
    except Exception:                      # conservative fallback
        return 64 * 1024 * 1024


def _vmem_limit_bytes():
    # Raise the scoped VMEM limit but leave headroom (48 MiB on 64 MiB v7x, 96 MiB on v5e/v6e).
    return int(min(96 * 1024 * 1024, _tpu_vmem_bytes() * 3 // 4))


def _compiler_params(semantics):
    return pltpu.CompilerParams(dimension_semantics=semantics,
                                vmem_limit_bytes=_vmem_limit_bytes())


def _round_up(x, m):
    return ((x + m - 1) // m) * m


def _resident_spec(block_shape, index_map):
    """Constant-index (resident) block: single-buffer it to save VMEM (feedback item 10)."""
    try:
        return pl.BlockSpec(block_shape, index_map, pipeline_mode=pl.Buffered(1))
    except (TypeError, AttributeError):    # older API without pipeline_mode / Buffered
        return pl.BlockSpec(block_shape, index_map)


# ---------------------------------------------------------------------------
# Pallas kernels
# ---------------------------------------------------------------------------
def _conv_s2d_kernel(x_ref, w_ref, b_ref, out_ref, *stats_refs,
                     Ho, Ws, fuse_act, emit_stats):
    """One batch element of a 4x4/s2/p1 conv, expressed as a 2x2/s1 conv on the s2d view.

    x_ref   : (1, S_pad, 4*Cin) bf16 flattened s2d input (one junk column per output row)
    w_ref   : (4, 4*Cin, Cout)  bf16 weights, one (K, Cout) matrix per 2x2 tap (resident)
    b_ref   : (1, Cout)         f32 conv bias (resident)
    out_ref : (1, Ho*Ws, Cout)  bf16 conv output (junk columns included; sliced off in glue)
    stats_refs[0] (optional): (1, 2, Cout) f32 rows = (sum, sum-sq) over the real output rows
    """
    rows = Ho * Ws
    acc = None
    for t, (a, b) in enumerate(_TAPS):
        # Contiguous (rows, K) window of the flattened s2d input -> no gather / no im2col.
        xt = x_ref[0, pl.ds(a * Ws + b, rows), :]
        d = jnp.dot(xt, w_ref[t], preferred_element_type=jnp.float32)
        acc = d if acc is None else acc + d
    acc = acc + b_ref[...]                                     # (rows, Cout) f32
    if fuse_act:
        acc = jnp.where(acc >= 0.0, acc, NEG_SLOPE * acc)
    if emit_stats:
        stats_ref = stats_refs[0]
        # Mask the junk column (row index % Ws == Ws-1) out of the BN partial sums.
        keep = (jax.lax.broadcasted_iota(jnp.int32, (rows, 1), 0) % Ws) != (Ws - 1)
        yk = jnp.where(keep, acc, 0.0)
        stats_ref[0, 0:1, :] = jnp.sum(yk, axis=0, keepdims=True)
        stats_ref[0, 1:2, :] = jnp.sum(yk * yk, axis=0, keepdims=True)
    out_ref[0, :, :] = acc.astype(out_ref.dtype)


def _fc_kernel(x_ref, w_ref, b_ref, o_ref):
    """Final linear layer, tiled over the feature axis; accumulates into the resident output."""
    @pl.when(pl.program_id(0) == 0)
    def _():
        o_ref[...] = jnp.broadcast_to(b_ref[...], o_ref.shape)

    o_ref[...] += jnp.dot(x_ref[...], w_ref[...], preferred_element_type=jnp.float32)


# ---------------------------------------------------------------------------
# pallas_call wrappers
# ---------------------------------------------------------------------------
def conv_s2d(xs_flat, w, b, *, Ho, Ws, fuse_act, emit_stats):
    """Fused Conv2d(4,2,1): one grid step per batch element ('parallel' -> both v7x cores)."""
    N, s_pad, k = xs_flat.shape
    cout = w.shape[-1]
    rows = Ho * Ws
    kernel = functools.partial(_conv_s2d_kernel, Ho=Ho, Ws=Ws,
                               fuse_act=fuse_act, emit_stats=emit_stats)

    in_specs = [pl.BlockSpec((1, s_pad, k), lambda n: (n, 0, 0)),
                _resident_spec((4, k, cout), lambda n: (0, 0, 0)),   # weight stays resident
                _resident_spec((1, cout), lambda n: (0, 0))]
    out_shape = [jax.ShapeDtypeStruct((N, rows, cout), jnp.bfloat16)]
    out_specs = [pl.BlockSpec((1, rows, cout), lambda n: (n, 0, 0))]
    if emit_stats:
        out_shape.append(jax.ShapeDtypeStruct((N, 2, cout), jnp.float32))
        out_specs.append(pl.BlockSpec((1, 2, cout), lambda n: (n, 0, 0)))

    return pl.pallas_call(
        kernel,
        out_shape=tuple(out_shape) if emit_stats else out_shape[0],
        grid=(N,),
        in_specs=in_specs,
        out_specs=tuple(out_specs) if emit_stats else out_specs[0],
        compiler_params=_compiler_params(("parallel",)),
    )(xs_flat, w, b)


def fc_layer(x, w, b):
    """(N, F_pad) @ (F_pad, 128) + b, tiled over F, accumulating into the resident output.

    Only column 0 of w/b is real; the lane-dense 128-wide layout keeps output stores unmasked.
    """
    N, f_pad = x.shape
    tile_f = min(FC_TILE_F, f_pad)
    assert f_pad % tile_f == 0
    out = pl.pallas_call(
        _fc_kernel,
        out_shape=jax.ShapeDtypeStruct((N, LANE), jnp.float32),
        grid=(f_pad // tile_f,),
        in_specs=[pl.BlockSpec((N, tile_f), lambda i: (0, i)),
                  pl.BlockSpec((tile_f, LANE), lambda i: (i, 0)),
                  _resident_spec((1, LANE), lambda i: (0, 0))],
        out_specs=pl.BlockSpec((N, LANE), lambda i: (0, 0)),
        compiler_params=_compiler_params(("arbitrary",)),
    )(x, w, b)
    return out[:, :1]


# ---------------------------------------------------------------------------
# Plain-JAX glue: space-to-depth prep, BN finish, forward, init, reference
# ---------------------------------------------------------------------------
def _leaky(x):
    return jnp.where(x >= 0.0, x, NEG_SLOPE * x)


def s2d_flatten(x_nhwc):
    """Pad(+1) and space-to-depth(2) an NHWC activation, then flatten the spatial dims.

    Returns a bf16 (N, S_pad, 4*C) tensor whose row i*Ws + j holds the 2x2 input block at s2d
    position (i, j) (plus >=1 zero pad rows), and (Ho, Wo, Ws=Wo+1).  In this layout each of the
    four 2x2-conv taps is one contiguous (Ho*Ws, 4*C) window, so the conv kernel needs no gather
    and no materialized im2col; one junk output column (j == Wo) per output row is produced by
    the kernel and sliced away afterwards.
    """
    N, H, W, C = x_nhwc.shape
    assert H % 2 == 0 and W % 2 == 0, (H, W)
    Ho, Wo = H // 2, W // 2
    Hs, Ws = Ho + 1, Wo + 1
    xp = jnp.pad(x_nhwc, ((0, 0), (1, 1), (1, 1), (0, 0)))
    xs = (xp.reshape(N, Hs, 2, Ws, 2, C)
            .transpose(0, 1, 3, 2, 4, 5)           # (n, i, j, p, q, c)
            .reshape(N, Hs * Ws, 4 * C))
    s_pad = _round_up(Hs * Ws + 1, 8)
    xs = jnp.pad(xs, ((0, 0), (0, s_pad - Hs * Ws), (0, 0)))
    return xs.astype(jnp.bfloat16), (Ho, Wo, Ws)


def _bn_scale_shift(stats, m_real, gamma, beta):
    """Finish the global BN reduction from the tiny per-sample (sum, sum-sq) partials (f32)."""
    tot = jnp.sum(stats, axis=0)                            # (2, C)
    mean = tot[0] / m_real
    var = jnp.maximum(tot[1] / m_real - mean * mean, 0.0)   # biased var (BN training mode)
    scale = gamma * jax.lax.rsqrt(var + BN_EPS)
    shift = beta - mean * scale
    return scale, shift


def discriminator_forward(img_nchw, text_embedding, params):
    N = img_nchw.shape[0]
    x = jnp.transpose(img_nchw.astype(jnp.float32), (0, 2, 3, 1))    # NCHW -> NHWC

    # conv1: Conv2d(Cin, 64, 4, 2, 1) + LeakyReLU(0.2) fused in-kernel (no BN)
    xs1, (Ho1, Wo1, Ws1) = s2d_flatten(x)
    z1 = conv_s2d(xs1, params["w1"], params["b1"], Ho=Ho1, Ws=Ws1,
                  fuse_act=True, emit_stats=False)
    a1 = z1.reshape(N, Ho1, Ws1, 64)[:, :, :Wo1, :]                  # bf16, junk column dropped

    # conv2: Conv2d(64, 128, 4, 2, 1); BN2 + LeakyReLU folded into the conv3 input glue
    xs2, (Ho2, Wo2, Ws2) = s2d_flatten(a1)
    z2, st2 = conv_s2d(xs2, params["w2"], params["b2"], Ho=Ho2, Ws=Ws2,
                       fuse_act=False, emit_stats=True)
    scale2, shift2 = _bn_scale_shift(st2, N * Ho2 * Wo2, params["g2"], params["be2"])
    a2 = z2.reshape(N, Ho2, Ws2, 128)[:, :, :Wo2, :].astype(jnp.float32)
    a2 = _leaky(a2 * scale2 + shift2)          # fused by XLA into the next pad+s2d pass

    # conv3: Conv2d(128, 256, 4, 2, 1); BN3 + LeakyReLU fold into the FC input prep
    xs3, (Ho3, Wo3, Ws3) = s2d_flatten(a2)
    z3, st3 = conv_s2d(xs3, params["w3"], params["b3"], Ho=Ho3, Ws=Ws3,
                       fuse_act=False, emit_stats=True)
    scale3, shift3 = _bn_scale_shift(st3, N * Ho3 * Wo3, params["g3"], params["be3"])
    a3 = z3.reshape(N, Ho3, Ws3, 256)[:, :, :Wo3, :].astype(jnp.float32)
    a3 = _leaky(a3 * scale3 + shift3)

    # Flatten the NHWC feature map directly; the PyTorch NCHW `.view(N, -1)` permutation is
    # folded into the FC weight row order (see init_params), so no HBM transpose is needed.
    feats = a3.reshape(N, -1)
    combined = jnp.concatenate([feats, text_embedding.astype(jnp.float32)], axis=1)
    f_pad = params["wf"].shape[0]
    combined = jnp.pad(combined, ((0, 0), (0, f_pad - combined.shape[1])))
    return fc_layer(combined.astype(jnp.bfloat16), params["wf"], params["bf"])


def init_params(key, img_channels, img_size, text_dim):
    ks = jax.random.split(key, 8)
    scale = 0.05

    def conv_w(k, cin, cout):
        # (kh, kw, Cin, Cout) conv weight repacked for the s2d kernel as (tap, 4*Cin, Cout):
        # tap = 2a + b indexes the 2x2 conv on the s2d view, rows are ((2p+q)*Cin + ci) with
        # (p, q) the sub-pixel position, i.e. original tap (di, dj) = (2a+p, 2b+q).  To import
        # PyTorch weights start from weight.permute(2, 3, 1, 0) and apply this repack.
        # No 128-lane padding of the contraction dim (per-tap K = 4*Cin).
        w4 = scale * jax.random.normal(k, (4, 4, cin, cout), jnp.float32)
        w = (w4.reshape(2, 2, 2, 2, cin, cout)     # (a, p, b, q, ci, co)
               .transpose(0, 2, 1, 3, 4, 5)        # (a, b, p, q, ci, co)
               .reshape(4, 4 * cin, cout))
        return w.astype(jnp.bfloat16)

    p = {}
    p["w1"] = conv_w(ks[0], img_channels, 64)
    p["b1"] = scale * jax.random.normal(ks[1], (1, 64), jnp.float32)
    p["w2"] = conv_w(ks[2], 64, 128)
    p["b2"] = scale * jax.random.normal(ks[3], (1, 128), jnp.float32)
    p["w3"] = conv_w(ks[4], 128, 256)
    p["b3"] = scale * jax.random.normal(ks[5], (1, 256), jnp.float32)
    # BatchNorm affine params (PyTorch default init: gamma=1, beta=0)
    p["g2"], p["be2"] = jnp.ones((128,), jnp.float32), jnp.zeros((128,), jnp.float32)
    p["g3"], p["be3"] = jnp.ones((256,), jnp.float32), jnp.zeros((256,), jnp.float32)

    # FC: Linear(256*(s//8)^2 + text_dim, 1).  Rows are ordered [NHWC-flattened conv3 features,
    # text]; to import PyTorch weights permute the image-feature rows from NCHW `.view` order.
    # Stored lane-dense as (F_pad, 128) bf16 with only column 0 non-zero so the kernel's output
    # stores are full-lane; padded rows/columns are zero.
    hw = img_size // 8
    feat_dim = 256 * hw * hw + text_dim
    f_pad = _round_up(feat_dim, FC_TILE_F)
    wf_col = scale * jax.random.normal(ks[6], (feat_dim,), jnp.float32)
    p["wf"] = (jnp.zeros((f_pad, LANE), jnp.float32)
               .at[:feat_dim, 0].set(wf_col)).astype(jnp.bfloat16)
    p["bf"] = (jnp.zeros((1, LANE), jnp.float32)
               .at[0, 0].set(scale * jax.random.normal(ks[7], (), jnp.float32)))
    return p


# ---------------------------------------------------------------------------
# Pure-JAX/XLA reference (f32 activations, identical bf16 weights) for validation
# ---------------------------------------------------------------------------
def _s2d_weight_to_hwio(w, cin, cout):
    """Invert the init_params repack: (4, 4*Cin, Cout) tap layout -> (4, 4, Cin, Cout) HWIO."""
    w6 = w.astype(jnp.float32).reshape(2, 2, 2, 2, cin, cout)       # (a, b, p, q, ci, co)
    return w6.transpose(0, 2, 1, 3, 4, 5).reshape(4, 4, cin, cout)  # (di, dj, ci, co)


def reference_forward(img_nchw, text_embedding, params, img_channels):
    x = jnp.transpose(img_nchw.astype(jnp.float32), (0, 2, 3, 1))

    def conv(h, w, b, cin, cout):
        w4 = _s2d_weight_to_hwio(w, cin, cout)
        y = jax.lax.conv_general_dilated(h, w4, window_strides=(2, 2),
                                         padding=((1, 1), (1, 1)),
                                         dimension_numbers=("NHWC", "HWIO", "NHWC"))
        return y + b.astype(jnp.float32).reshape(1, 1, 1, -1)

    def bn(h, g, be):
        m = h.mean(axis=(0, 1, 2))
        v = h.var(axis=(0, 1, 2))          # biased (BN training mode)
        return (h - m) * (g * jax.lax.rsqrt(v + BN_EPS)) + be

    h = _leaky(conv(x, params["w1"], params["b1"], img_channels, 64))
    h = _leaky(bn(conv(h, params["w2"], params["b2"], 64, 128), params["g2"], params["be2"]))
    h = _leaky(bn(conv(h, params["w3"], params["b3"], 128, 256), params["g3"], params["be3"]))
    feats = h.reshape(h.shape[0], -1)
    comb = jnp.concatenate([feats, text_embedding.astype(jnp.float32)], axis=1)
    wf = params["wf"].astype(jnp.float32)[:comb.shape[1], :1]
    return comb @ wf + params["bf"][0, 0]


# ---------------------------------------------------------------------------
if __name__ == "__main__":
    IMG_CHANNELS = 4
    IMG_SIZE = 16
    TEXT_DIM = 8
    BATCH = 2

    key = jax.random.PRNGKey(0)
    k_img, k_txt, k_par = jax.random.split(key, 3)

    img = jax.random.normal(k_img, (BATCH, IMG_CHANNELS, IMG_SIZE, IMG_SIZE), jnp.float32)
    text = jax.random.normal(k_txt, (BATCH, TEXT_DIM), jnp.float32)
    params = init_params(k_par, IMG_CHANNELS, IMG_SIZE, TEXT_DIM)

    fwd = jax.jit(discriminator_forward)
    validity = jax.block_until_ready(fwd(img, text, params))

    assert validity.shape == (BATCH, 1), validity.shape
    assert bool(jnp.all(jnp.isfinite(validity)))

    # Cross-check against the pure-JAX reference (same bf16 weights, f32 activations);
    # loose tolerance only absorbs the intentional bf16 activation storage.
    ref = reference_forward(img, text, params, IMG_CHANNELS)
    max_err = float(jnp.max(jnp.abs(validity - ref)))
    tol = 0.1 * (1.0 + float(jnp.max(jnp.abs(ref))))
    assert max_err < tol, (max_err, tol)

    print("KERNEL_OK")
</pallas_src>

<mosaic_0001>
module attributes {stable_mosaic.version = 11 : i64} {
  func.func @_conv_s2d_kernel(%arg0: i32, %arg1: memref<1x88x16xbf16, #tpu.memory_space<vmem>>, %arg2: memref<4x16x64xbf16, #tpu.memory_space<vmem>>, %arg3: memref<1x64xf32, #tpu.memory_space<vmem>>, %arg4: memref<1x72x64xbf16, #tpu.memory_space<vmem>>) attributes {dimension_semantics = [#tpu.dimension_semantics<parallel>], iteration_bounds = array<i64: 2>, scalar_prefetch = 0 : i64, scratch_operands = 0 : i64, tpu.core_type = #tpu.core_type<tc>, window_params = [{transform_indices = @transform_0, window_bounds = array<i64: 1, 88, 16>}, {pipeline_mode = #tpu.pipeline_mode<synchronous>, transform_indices = @transform_1, window_bounds = array<i64: 4, 16, 64>}, {pipeline_mode = #tpu.pipeline_mode<synchronous>, transform_indices = @transform_2, window_bounds = array<i64: 1, 64>}, {transform_indices = @transform_3, window_bounds = array<i64: 1, 72, 64>}]} {
    %c0 = arith.constant 0 : index
    %c0_0 = arith.constant 0 : index
    %c0_1 = arith.constant 0 : index
    %0 = vector.load %arg1[%c0, %c0_0, %c0_1] : memref<1x88x16xbf16, #tpu.memory_space<vmem>>, vector<1x72x16xbf16>
    %1 = vector.shape_cast %0 : vector<1x72x16xbf16> to vector<72x16xbf16>
    %c0_2 = arith.constant 0 : index
    %c0_3 = arith.constant 0 : index
    %c0_4 = arith.constant 0 : index
    %2 = vector.load %arg2[%c0_2, %c0_3, %c0_4] : memref<4x16x64xbf16, #tpu.memory_space<vmem>>, vector<1x16x64xbf16>
    %3 = vector.shape_cast %2 : vector<1x16x64xbf16> to vector<16x64xbf16>
    %cst = arith.constant dense<0.000000e+00> : vector<72x64xf32>
    %4 = tpu.matmul %1, %3, %cst {dimension_numbers = #tpu.dot_dimension_numbers<[1], [0], [0], [1], [0, 0, 1, 1], [], []>} : vector<72x16xbf16>, vector<16x64xbf16>, vector<72x64xf32> -> vector<72x64xf32>
    %c0_5 = arith.constant 0 : index
    %c1 = arith.constant 1 : index
    %c0_6 = arith.constant 0 : index
    %5 = vector.load %arg1[%c0_5, %c1, %c0_6] : memref<1x88x16xbf16, #tpu.memory_space<vmem>>, vector<1x72x16xbf16>
    %6 = vector.shape_cast %5 : vector<1x72x16xbf16> to vector<72x16xbf16>
    %c1_7 = arith.constant 1 : index
    %c0_8 = arith.constant 0 : index
    %c0_9 = arith.constant 0 : index
    %7 = vector.load %arg2[%c1_7, %c0_8, %c0_9] : memref<4x16x64xbf16, #tpu.memory_space<vmem>>, vector<1x16x64xbf16>
    %8 = vector.shape_cast %7 : vector<1x16x64xbf16> to vector<16x64xbf16>
    %cst_10 = arith.constant dense<0.000000e+00> : vector<72x64xf32>
    %9 = tpu.matmul %6, %8, %cst_10 {dimension_numbers = #tpu.dot_dimension_numbers<[1], [0], [0], [1], [0, 0, 1, 1], [], []>} : vector<72x16xbf16>, vector<16x64xbf16>, vector<72x64xf32> -> vector<72x64xf32>
    %10 = arith.addf %4, %9 : vector<72x64xf32>
    %c0_11 = arith.constant 0 : index
    %c9 = arith.constant 9 : index
    %c0_12 = arith.constant 0 : index
    %11 = vector.load %arg1[%c0_11, %c9, %c0_12] : memref<1x88x16xbf16, #tpu.memory_space<vmem>>, vector<1x72x16xbf16>
    %12 = vector.shape_cast %11 : vector<1x72x16xbf16> to vector<72x16xbf16>
    %c2 = arith.constant 2 : index
    %c0_13 = arith.constant 0 : index
    %c0_14 = arith.constant 0 : index
    %13 = vector.load %arg2[%c2, %c0_13, %c0_14] : memref<4x16x64xbf16, #tpu.memory_space<vmem>>, vector<1x16x64xbf16>
    %14 = vector.shape_cast %13 : vector<1x16x64xbf16> to vector<16x64xbf16>
    %cst_15 = arith.constant dense<0.000000e+00> : vector<72x64xf32>
    %15 = tpu.matmul %12, %14, %cst_15 {dimension_numbers = #tpu.dot_dimension_numbers<[1], [0], [0], [1], [0, 0, 1, 1], [], []>} : vector<72x16xbf16>, vector<16x64xbf16>, vector<72x64xf32> -> vector<72x64xf32>
    %16 = arith.addf %10, %15 : vector<72x64xf32>
    %c0_16 = arith.constant 0 : index
    %c10 = arith.constant 10 : index
    %c0_17 = arith.constant 0 : index
    %17 = vector.load %arg1[%c0_16, %c10, %c0_17] : memref<1x88x16xbf16, #tpu.memory_space<vmem>>, vector<1x72x16xbf16>
    %18 = vector.shape_cast %17 : vector<1x72x16xbf16> to vector<72x16xbf16>
    %c3 = arith.constant 3 : index
    %c0_18 = arith.constant 0 : index
    %c0_19 = arith.constant 0 : index
    %19 = vector.load %arg2[%c3, %c0_18, %c0_19] : memref<4x16x64xbf16, #tpu.memory_space<vmem>>, vector<1x16x64xbf16>
    %20 = vector.shape_cast %19 : vector<1x16x64xbf16> to vector<16x64xbf16>
    %cst_20 = arith.constant dense<0.000000e+00> : vector<72x64xf32>
    %21 = tpu.matmul %18, %20, %cst_20 {dimension_numbers = #tpu.dot_dimension_numbers<[1], [0], [0], [1], [0, 0, 1, 1], [], []>} : vector<72x16xbf16>, vector<16x64xbf16>, vector<72x64xf32> -> vector<72x64xf32>
    %22 = arith.addf %16, %21 : vector<72x64xf32>
    %c0_21 = arith.constant 0 : index
    %c0_22 = arith.constant 0 : index
    %23 = vector.load %arg3[%c0_21, %c0_22] : memref<1x64xf32, #tpu.memory_space<vmem>>, vector<1x64xf32>
    %24 = vector.broadcast %23 : vector<1x64xf32> to vector<72x64xf32>
    %25 = arith.addf %22, %24 : vector<72x64xf32>
    %cst_23 = arith.constant 0.000000e+00 : f32
    %26 = vector.broadcast %cst_23 : f32 to vector<72x64xf32>
    %27 = arith.cmpf oge, %25, %26 : vector<72x64xf32>
    %cst_24 = arith.constant 2.000000e-01 : f32
    %28 = vector.broadcast %cst_24 : f32 to vector<72x64xf32>
    %29 = arith.mulf %28, %25 : vector<72x64xf32>
    %30 = arith.select %27, %25, %29 : vector<72x64xi1>, vector<72x64xf32>
    %31 = arith.truncf %30 : vector<72x64xf32> to vector<72x64xbf16>
    %c0_25 = arith.constant 0 : index
    %c0_26 = arith.constant 0 : index
    %c0_27 = arith.constant 0 : index
    %32 = vector.load %arg4[%c0_25, %c0_26, %c0_27] : memref<1x72x64xbf16, #tpu.memory_space<vmem>>, vector<1x72x64xbf16>
    %33 = vector.shape_cast %32 : vector<1x72x64xbf16> to vector<72x64xbf16>
    %34 = vector.shape_cast %31 : vector<72x64xbf16> to vector<1x72x64xbf16>
    tpu.vector_store %arg4[%c0_25, %c0_26, %c0_27], %34 {strides = array<i32>} : memref<1x72x64xbf16, #tpu.memory_space<vmem>>, vector<1x72x64xbf16>,
    return
  }
  func.func @transform_0(%arg0: i32) -> (i32, i32, i32) {
    %c0_i32 = arith.constant 0 : i32
    %c0_i32_0 = arith.constant 0 : i32
    %c0_i32_1 = arith.constant 0 : i32
    return %arg0, %c0_i32, %c0_i32_0 : i32, i32, i32
  }
  func.func @transform_1(%arg0: i32) -> (i32, i32, i32) {
    %c0_i32 = arith.constant 0 : i32
    %c0_i32_0 = arith.constant 0 : i32
    %c0_i32_1 = arith.constant 0 : i32
    %c0_i32_2 = arith.constant 0 : i32
    return %c0_i32, %c0_i32_0, %c0_i32_1 : i32, i32, i32
  }
  func.func @transform_2(%arg0: i32) -> (i32, i32) {
    %c0_i32 = arith.constant 0 : i32
    %c0_i32_0 = arith.constant 0 : i32
    %c0_i32_1 = arith.constant 0 : i32
    return %c0_i32, %c0_i32_0 : i32, i32
  }
  func.func @transform_3(%arg0: i32) -> (i32, i32, i32) {
    %c0_i32 = arith.constant 0 : i32
    %c0_i32_0 = arith.constant 0 : i32
    %c0_i32_1 = arith.constant 0 : i32
    return %arg0, %c0_i32, %c0_i32_0 : i32, i32, i32
  }
}

module attributes {stable_mosaic.version = 11 : i64} {
  func.func @_conv_s2d_kernel(%arg0: i32, %arg1: memref<1x32x256xbf16, #tpu.memory_space<vmem>>, %arg2: memref<4x256x128xbf16, #tpu.memory_space<vmem>>, %arg3: memref<1x128xf32, #tpu.memory_space<vmem>>, %arg4: memref<1x20x128xbf16, #tpu.memory_space<vmem>>, %arg5: memref<1x2x128xf32, #tpu.memory_space<vmem>>) attributes {dimension_semantics = [#tpu.dimension_semantics<parallel>], iteration_bounds = array<i64: 2>, scalar_prefetch = 0 : i64, scratch_operands = 0 : i64, tpu.core_type = #tpu.core_type<tc>, window_params = [{transform_indices = @transform_0, window_bounds = array<i64: 1, 32, 256>}, {pipeline_mode = #tpu.pipeline_mode<synchronous>, transform_indices = @transform_1, window_bounds = array<i64: 4, 256, 128>}, {pipeline_mode = #tpu.pipeline_mode<synchronous>, transform_indices = @transform_2, window_bounds = array<i64: 1, 128>}, {transform_indices = @transform_3, window_bounds = array<i64: 1, 20, 128>}, {transform_indices = @transform_4, window_bounds = array<i64: 1, 2, 128>}]} {
    %c0 = arith.constant 0 : index
    %c0_0 = arith.constant 0 : index
    %c0_1 = arith.constant 0 : index
    %0 = vector.load %arg1[%c0, %c0_0, %c0_1] : memref<1x32x256xbf16, #tpu.memory_space<vmem>>, vector<1x20x256xbf16>
    %1 = vector.shape_cast %0 : vector<1x20x256xbf16> to vector<20x256xbf16>
    %c0_2 = arith.constant 0 : index
    %c0_3 = arith.constant 0 : index
    %c0_4 = arith.constant 0 : index
    %2 = vector.load %arg2[%c0_2, %c0_3, %c0_4] : memref<4x256x128xbf16, #tpu.memory_space<vmem>>, vector<1x256x128xbf16>
    %3 = vector.shape_cast %2 : vector<1x256x128xbf16> to vector<256x128xbf16>
    %cst = arith.constant dense<0.000000e+00> : vector<20x128xf32>
    %4 = tpu.matmul %1, %3, %cst {dimension_numbers = #tpu.dot_dimension_numbers<[1], [0], [0], [1], [0, 0, 1, 1], [], []>} : vector<20x256xbf16>, vector<256x128xbf16>, vector<20x128xf32> -> vector<20x128xf32>
    %c0_5 = arith.constant 0 : index
    %c1 = arith.constant 1 : index
    %c0_6 = arith.constant 0 : index
    %5 = vector.load %arg1[%c0_5, %c1, %c0_6] : memref<1x32x256xbf16, #tpu.memory_space<vmem>>, vector<1x20x256xbf16>
    %6 = vector.shape_cast %5 : vector<1x20x256xbf16> to vector<20x256xbf16>
    %c1_7 = arith.constant 1 : index
    %c0_8 = arith.constant 0 : index
    %c0_9 = arith.constant 0 : index
    %7 = vector.load %arg2[%c1_7, %c0_8, %c0_9] : memref<4x256x128xbf16, #tpu.memory_space<vmem>>, vector<1x256x128xbf16>
    %8 = vector.shape_cast %7 : vector<1x256x128xbf16> to vector<256x128xbf16>
    %cst_10 = arith.constant dense<0.000000e+00> : vector<20x128xf32>
    %9 = tpu.matmul %6, %8, %cst_10 {dimension_numbers = #tpu.dot_dimension_numbers<[1], [0], [0], [1], [0, 0, 1, 1], [], []>} : vector<20x256xbf16>, vector<256x128xbf16>, vector<20x128xf32> -> vector<20x128xf32>
    %10 = arith.addf %4, %9 : vector<20x128xf32>
    %c0_11 = arith.constant 0 : index
    %c5 = arith.constant 5 : index
    %c0_12 = arith.constant 0 : index
    %11 = vector.load %arg1[%c0_11, %c5, %c0_12] : memref<1x32x256xbf16, #tpu.memory_space<vmem>>, vector<1x20x256xbf16>
    %12 = vector.shape_cast %11 : vector<1x20x256xbf16> to vector<20x256xbf16>
    %c2 = arith.constant 2 : index
    %c0_13 = arith.constant 0 : index
    %c0_14 = arith.constant 0 : index
    %13 = vector.load %arg2[%c2, %c0_13, %c0_14] : memref<4x256x128xbf16, #tpu.memory_space<vmem>>, vector<1x256x128xbf16>
    %14 = vector.shape_cast %13 : vector<1x256x128xbf16> to vector<256x128xbf16>
    %cst_15 = arith.constant dense<0.000000e+00> : vector<20x128xf32>
    %15 = tpu.matmul %12, %14, %cst_15 {dimension_numbers = #tpu.dot_dimension_numbers<[1], [0], [0], [1], [0, 0, 1, 1], [], []>} : vector<20x256xbf16>, vector<256x128xbf16>, vector<20x128xf32> -> vector<20x128xf32>
    %16 = arith.addf %10, %15 : vector<20x128xf32>
    %c0_16 = arith.constant 0 : index
    %c6 = arith.constant 6 : index
    %c0_17 = arith.constant 0 : index
    %17 = vector.load %arg1[%c0_16, %c6, %c0_17] : memref<1x32x256xbf16, #tpu.memory_space<vmem>>, vector<1x20x256xbf16>
    %18 = vector.shape_cast %17 : vector<1x20x256xbf16> to vector<20x256xbf16>
    %c3 = arith.constant 3 : index
    %c0_18 = arith.constant 0 : index
    %c0_19 = arith.constant 0 : index
    %19 = vector.load %arg2[%c3, %c0_18, %c0_19] : memref<4x256x128xbf16, #tpu.memory_space<vmem>>, vector<1x256x128xbf16>
    %20 = vector.shape_cast %19 : vector<1x256x128xbf16> to vector<256x128xbf16>
    %cst_20 = arith.constant dense<0.000000e+00> : vector<20x128xf32>
    %21 = tpu.matmul %18, %20, %cst_20 {dimension_numbers = #tpu.dot_dimension_numbers<[1], [0], [0], [1], [0, 0, 1, 1], [], []>} : vector<20x256xbf16>, vector<256x128xbf16>, vector<20x128xf32> -> vector<20x128xf32>
    %22 = arith.addf %16, %21 : vector<20x128xf32>
    %c0_21 = arith.constant 0 : index
    %c0_22 = arith.constant 0 : index
    %23 = vector.load %arg3[%c0_21, %c0_22] : memref<1x128xf32, #tpu.memory_space<vmem>>, vector<1x128xf32>
    %24 = vector.broadcast %23 : vector<1x128xf32> to vector<20x128xf32>
    %25 = arith.addf %22, %24 : vector<20x128xf32>
    %26 = tpu.iota {dimensions = array<i32: 0>} : vector<20x1xi32>
    %c5_i32 = arith.constant 5 : i32
    %c0_i32 = arith.constant 0 : i32
    %27 = arith.cmpi eq, %c5_i32, %c0_i32 : i32
    %c1_i32 = arith.constant 1 : i32
    %28 = arith.select %27, %c1_i32, %c5_i32 : i32
    %29 = vector.broadcast %28 : i32 to vector<20x1xi32>
    %30 = arith.remsi %26, %29 : vector<20x1xi32>
    %c0_i32_23 = arith.constant 0 : i32
    %31 = vector.broadcast %c0_i32_23 : i32 to vector<20x1xi32>
    %32 = arith.cmpi ne, %30, %31 : vector<20x1xi32>
    %c0_i32_24 = arith.constant 0 : i32
    %33 = vector.broadcast %c0_i32_24 : i32 to vector<20x1xi32>
    %34 = arith.cmpi slt, %30, %33 : vector<20x1xi32>
    %c0_i32_25 = arith.constant 0 : i32
    %35 = arith.cmpi slt, %28, %c0_i32_25 : i32
    %36 = vector.broadcast %35 : i1 to vector<20x1xi1>
    %37 = vector.broadcast %36 : vector<20x1xi1> to vector<20x1xi1>
    %38 = arith.xori %34, %37 : vector<20x1xi1>
    %39 = arith.andi %38, %32 : vector<20x1xi1>
    %40 = vector.broadcast %28 : i32 to vector<20x1xi32>
    %41 = arith.addi %30, %40 : vector<20x1xi32>
    %42 = arith.select %39, %41, %30 : vector<20x1xi1>, vector<20x1xi32>
    %c4_i32 = arith.constant 4 : i32
    %43 = vector.broadcast %c4_i32 : i32 to vector<20x1xi32>
    %44 = arith.cmpi ne, %42, %43 : vector<20x1xi32>
    %cst_26 = arith.constant 0.000000e+00 : f32
    %45 = vector.shape_cast %44 : vector<20x1xi1> to vector<20x1xi1>
    %46 = vector.broadcast %45 : vector<20x1xi1> to vector<20x128xi1>
    %47 = vector.broadcast %cst_26 : f32 to vector<20x128xf32>
    %48 = arith.select %46, %25, %47 : vector<20x128xi1>, vector<20x128xf32>
    %cst_27 = arith.constant dense<0.000000e+00> : vector<128xf32>
    %49 = vector.multi_reduction <add>, %48, %cst_27 [0] : vector<20x128xf32> to vector<128xf32>
    %50 = vector.shape_cast %49 : vector<128xf32> to vector<1x128xf32>
    %c0_28 = arith.constant 0 : index
    %c0_29 = arith.constant 0 : index
    %c0_30 = arith.constant 0 : index
    %51 = vector.load %arg5[%c0_28, %c0_29, %c0_30] : memref<1x2x128xf32, #tpu.memory_space<vmem>>, vector<1x1x128xf32>
    %52 = vector.shape_cast %51 : vector<1x1x128xf32> to vector<1x128xf32>
    %53 = vector.shape_cast %50 : vector<1x128xf32> to vector<1x1x128xf32>
    tpu.vector_store %arg5[%c0_28, %c0_29, %c0_30], %53 {strides = array<i32>} : memref<1x2x128xf32, #tpu.memory_space<vmem>>, vector<1x1x128xf32>,
    %54 = arith.mulf %48, %48 : vector<20x128xf32>
    %cst_31 = arith.constant dense<0.000000e+00> : vector<128xf32>
    %55 = vector.multi_reduction <add>, %54, %cst_31 [0] : vector<20x128xf32> to vector<128xf32>
    %56 = vector.shape_cast %55 : vector<128xf32> to vector<1x128xf32>
    %c0_32 = arith.constant 0 : index
    %c1_33 = arith.constant 1 : index
    %c0_34 = arith.constant 0 : index
    %57 = vector.load %arg5[%c0_32, %c1_33, %c0_34] : memref<1x2x128xf32, #tpu.memory_space<vmem>>, vector<1x1x128xf32>
    %58 = vector.shape_cast %57 : vector<1x1x128xf32> to vector<1x128xf32>
    %59 = vector.shape_cast %56 : vector<1x128xf32> to vector<1x1x128xf32>
    tpu.vector_store %arg5[%c0_32, %c1_33, %c0_34], %59 {strides = array<i32>} : memref<1x2x128xf32, #tpu.memory_space<vmem>>, vector<1x1x128xf32>,
    %60 = arith.truncf %25 : vector<20x128xf32> to vector<20x128xbf16>
    %c0_35 = arith.constant 0 : index
    %c0_36 = arith.constant 0 : index
    %c0_37 = arith.constant 0 : index
    %61 = vector.load %arg4[%c0_35, %c0_36, %c0_37] : memref<1x20x128xbf16, #tpu.memory_space<vmem>>, vector<1x20x128xbf16>
    %62 = vector.shape_cast %61 : vector<1x20x128xbf16> to vector<20x128xbf16>
    %63 = vector.shape_cast %60 : vector<20x128xbf16> to vector<1x20x128xbf16>
    tpu.vector_store %arg4[%c0_35, %c0_36, %c0_37], %63 {strides = array<i32>} : memref<1x20x128xbf16, #tpu.memory_space<vmem>>, vector<1x20x128xbf16>,
    return
  }
  func.func @transform_0(%arg0: i32) -> (i32, i32, i32) {
    %c0_i32 = arith.constant 0 : i32
    %c0_i32_0 = arith.constant 0 : i32
    %c0_i32_1 = arith.constant 0 : i32
    return %arg0, %c0_i32, %c0_i32_0 : i32, i32, i32
  }
  func.func @transform_1(%arg0: i32) -> (i32, i32, i32) {
    %c0_i32 = arith.constant 0 : i32
    %c0_i32_0 = arith.constant 0 : i32
    %c0_i32_1 = arith.constant 0 : i32
    %c0_i32_2 = arith.constant 0 : i32
    return %c0_i32, %c0_i32_0, %c0_i32_1 : i32, i32, i32
  }
  func.func @transform_2(%arg0: i32) -> (i32, i32) {
    %c0_i32 = arith.constant 0 : i32
    %c0_i32_0 = arith.constant 0 : i32
    %c0_i32_1 = arith.constant 0 : i32
    return %c0_i32, %c0_i32_0 : i32, i32
  }
  func.func @transform_3(%arg0: i32) -> (i32, i32, i32) {
    %c0_i32 = arith.constant 0 : i32
    %c0_i32_0 = arith.constant 0 : i32
    %c0_i32_1 = arith.constant 0 : i32
    return %arg0, %c0_i32, %c0_i32_0 : i32, i32, i32
  }
  func.func @transform_4(%arg0: i32) -> (i32, i32, i32) {
    %c0_i32 = arith.constant 0 : i32
    %c0_i32_0 = arith.constant 0 : i32
    %c0_i32_1 = arith.constant 0 : i32
    return %arg0, %c0_i32, %c0_i32_0 : i32, i32, i32
  }
}

module attributes {stable_mosaic.version = 11 : i64} {
  func.func @_conv_s2d_kernel(%arg0: i32, %arg1: memref<1x16x512xbf16, #tpu.memory_space<vmem>>, %arg2: memref<4x512x256xbf16, #tpu.memory_space<vmem>>, %arg3: memref<1x256xf32, #tpu.memory_space<vmem>>, %arg4: memref<1x6x256xbf16, #tpu.memory_space<vmem>>, %arg5: memref<1x2x256xf32, #tpu.memory_space<vmem>>) attributes {dimension_semantics = [#tpu.dimension_semantics<parallel>], iteration_bounds = array<i64: 2>, scalar_prefetch = 0 : i64, scratch_operands = 0 : i64, tpu.core_type = #tpu.core_type<tc>, window_params = [{transform_indices = @transform_0, window_bounds = array<i64: 1, 16, 512>}, {pipeline_mode = #tpu.pipeline_mode<synchronous>, transform_indices = @transform_1, window_bounds = array<i64: 4, 512, 256>}, {pipeline_mode = #tpu.pipeline_mode<synchronous>, transform_indices = @transform_2, window_bounds = array<i64: 1, 256>}, {transform_indices = @transform_3, window_bounds = array<i64: 1, 6, 256>}, {transform_indices = @transform_4, window_bounds = array<i64: 1, 2, 256>}]} {
    %c0 = arith.constant 0 : index
    %c0_0 = arith.constant 0 : index
    %c0_1 = arith.constant 0 : index
    %0 = vector.load %arg1[%c0, %c0_0, %c0_1] : memref<1x16x512xbf16, #tpu.memory_space<vmem>>, vector<1x6x512xbf16>
    %1 = vector.shape_cast %0 : vector<1x6x512xbf16> to vector<6x512xbf16>
    %c0_2 = arith.constant 0 : index
    %c0_3 = arith.constant 0 : index
    %c0_4 = arith.constant 0 : index
    %2 = vector.load %arg2[%c0_2, %c0_3, %c0_4] : memref<4x512x256xbf16, #tpu.memory_space<vmem>>, vector<1x512x256xbf16>
    %3 = vector.shape_cast %2 : vector<1x512x256xbf16> to vector<512x256xbf16>
    %cst = arith.constant dense<0.000000e+00> : vector<6x256xf32>
    %4 = tpu.matmul %1, %3, %cst {dimension_numbers = #tpu.dot_dimension_numbers<[1], [0], [0], [1], [0, 0, 1, 1], [], []>} : vector<6x512xbf16>, vector<512x256xbf16>, vector<6x256xf32> -> vector<6x256xf32>
    %c0_5 = arith.constant 0 : index
    %c1 = arith.constant 1 : index
    %c0_6 = arith.constant 0 : index
    %5 = vector.load %arg1[%c0_5, %c1, %c0_6] : memref<1x16x512xbf16, #tpu.memory_space<vmem>>, vector<1x6x512xbf16>
    %6 = vector.shape_cast %5 : vector<1x6x512xbf16> to vector<6x512xbf16>
    %c1_7 = arith.constant 1 : index
    %c0_8 = arith.constant 0 : index
    %c0_9 = arith.constant 0 : index
    %7 = vector.load %arg2[%c1_7, %c0_8, %c0_9] : memref<4x512x256xbf16, #tpu.memory_space<vmem>>, vector<1x512x256xbf16>
    %8 = vector.shape_cast %7 : vector<1x512x256xbf16> to vector<512x256xbf16>
    %cst_10 = arith.constant dense<0.000000e+00> : vector<6x256xf32>
    %9 = tpu.matmul %6, %8, %cst_10 {dimension_numbers = #tpu.dot_dimension_numbers<[1], [0], [0], [1], [0, 0, 1, 1], [], []>} : vector<6x512xbf16>, vector<512x256xbf16>, vector<6x256xf32> -> vector<6x256xf32>
    %10 = arith.addf %4, %9 : vector<6x256xf32>
    %c0_11 = arith.constant 0 : index
    %c3 = arith.constant 3 : index
    %c0_12 = arith.constant 0 : index
    %11 = vector.load %arg1[%c0_11, %c3, %c0_12] : memref<1x16x512xbf16, #tpu.memory_space<vmem>>, vector<1x6x512xbf16>
    %12 = vector.shape_cast %11 : vector<1x6x512xbf16> to vector<6x512xbf16>
    %c2 = arith.constant 2 : index
    %c0_13 = arith.constant 0 : index
    %c0_14 = arith.constant 0 : index
    %13 = vector.load %arg2[%c2, %c0_13, %c0_14] : memref<4x512x256xbf16, #tpu.memory_space<vmem>>, vector<1x512x256xbf16>
    %14 = vector.shape_cast %13 : vector<1x512x256xbf16> to vector<512x256xbf16>
    %cst_15 = arith.constant dense<0.000000e+00> : vector<6x256xf32>
    %15 = tpu.matmul %12, %14, %cst_15 {dimension_numbers = #tpu.dot_dimension_numbers<[1], [0], [0], [1], [0, 0, 1, 1], [], []>} : vector<6x512xbf16>, vector<512x256xbf16>, vector<6x256xf32> -> vector<6x256xf32>
    %16 = arith.addf %10, %15 : vector<6x256xf32>
    %c0_16 = arith.constant 0 : index
    %c4 = arith.constant 4 : index
    %c0_17 = arith.constant 0 : index
    %17 = vector.load %arg1[%c0_16, %c4, %c0_17] : memref<1x16x512xbf16, #tpu.memory_space<vmem>>, vector<1x6x512xbf16>
    %18 = vector.shape_cast %17 : vector<1x6x512xbf16> to vector<6x512xbf16>
    %c3_18 = arith.constant 3 : index
    %c0_19 = arith.constant 0 : index
    %c0_20 = arith.constant 0 : index
    %19 = vector.load %arg2[%c3_18, %c0_19, %c0_20] : memref<4x512x256xbf16, #tpu.memory_space<vmem>>, vector<1x512x256xbf16>
    %20 = vector.shape_cast %19 : vector<1x512x256xbf16> to vector<512x256xbf16>
    %cst_21 = arith.constant dense<0.000000e+00> : vector<6x256xf32>
    %21 = tpu.matmul %18, %20, %cst_21 {dimension_numbers = #tpu.dot_dimension_numbers<[1], [0], [0], [1], [0, 0, 1, 1], [], []>} : vector<6x512xbf16>, vector<512x256xbf16>, vector<6x256xf32> -> vector<6x256xf32>
    %22 = arith.addf %16, %21 : vector<6x256xf32>
    %c0_22 = arith.constant 0 : index
    %c0_23 = arith.constant 0 : index
    %23 = vector.load %arg3[%c0_22, %c0_23] : memref<1x256xf32, #tpu.memory_space<vmem>>, vector<1x256xf32>
    %24 = vector.broadcast %23 : vector<1x256xf32> to vector<6x256xf32>
    %25 = arith.addf %22, %24 : vector<6x256xf32>
    %26 = tpu.iota {dimensions = array<i32: 0>} : vector<6x1xi32>
    %c3_i32 = arith.constant 3 : i32
    %c0_i32 = arith.constant 0 : i32
    %27 = arith.cmpi eq, %c3_i32, %c0_i32 : i32
    %c1_i32 = arith.constant 1 : i32
    %28 = arith.select %27, %c1_i32, %c3_i32 : i32
    %29 = vector.broadcast %28 : i32 to vector<6x1xi32>
    %30 = arith.remsi %26, %29 : vector<6x1xi32>
    %c0_i32_24 = arith.constant 0 : i32
    %31 = vector.broadcast %c0_i32_24 : i32 to vector<6x1xi32>
    %32 = arith.cmpi ne, %30, %31 : vector<6x1xi32>
    %c0_i32_25 = arith.constant 0 : i32
    %33 = vector.broadcast %c0_i32_25 : i32 to vector<6x1xi32>
    %34 = arith.cmpi slt, %30, %33 : vector<6x1xi32>
    %c0_i32_26 = arith.constant 0 : i32
    %35 = arith.cmpi slt, %28, %c0_i32_26 : i32
    %36 = vector.broadcast %35 : i1 to vector<6x1xi1>
    %37 = vector.broadcast %36 : vector<6x1xi1> to vector<6x1xi1>
    %38 = arith.xori %34, %37 : vector<6x1xi1>
    %39 = arith.andi %38, %32 : vector<6x1xi1>
    %40 = vector.broadcast %28 : i32 to vector<6x1xi32>
    %41 = arith.addi %30, %40 : vector<6x1xi32>
    %42 = arith.select %39, %41, %30 : vector<6x1xi1>, vector<6x1xi32>
    %c2_i32 = arith.constant 2 : i32
    %43 = vector.broadcast %c2_i32 : i32 to vector<6x1xi32>
    %44 = arith.cmpi ne, %42, %43 : vector<6x1xi32>
    %cst_27 = arith.constant 0.000000e+00 : f32
    %45 = vector.shape_cast %44 : vector<6x1xi1> to vector<6x1xi1>
    %46 = vector.broadcast %45 : vector<6x1xi1> to vector<6x256xi1>
    %47 = vector.broadcast %cst_27 : f32 to vector<6x256xf32>
    %48 = arith.select %46, %25, %47 : vector<6x256xi1>, vector<6x256xf32>
    %cst_28 = arith.constant dense<0.000000e+00> : vector<256xf32>
    %49 = vector.multi_reduction <add>, %48, %cst_28 [0] : vector<6x256xf32> to vector<256xf32>
    %50 = vector.shape_cast %49 : vector<256xf32> to vector<1x256xf32>
    %c0_29 = arith.constant 0 : index
    %c0_30 = arith.constant 0 : index
    %c0_31 = arith.constant 0 : index
    %51 = vector.load %arg5[%c0_29, %c0_30, %c0_31] : memref<1x2x256xf32, #tpu.memory_space<vmem>>, vector<1x1x256xf32>
    %52 = vector.shape_cast %51 : vector<1x1x256xf32> to vector<1x256xf32>
    %53 = vector.shape_cast %50 : vector<1x256xf32> to vector<1x1x256xf32>
    tpu.vector_store %arg5[%c0_29, %c0_30, %c0_31], %53 {strides = array<i32>} : memref<1x2x256xf32, #tpu.memory_space<vmem>>, vector<1x1x256xf32>,
    %54 = arith.mulf %48, %48 : vector<6x256xf32>
    %cst_32 = arith.constant dense<0.000000e+00> : vector<256xf32>
    %55 = vector.multi_reduction <add>, %54, %cst_32 [0] : vector<6x256xf32> to vector<256xf32>
    %56 = vector.shape_cast %55 : vector<256xf32> to vector<1x256xf32>
    %c0_33 = arith.constant 0 : index
    %c1_34 = arith.constant 1 : index
    %c0_35 = arith.constant 0 : index
    %57 = vector.load %arg5[%c0_33, %c1_34, %c0_35] : memref<1x2x256xf32, #tpu.memory_space<vmem>>, vector<1x1x256xf32>
    %58 = vector.shape_cast %57 : vector<1x1x256xf32> to vector<1x256xf32>
    %59 = vector.shape_cast %56 : vector<1x256xf32> to vector<1x1x256xf32>
    tpu.vector_store %arg5[%c0_33, %c1_34, %c0_35], %59 {strides = array<i32>} : memref<1x2x256xf32, #tpu.memory_space<vmem>>, vector<1x1x256xf32>,
    %60 = arith.truncf %25 : vector<6x256xf32> to vector<6x256xbf16>
    %c0_36 = arith.constant 0 : index
    %c0_37 = arith.constant 0 : index
    %c0_38 = arith.constant 0 : index
    %61 = vector.load %arg4[%c0_36, %c0_37, %c0_38] : memref<1x6x256xbf16, #tpu.memory_space<vmem>>, vector<1x6x256xbf16>
    %62 = vector.shape_cast %61 : vector<1x6x256xbf16> to vector<6x256xbf16>
    %63 = vector.shape_cast %60 : vector<6x256xbf16> to vector<1x6x256xbf16>
    tpu.vector_store %arg4[%c0_36, %c0_37, %c0_38], %63 {strides = array<i32>} : memref<1x6x256xbf16, #tpu.memory_space<vmem>>, vector<1x6x256xbf16>,
    return
  }
  func.func @transform_0(%arg0: i32) -> (i32, i32, i32) {
    %c0_i32 = arith.constant 0 : i32
    %c0_i32_0 = arith.constant 0 : i32
    %c0_i32_1 = arith.constant 0 : i32
    return %arg0, %c0_i32, %c0_i32_0 : i32, i32, i32
  }
  func.func @transform_1(%arg0: i32) -> (i32, i32, i32) {
    %c0_i32 = arith.constant 0 : i32
    %c0_i32_0 = arith.constant 0 : i32
    %c0_i32_1 = arith.constant 0 : i32
    %c0_i32_2 = arith.constant 0 : i32
    return %c0_i32, %c0_i32_0, %c0_i32_1 : i32, i32, i32
  }
  func.func @transform_2(%arg0: i32) -> (i32, i32) {
    %c0_i32 = arith.constant 0 : i32
    %c0_i32_0 = arith.constant 0 : i32
    %c0_i32_1 = arith.constant 0 : i32
    return %c0_i32, %c0_i32_0 : i32, i32
  }
  func.func @transform_3(%arg0: i32) -> (i32, i32, i32) {
    %c0_i32 = arith.constant 0 : i32
    %c0_i32_0 = arith.constant 0 : i32
    %c0_i32_1 = arith.constant 0 : i32
    return %arg0, %c0_i32, %c0_i32_0 : i32, i32, i32
  }
  func.func @transform_4(%arg0: i32) -> (i32, i32, i32) {
    %c0_i32 = arith.constant 0 : i32
    %c0_i32_0 = arith.constant 0 : i32
    %c0_i32_1 = arith.constant 0 : i32
    return %arg0, %c0_i32, %c0_i32_0 : i32, i32, i32
  }
}

module attributes {stable_mosaic.version = 11 : i64} {
  func.func @_fc_kernel(%arg0: i32, %arg1: memref<2x512xbf16, #tpu.memory_space<vmem>>, %arg2: memref<512x128xbf16, #tpu.memory_space<vmem>>, %arg3: memref<1x128xf32, #tpu.memory_space<vmem>>, %arg4: memref<2x128xf32, #tpu.memory_space<vmem>>) attributes {dimension_semantics = [#tpu.dimension_semantics<arbitrary>], iteration_bounds = array<i64: 3>, scalar_prefetch = 0 : i64, scratch_operands = 0 : i64, tpu.core_type = #tpu.core_type<tc>, window_params = [{transform_indices = @transform_0, window_bounds = array<i64: 2, 512>}, {transform_indices = @transform_1, window_bounds = array<i64: 512, 128>}, {pipeline_mode = #tpu.pipeline_mode<synchronous>, transform_indices = @transform_2, window_bounds = array<i64: 1, 128>}, {pipeline_mode = #tpu.pipeline_mode<synchronous>, transform_indices = @transform_3, window_bounds = array<i64: 2, 128>}]} {
    %c0_i32 = arith.constant 0 : i32
    %0 = arith.cmpi eq, %arg0, %c0_i32 : i32
    %1 = arith.extui %0 : i1 to i32
    %c0_i32_0 = arith.constant 0 : i32
    %2 = arith.cmpi ne, %1, %c0_i32_0 : i32
    scf.if %2 {
      %c0_8 = arith.constant 0 : index
      %c0_9 = arith.constant 0 : index
      %9 = vector.load %arg3[%c0_8, %c0_9] : memref<1x128xf32, #tpu.memory_space<vmem>>, vector<1x128xf32>
      %10 = vector.shape_cast %9 : vector<1x128xf32> to vector<1x128xf32>
      %11 = vector.broadcast %10 : vector<1x128xf32> to vector<2x128xf32>
      %c0_10 = arith.constant 0 : index
      %c0_11 = arith.constant 0 : index
      %12 = vector.load %arg4[%c0_10, %c0_11] : memref<2x128xf32, #tpu.memory_space<vmem>>, vector<2x128xf32>
      tpu.vector_store %arg4[%c0_10, %c0_11], %11 {strides = array<i32>} : memref<2x128xf32, #tpu.memory_space<vmem>>, vector<2x128xf32>,
    } else {
    }
    %c0 = arith.constant 0 : index
    %c0_1 = arith.constant 0 : index
    %3 = vector.load %arg4[%c0, %c0_1] : memref<2x128xf32, #tpu.memory_space<vmem>>, vector<2x128xf32>
    %c0_2 = arith.constant 0 : index
    %c0_3 = arith.constant 0 : index
    %4 = vector.load %arg1[%c0_2, %c0_3] : memref<2x512xbf16, #tpu.memory_space<vmem>>, vector<2x512xbf16>
    %c0_4 = arith.constant 0 : index
    %c0_5 = arith.constant 0 : index
    %5 = vector.load %arg2[%c0_4, %c0_5] : memref<512x128xbf16, #tpu.memory_space<vmem>>, vector<512x128xbf16>
    %cst = arith.constant dense<0.000000e+00> : vector<2x128xf32>
    %6 = tpu.matmul %4, %5, %cst {dimension_numbers = #tpu.dot_dimension_numbers<[1], [0], [0], [1], [0, 0, 1, 1], [], []>} : vector<2x512xbf16>, vector<512x128xbf16>, vector<2x128xf32> -> vector<2x128xf32>
    %7 = arith.addf %3, %6 : vector<2x128xf32>
    %c0_6 = arith.constant 0 : index
    %c0_7 = arith.constant 0 : index
    %8 = vector.load %arg4[%c0_6, %c0_7] : memref<2x128xf32, #tpu.memory_space<vmem>>, vector<2x128xf32>
    tpu.vector_store %arg4[%c0_6, %c0_7], %7 {strides = array<i32>} : memref<2x128xf32, #tpu.memory_space<vmem>>, vector<2x128xf32>,
    return
  }
  func.func @transform_0(%arg0: i32) -> (i32, i32) {
    %c0_i32 = arith.constant 0 : i32
    %c0_i32_0 = arith.constant 0 : i32
    return %c0_i32, %arg0 : i32, i32
  }
  func.func @transform_1(%arg0: i32) -> (i32, i32) {
    %c0_i32 = arith.constant 0 : i32
    %c0_i32_0 = arith.constant 0 : i32
    return %arg0, %c0_i32 : i32, i32
  }
  func.func @transform_2(%arg0: i32) -> (i32, i32) {
    %c0_i32 = arith.constant 0 : i32
    %c0_i32_0 = arith.constant 0 : i32
    %c0_i32_1 = arith.constant 0 : i32
    return %c0_i32, %c0_i32_0 : i32, i32
  }
  func.func @transform_3(%arg0: i32) -> (i32, i32) {
    %c0_i32 = arith.constant 0 : i32
    %c0_i32_0 = arith.constant 0 : i32
    %c0_i32_1 = arith.constant 0 : i32
    return %c0_i32, %c0_i32_0 : i32, i32
  }
}

</mosaic_0001>

<llo_original>
// kernel: discriminator_forward.4
$region0: #{discriminator_forward.4}
  #allocation0 [shape = 'u32[]', space=smem, size = 0x4, offset = 0x4, fixed_abs, tag = 'smem constant byte address 0x4 - core index']
  #allocation1 [shape = 'u32[72,128]{1,0:T(1,128)}', space=vmem, size = 0x9000, scoped, tag = 'internal scratch']
  %s0 = inlined_call_operand.vmem [shape: bf16[2,88,16], index: 0, kind: input, shape index: {}]
  %s1 = inlined_call_operand.vmem [shape: bf16[4,16,64], index: 1, kind: input, shape index: {}]
  %s2 = inlined_call_operand.vmem [shape: f32[1,64], index: 2, kind: input, shape index: {}]
  %s3 = inlined_call_operand.vmem [shape: bf16[2,72,64], index: 3, kind: output, shape index: {}]
  %s4 = sld [smem:[#allocation0]]
  $region45: #{discriminator_forward.4} parent=0
    _
  %s6 = ssub.s32 1, %s4
  %s7 = scalar_select 0, %s6, %s4
  loop: start=0, step=1, limit=4
  $region2: #{discriminator_forward.4} parent=0 // loop_pre_header
    _
  $region3: #{discriminator_forward.4} parent=0 // loop_header
    %s9 = sphi 0, %s13
    %p10 = scmp.ge.s32.totalorder %s9, 4
    %s19 = sphi 0, %s21
    %s22 = sphi 0, %s19
    %s23 = sphi 0, %s22
    %s39 = sphi 0, %s23
    %s43 = sphi 0, %s43
    %s45 = sphi 0, %s43
    %s46 = sphi 0, %s45
    %s60 = sphi 0, %s46
    %s64 = sphi 0, %s64
    %s66 = sphi 0, %s64
    %s67 = sphi 0, %s66
    %s81 = sphi 0, %s67
    %s87 = sphi 0, %s89
    %s90 = sphi 0, %s87
    %s91 = sphi 0, %s90
    %s107 = sphi 0, %s91
  $region4: #{discriminator_forward.4} parent=0 // loop_header_branch
    %12 = sbr.rel (%p10) target = $region8
  $region5: #{discriminator_forward.4} parent=0 // loop_body
    %s14 = ssub.s32 %s9, 1
    %s15 = ssub.s32 %s9, 2
    %s16 = sadd.s32 %s9, 1
    %s17 = ssub.s32 %s9, %s16
    %p18 = scmp.eq.s32.totalorder %s17, 0
    %s20 = sadd.s32 %s19, 1
    %s21 = scalar_select %p18, %s19, %s20
    %p24 = pneg %p18
    %p25 = scmp.eq.s32.totalorder %s9, 1
    %p26 = por %p24, %p25
    %p27 = scmp.ne.s32.totalorder %s19, %s22
    %p28 = scmp.eq.s32.totalorder %s9, 0
    %p29 = por %p27, %p28
    %p30 = scmp.ne.s32.totalorder %s19, %s22
    %p31 = scmp.eq.s32.totalorder %s14, 1
    %p32 = por %p30, %p31
    %p33 = scmp.ne.s32.totalorder %s22, %s23
    %p34 = scmp.eq.s32.totalorder %s14, 0
    %p35 = por %p33, %p34
    %p36 = scmp.ne.s32.totalorder %s22, %s23
    %p37 = scmp.eq.s32.totalorder %s15, 1
    %p38 = por %p36, %p37
    %p40 = scmp.ne.s32.totalorder %s23, %s39
    %p41 = scmp.eq.s32.totalorder %s15, 0
    %p42 = por %p40, %p41
    %s44 = sadd.s32 %s43, 1
    %p47 = scmp.eq.s32.totalorder %s9, 1
    %p48 = scmp.ne.s32.totalorder %s43, %s45
    %p49 = scmp.eq.s32.totalorder %s9, 0
    %p50 = por %p48, %p49
    %p51 = scmp.ne.s32.totalorder %s43, %s45
    %p52 = scmp.eq.s32.totalorder %s14, 1
    %p53 = por %p51, %p52
    %p54 = scmp.ne.s32.totalorder %s45, %s46
    %p55 = scmp.eq.s32.totalorder %s14, 0
    %p56 = por %p54, %p55
    %p57 = scmp.ne.s32.totalorder %s45, %s46
    %p58 = scmp.eq.s32.totalorder %s15, 1
    %p59 = por %p57, %p58
    %p61 = scmp.ne.s32.totalorder %s46, %s60
    %p62 = scmp.eq.s32.totalorder %s15, 0
    %p63 = por %p61, %p62
    %s65 = sadd.s32 %s64, 1
    %p68 = scmp.eq.s32.totalorder %s9, 1
    %p69 = scmp.ne.s32.totalorder %s64, %s66
    %p70 = scmp.eq.s32.totalorder %s9, 0
    %p71 = por %p69, %p70
    %p72 = scmp.ne.s32.totalorder %s64, %s66
    %p73 = scmp.eq.s32.totalorder %s14, 1
    %p74 = por %p72, %p73
    %p75 = scmp.ne.s32.totalorder %s66, %s67
    %p76 = scmp.eq.s32.totalorder %s14, 0
    %p77 = por %p75, %p76
    %p78 = scmp.ne.s32.totalorder %s66, %s67
    %p79 = scmp.eq.s32.totalorder %s15, 1
    %p80 = por %p78, %p79
    %p82 = scmp.ne.s32.totalorder %s67, %s81
    %p83 = scmp.eq.s32.totalorder %s15, 0
    %p84 = por %p82, %p83
    %s85 = ssub.s32 %s9, %s16
    %p86 = scmp.eq.s32.totalorder %s85, 0
    %s88 = sadd.s32 %s87, 1
    %s89 = scalar_select %p86, %s87, %s88
    %p92 = pneg %p86
    %p93 = scmp.eq.s32.totalorder %s9, 1
    %p94 = por %p92, %p93
    %p95 = scmp.ne.s32.totalorder %s87, %s90
    %p96 = scmp.eq.s32.totalorder %s9, 0
    %p97 = por %p95, %p96
    %p98 = scmp.ne.s32.totalorder %s87, %s90
    %p99 = scmp.eq.s32.totalorder %s14, 1
    %p100 = por %p98, %p99
    %p101 = scmp.ne.s32.totalorder %s90, %s91
    %p102 = scmp.eq.s32.totalorder %s14, 0
    %p103 = por %p101, %p102
    %p104 = scmp.ne.s32.totalorder %s90, %s91
    %p105 = scmp.eq.s32.totalorder %s15, 1
    %p106 = por %p104, %p105
    %p108 = scmp.ne.s32.totalorder %s91, %s107
    %p109 = scmp.eq.s32.totalorder %s15, 0
    %p110 = por %p108, %p109
    %p111 = scmp.le.s32.totalorder 1, %s9
    %p112 = scmp.lt.s32.totalorder %s9, 3
    %p113 = pnand %p111, %p112
    %p114 = pneg %p113
    // Predicated region
    $region9: #{discriminator_forward.4} parent=5 // pred_check
      _
    $region10: #{discriminator_forward.4} parent=5 // pred_check_branch
      %116 = sbr.rel (%p113) target = $region12
    $region11: #{discriminator_forward.4} parent=5 // pred_region
      %s117 = ssub.s32 %s9, 1
      // Predicated region
      $region13: #{discriminator_forward.4} parent=11 // pred_check
        %p118 = pneg %p56
      $region14: #{discriminator_forward.4} parent=11 // pred_check_branch
        %120 = sbr.rel (%p118) target = $region16
      $region15: #{discriminator_forward.4} parent=11 // pred_region
        _
      $region16: #{discriminator_forward.4} parent=11 // pred_fallthru
        _
      // Predicated region
      $region17: #{discriminator_forward.4} parent=11 // pred_check
        %p121 = pneg %p77
      $region18: #{discriminator_forward.4} parent=11 // pred_check_branch
        %123 = sbr.rel (%p121) target = $region20
      $region19: #{discriminator_forward.4} parent=11 // pred_region
        _
      $region20: #{discriminator_forward.4} parent=11 // pred_fallthru
        _
    $region12: #{discriminator_forward.4} parent=5 // pred_fallthru
      _
    %p124 = scmp.lt.s32.totalorder %s9, 2
    // Predicated region
    $region21: #{discriminator_forward.4} parent=5 // pred_check
      %p125 = pneg %p124
    $region22: #{discriminator_forward.4} parent=5 // pred_check_branch
      %127 = sbr.rel (%p125) target = $region24
    $region23: #{discriminator_forward.4} parent=5 // pred_region
      // Predicated region
      $region25: #{discriminator_forward.4} parent=23 // pred_check
        %p128 = pneg %p29
      $region26: #{discriminator_forward.4} parent=23 // pred_check_branch
        %130 = sbr.rel (%p128) target = $region28
      $region27: #{discriminator_forward.4} parent=23 // pred_region
        %p131 = scmp.lt.s32.totalorder %s9, 1
        %s132 = scalar_select %p131, %s9, 1
        %s133 = smul.addr %s132, 11
        %s134 = smul.addr %s133, 4
        %s135 = scalar_lea.vmem %s0, %s134
      $region28: #{discriminator_forward.4} parent=23 // pred_fallthru
        _
    $region24: #{discriminator_forward.4} parent=5 // pred_fallthru
      _
    %p136 = scmp.le.s32.totalorder 1, %s9
    %p137 = scmp.lt.s32.totalorder %s9, 3
    %p138 = pnand %p136, %p137
    %p139 = pneg %p138
    // Predicated region
    $region29: #{discriminator_forward.4} parent=5 // pred_check
      _
    $region30: #{discriminator_forward.4} parent=5 // pred_check_branch
      %141 = sbr.rel (%p138) target = $region32
    $region31: #{discriminator_forward.4} parent=5 // pred_region
      %s142 = ssub.s32 %s9, 1
      %p143 = scmp.lt.s32.totalorder %s14, 1
      %s144 = scalar_select %p143, %s14, 1
      %s145 = smul.addr %s144, 11
      %s146 = smul.addr %s145, 4
      %s147 = scalar_lea.vmem %s0, %s146
      %p148 = pneg %p35
      %p149 = pneg %p32
      %p150 = pneg %p56
      %p151 = pneg %p53
      %p152 = pneg %p77
      %p153 = pneg %p74
      %p154 = pneg %p103
      %p155 = pneg %p100
      %p156 = scmp.lt.s32.totalorder %s14, 1
      %s157 = scalar_select %p156, %s14, 1
      %s158 = smul.addr %s157, 9
      %s159 = smul.addr %s158, 4
      %s160 = scalar_lea.vmem %s3, %s159
      %p161 = scmp.lt.s32.totalorder %s14, 1
      %s162 = scalar_select %p161, %s14, 1
      %s163 = smul.addr %s162, 11
      %s164 = smul.addr %s163, 4
      %s165 = scalar_lea.vmem %s0, %s164
      %p166 = scmp.lt.s32.totalorder %s14, 1
      %s167 = scalar_select %p166, %s14, 1
      %s168 = smul.addr %s167, 9
      %s169 = smul.addr %s168, 4
      %s170 = scalar_lea.vmem %s3, %s169
      %v172 = vld [vmem:[%s165] sm:$0xf]
      %v173 = vld [vmem:[%s165 + $0x4] sm:$0xf]
      %v174 = vld [vmem:[%s165 + $0x8] sm:$0xf]
      %v175 = vld [vmem:[%s165 + $0xc] sm:$0xf]
      %v176 = vld [vmem:[%s165 + $0x10] sm:$0xf]
      %v177 = vld [vmem:[%s165 + $0x14] sm:$0xf]
      %v178 = vld [vmem:[%s165 + $0x18] sm:$0xf]
      %v179 = vld [vmem:[%s165 + $0x1c] sm:$0xf]
      %v180 = vld [vmem:[%s165 + $0x20] sm:$0xf]
      %v181 = vld [vmem:[%s1] sm:$0xf]
      %v182 = vld [vmem:[%s1 + $0x4] sm:$0xf]
      %v183 = vld [vmem:[%s165 + $0x24] sm:$0x1]
      %s184 = scalar_lea.vmem %s1, 8
      %v185 = vld [vmem:[%s184] sm:$0xf]
      %v186 = vld [vmem:[%s184 + $0x4] sm:$0xf]
      %v197 = vunpack.c.l.b16 %v172
      %v198 = vunpack.c.l.b16 %v173
      %v199 = vunpack.c.l.b16 %v174
      %v200 = vunpack.c.l.b16 %v175
      %v201 = vunpack.c.l.b16 %v176
      %v202 = vunpack.c.l.b16 %v177
      %v203 = vunpack.c.l.b16 %v178
      %v204 = vunpack.c.l.b16 %v179
      %v205 = vunpack.c.l.b16 %v180
      %v206 = vunpack.c.l.b16 %v183
      %v207 = vpack.c.b16 %v198, %v197
      %v208 = vpack.c.b16 %v200, %v199
      %v209 = vpack.c.b16 %v202, %v201
      %v210 = vpack.c.b16 %v204, %v203
      %v211 = vpack.c.b16 %v206, %v205
      %vm212 = vsmask.f32 7424
      %v214 = vshrl.u32 %v207, 16
      %v216 = vshll.u32 %v207, 16
      %v218 = vrot.slane %v216, 1
      %v219 = vor.u32 %v214, %v218
      %v221 = vshll.u32 %v208, 16
      %v223 = vrot.slane %v221, 1
      %v224 = vsel %vm212, %v219, %v223
      %v225 = vshrl.u32 %v208, 16
      %v227 = vor.u32 %v225, %v223
      %v229 = vshll.u32 %v209, 16
      %v231 = vrot.slane %v229, 1
      %v232 = vsel %vm212, %v227, %v231
      %v233 = vshrl.u32 %v209, 16
      %v235 = vor.u32 %v233, %v231
      %v237 = vshll.u32 %v210, 16
      %v239 = vrot.slane %v237, 1
      %v240 = vsel %vm212, %v235, %v239
      %v241 = vshrl.u32 %v210, 16
      %v243 = vor.u32 %v241, %v239
      %v245 = vshll.u32 %v211, 16
      %v247 = vrot.slane %v245, 1
      %v248 = vsel %vm212, %v243, %v247
      %v249 = vshrl.u32 %v211, 16
      %v251 = vor.u32 %v249, %v247
      %v254 = vunpack.c.l.b16 %v185
      %v255 = vunpack.c.l.b16 %v186
      %v256 = vpack.c.b16 %v255, %v254
      %vm258 = vcmask 130048
      %v260 = vsel %vm258, %v224, 0
      %v263 = vsel %vm258, %v232, 0
      %v266 = vsel %vm258, %v240, 0
      %v269 = vsel %vm258, %v248, 0
      %v272 = vsel %vm258, %v251, 0
      %274 = vmatpush.bf16.msra.mxu0 0
      %275 = vmatpush.bf16.msra.mxu0 0
      %276 = vmatpush.bf16.msra.mxu0 0
      %277 = vmatpush.bf16.msra.mxu0 0
      %278 = vmatpush.bf16.msra.mxu0 0
      %279 = vmatpush.bf16.msra.mxu0 0
      %280 = vmatpush.bf16.msra.mxu0 0
      %281 = vmatpush.bf16.msra.mxu0 %v256
      %282 = vmatmul.bf16.gmra.mxu0 %v260
      %v283 = vpop.f32.mrf.mxu0
      %v284 = vadd.f32 0.0, %v283
      %v285 = vpop.f32.mrf.mxu0
      %v286 = vadd.f32 0.0, %v285
      %287 = vmatmul.bf16.gmra.mxu0 %v263
      %v288 = vpop.f32.mrf.mxu0
      %v289 = vadd.f32 0.0, %v288
      %v290 = vpop.f32.mrf.mxu0
      %v291 = vadd.f32 0.0, %v290
      %292 = vmatmul.bf16.gmra.mxu0 %v266
      %v293 = vpop.f32.mrf.mxu0
      %v294 = vadd.f32 0.0, %v293
      %v295 = vpop.f32.mrf.mxu0
      %v296 = vadd.f32 0.0, %v295
      %297 = vmatmul.bf16.gmra.mxu0 %v269
      %v298 = vpop.f32.mrf.mxu0
      %v299 = vadd.f32 0.0, %v298
      %v300 = vpop.f32.mrf.mxu0
      %v301 = vadd.f32 0.0, %v300
      %302 = vmatmul.bf16.gmra.mxu0 %v272
      %v303 = vpop.f32.mrf.mxu0
      %v304 = vadd.f32 0.0, %v303
      %v305 = vpop.f32.mrf.mxu0
      %306 = vdwg.mxu0
      %v307 = vpack.c.b16 %v205, %v205
      %v310 = vunpack.c.l.b16 %v181
      %v311 = vunpack.c.l.b16 %v182
      %v312 = vpack.c.b16 %v311, %v310
      %v314 = vsel %vm258, %v207, 0
      %v316 = vsel %vm258, %v208, 0
      %v318 = vsel %vm258, %v209, 0
      %v320 = vsel %vm258, %v210, 0
      %v323 = vsel %vm258, %v307, 0
      %325 = vmatpush.bf16.msra.mxu0 0
      %326 = vmatpush.bf16.msra.mxu0 0
      %327 = vmatpush.bf16.msra.mxu0 0
      %328 = vmatpush.bf16.msra.mxu0 0
      %329 = vmatpush.bf16.msra.mxu0 0
      %330 = vmatpush.bf16.msra.mxu0 0
      %331 = vmatpush.bf16.msra.mxu0 0
      %332 = vmatpush.bf16.msra.mxu0 %v312
      %333 = vmatmul.bf16.gmra.mxu0 %v314
      %v334 = vpop.f32.mrf.mxu0
      %v335 = vadd.f32 %v284, %v334
      %v336 = vpop.f32.mrf.mxu0
      %v337 = vadd.f32 %v286, %v336
      %338 = vmatmul.bf16.gmra.mxu0 %v316
      %v339 = vpop.f32.mrf.mxu0
      %v340 = vadd.f32 %v289, %v339
      %v341 = vpop.f32.mrf.mxu0
      %v342 = vadd.f32 %v291, %v341
      %343 = vmatmul.bf16.gmra.mxu0 %v318
      %v344 = vpop.f32.mrf.mxu0
      %v345 = vadd.f32 %v294, %v344
      %v346 = vpop.f32.mrf.mxu0
      %v347 = vadd.f32 %v296, %v346
      %348 = vmatmul.bf16.gmra.mxu0 %v320
      %v349 = vpop.f32.mrf.mxu0
      %v350 = vadd.f32 %v299, %v349
      %v351 = vpop.f32.mrf.mxu0
      %v352 = vadd.f32 %v301, %v351
      %353 = vmatmul.bf16.gmra.mxu0 %v323
      %v354 = vpop.f32.mrf.mxu0
      %v355 = vadd.f32 %v304, %v354
      %v356 = vpop.f32.mrf.mxu0
      %357 = vdwg.mxu0
      %v358 = vld [vmem:[%s165 + $0x4] sm:$0xf]
      %v359 = vld [vmem:[%s165 + $0x8] sm:$0xf]
      %v360 = vld [vmem:[%s165 + $0xc] sm:$0xf]
      %v361 = vld [vmem:[%s165 + $0x10] sm:$0xf]
      %v362 = vld [vmem:[%s165 + $0x14] sm:$0xf]
      %v363 = vld [vmem:[%s165 + $0x18] sm:$0xf]
      %v364 = vld [vmem:[%s165 + $0x1c] sm:$0xf]
      %v365 = vld [vmem:[%s165 + $0x20] sm:$0xf]
      %v366 = vld [vmem:[%s165 + $0x24] sm:$0xf]
      %v367 = vld [vmem:[%s165 + $0x28] sm:$0x1]
      %s368 = scalar_lea.vmem %s1, 16
      %v369 = vld [vmem:[%s368] sm:$0xf]
      %v370 = vld [vmem:[%s368 + $0x4] sm:$0xf]
      %v381 = vunpack.c.l.b16 %v358
      %v382 = vunpack.c.l.b16 %v359
      %v383 = vunpack.c.l.b16 %v360
      %v384 = vunpack.c.l.b16 %v361
      %v385 = vunpack.c.l.b16 %v362
      %v386 = vunpack.c.l.b16 %v363
      %v387 = vunpack.c.l.b16 %v364
      %v388 = vunpack.c.l.b16 %v365
      %v389 = vunpack.c.l.b16 %v366
      %v390 = vunpack.c.l.b16 %v367
      %v391 = vpack.c.b16 %v382, %v381
      %v392 = vpack.c.b16 %v384, %v383
      %v393 = vpack.c.b16 %v386, %v385
      %v394 = vpack.c.b16 %v388, %v387
      %v395 = vpack.c.b16 %v390, %v389
      %v397 = vshrl.u32 %v391, 16
      %v399 = vshll.u32 %v391, 16
      %v401 = vrot.slane %v399, 1
      %v402 = vor.u32 %v397, %v401
      %v404 = vshll.u32 %v392, 16
      %v406 = vrot.slane %v404, 1
      %v407 = vsel %vm212, %v402, %v406
      %v408 = vshrl.u32 %v392, 16
      %v410 = vor.u32 %v408, %v406
      %v412 = vshll.u32 %v393, 16
      %v414 = vrot.slane %v412, 1
      %v415 = vsel %vm212, %v410, %v414
      %v416 = vshrl.u32 %v393, 16
      %v418 = vor.u32 %v416, %v414
      %v420 = vshll.u32 %v394, 16
      %v422 = vrot.slane %v420, 1
      %v423 = vsel %vm212, %v418, %v422
      %v424 = vshrl.u32 %v394, 16
      %v426 = vor.u32 %v424, %v422
      %v428 = vshll.u32 %v395, 16
      %v430 = vrot.slane %v428, 1
      %v431 = vsel %vm212, %v426, %v430
      %v432 = vshrl.u32 %v395, 16
      %v434 = vor.u32 %v432, %v430
      %v437 = vunpack.c.l.b16 %v369
      %v438 = vunpack.c.l.b16 %v370
      %v439 = vpack.c.b16 %v438, %v437
      %v442 = vsel %vm258, %v407, 0
      %v445 = vsel %vm258, %v415, 0
      %v448 = vsel %vm258, %v423, 0
      %v451 = vsel %vm258, %v431, 0
      %v454 = vsel %vm258, %v434, 0
      %456 = vmatpush.bf16.msra.mxu0 0
      %457 = vmatpush.bf16.msra.mxu0 0
      %458 = vmatpush.bf16.msra.mxu0 0
      %459 = vmatpush.bf16.msra.mxu0 0
      %460 = vmatpush.bf16.msra.mxu0 0
      %461 = vmatpush.bf16.msra.mxu0 0
      %462 = vmatpush.bf16.msra.mxu0 0
      %463 = vmatpush.bf16.msra.mxu0 %v439
      %464 = vmatmul.bf16.gmra.mxu0 %v442
      %v465 = vpop.f32.mrf.mxu0
      %v466 = vadd.f32 0.0, %v465
      %v467 = vpop.f32.mrf.mxu0
      %v468 = vadd.f32 0.0, %v467
      %469 = vmatmul.bf16.gmra.mxu0 %v445
      %v470 = vpop.f32.mrf.mxu0
      %v471 = vadd.f32 0.0, %v470
      %v472 = vpop.f32.mrf.mxu0
      %v473 = vadd.f32 0.0, %v472
      %474 = vmatmul.bf16.gmra.mxu0 %v448
      %v475 = vpop.f32.mrf.mxu0
      %v476 = vadd.f32 0.0, %v475
      %v477 = vpop.f32.mrf.mxu0
      %v478 = vadd.f32 0.0, %v477
      %479 = vmatmul.bf16.gmra.mxu0 %v451
      %v480 = vpop.f32.mrf.mxu0
      %v481 = vadd.f32 0.0, %v480
      %v482 = vpop.f32.mrf.mxu0
      %v483 = vadd.f32 0.0, %v482
      %484 = vmatmul.bf16.gmra.mxu0 %v454
      %v485 = vpop.f32.mrf.mxu0
      %v486 = vadd.f32 0.0, %v485
      %v487 = vpop.f32.mrf.mxu0
      %488 = vdwg.mxu0
      %v489 = vadd.f32 %v335, %v466
      %v490 = vadd.f32 %v337, %v468
      %v491 = vadd.f32 %v340, %v471
      %v492 = vadd.f32 %v342, %v473
      %v493 = vadd.f32 %v345, %v476
      %v494 = vadd.f32 %v347, %v478
      %v495 = vadd.f32 %v350, %v481
      %v496 = vadd.f32 %v352, %v483
      %v497 = vadd.f32 %v355, %v486
      %v498 = vld [vmem:[%s165 + $0x4] sm:$0xe]
      %s499 = scalar_lea.vmem %s1, 24
      %v500 = vld [vmem:[%s499] sm:$0xf]
      %v501 = vld [vmem:[%s499 + $0x4] sm:$0xf]
      %v503 = vunpack.c.l.b16 %v498
      %v504 = vpack.c.b16 %v382, %v503
      %vm505 = vcmask 1046528
      %v506 = vrot.slane %v504, 1
      %v507 = vrot.slane %v392, 1
      %v508 = vsel %vm505, %v506, %v507
      %v509 = vrot.slane %v393, 1
      %v510 = vsel %vm505, %v507, %v509
      %v511 = vrot.slane %v394, 1
      %v512 = vsel %vm505, %v509, %v511
      %v513 = vrot.slane %v395, 1
      %v514 = vsel %vm505, %v511, %v513
      %v517 = vunpack.c.l.b16 %v500
      %v518 = vunpack.c.l.b16 %v501
      %v519 = vpack.c.b16 %v518, %v517
      %v522 = vsel %vm258, %v508, 0
      %v525 = vsel %vm258, %v510, 0
      %v528 = vsel %vm258, %v512, 0
      %v531 = vsel %vm258, %v514, 0
      %v534 = vsel %vm258, %v513, 0
      %536 = vmatpush.bf16.msra.mxu0 0
      %537 = vmatpush.bf16.msra.mxu0 0
      %538 = vmatpush.bf16.msra.mxu0 0
      %539 = vmatpush.bf16.msra.mxu0 0
      %540 = vmatpush.bf16.msra.mxu0 0
      %541 = vmatpush.bf16.msra.mxu0 0
      %542 = vmatpush.bf16.msra.mxu0 0
      %543 = vmatpush.bf16.msra.mxu0 %v519
      %544 = vmatmul.bf16.gmra.mxu0 %v522
      %v545 = vpop.f32.mrf.mxu0
      %v546 = vadd.f32 0.0, %v545
      %v547 = vpop.f32.mrf.mxu0
      %v548 = vadd.f32 0.0, %v547
      %549 = vmatmul.bf16.gmra.mxu0 %v525
      %v550 = vpop.f32.mrf.mxu0
      %v551 = vadd.f32 0.0, %v550
      %v552 = vpop.f32.mrf.mxu0
      %v553 = vadd.f32 0.0, %v552
      %554 = vmatmul.bf16.gmra.mxu0 %v528
      %v555 = vpop.f32.mrf.mxu0
      %v556 = vadd.f32 0.0, %v555
      %v557 = vpop.f32.mrf.mxu0
      %v558 = vadd.f32 0.0, %v557
      %559 = vmatmul.bf16.gmra.mxu0 %v531
      %v560 = vpop.f32.mrf.mxu0
      %v561 = vadd.f32 0.0, %v560
      %v562 = vpop.f32.mrf.mxu0
      %v563 = vadd.f32 0.0, %v562
      %564 = vmatmul.bf16.gmra.mxu0 %v534
      %v565 = vpop.f32.mrf.mxu0
      %v566 = vadd.f32 0.0, %v565
      %v567 = vpop.f32.mrf.mxu0
      %568 = vdwg.mxu0
      %v569 = vadd.f32 %v489, %v546
      %v570 = vadd.f32 %v490, %v548
      %v571 = vadd.f32 %v491, %v551
      %v572 = vadd.f32 %v492, %v553
      %v573 = vadd.f32 %v493, %v556
      %v574 = vadd.f32 %v494, %v558
      %v575 = vadd.f32 %v495, %v561
      %v576 = vadd.f32 %v496, %v563
      %v577 = vadd.f32 %v497, %v566
      %v578 = vld [vmem:[%s2] sm:$0x1]
      %v580 = vperm.slane %v578, 0
      %v582 = vadd.f32 %v569, %v580
      %v583 = vadd.f32 %v570, %v580
      %v584 = vadd.f32 %v571, %v580
      %v585 = vadd.f32 %v572, %v580
      %v586 = vadd.f32 %v573, %v580
      %v587 = vadd.f32 %v574, %v580
      %v588 = vadd.f32 %v575, %v580
      %v589 = vadd.f32 %v576, %v580
      %v590 = vadd.f32 %v577, %v580
      %vm591 = vcmp.ge.f32.partialorder %v582, 0.0
      %vm592 = vcmp.ge.f32.partialorder %v583, 0.0
      %vm593 = vcmp.ge.f32.partialorder %v584, 0.0
      %vm594 = vcmp.ge.f32.partialorder %v585, 0.0
      %vm595 = vcmp.ge.f32.partialorder %v586, 0.0
      %vm596 = vcmp.ge.f32.partialorder %v587, 0.0
      %vm597 = vcmp.ge.f32.partialorder %v588, 0.0
      %vm598 = vcmp.ge.f32.partialorder %v589, 0.0
      %vm599 = vcmp.ge.f32.partialorder %v590, 0.0
      %v600 = vmul.f32 %v582, 0.2
      %v601 = vmul.f32 %v583, 0.2
      %v602 = vmul.f32 %v584, 0.2
      %v603 = vmul.f32 %v585, 0.2
      %v604 = vmul.f32 %v586, 0.2
      %v605 = vmul.f32 %v587, 0.2
      %v606 = vmul.f32 %v588, 0.2
      %v607 = vmul.f32 %v589, 0.2
      %v608 = vmul.f32 %v590, 0.2
      %v609 = vsel %vm591, %v582, %v600
      %v610 = vsel %vm592, %v583, %v601
      %v611 = vsel %vm593, %v584, %v602
      %v612 = vsel %vm594, %v585, %v603
      %v613 = vsel %vm595, %v586, %v604
      %v614 = vsel %vm596, %v587, %v605
      %v615 = vsel %vm597, %v588, %v606
      %v616 = vsel %vm598, %v589, %v607
      %v617 = vsel %vm599, %v590, %v608
      %v618 = vpack.c.bf16 %v609, %v609
      %v619 = vpack.c.bf16 %v610, %v610
      %v620 = vpack.c.bf16 %v611, %v611
      %v621 = vpack.c.bf16 %v612, %v612
      %v622 = vpack.c.bf16 %v613, %v613
      %v623 = vpack.c.bf16 %v614, %v614
      %v624 = vpack.c.bf16 %v615, %v615
      %v625 = vpack.c.bf16 %v616, %v616
      %v626 = vpack.c.bf16 %v617, %v617
      %vm627 = vcmask 519168
      %628 = vst.msk [vmem:[%s170] sm:$0xf] %vm627, %v618
      %629 = vst.msk [vmem:[%s170 + $0x4] sm:$0xf] %vm627, %v619
      %630 = vst.msk [vmem:[%s170 + $0x8] sm:$0xf] %vm627, %v620
      %631 = vst.msk [vmem:[%s170 + $0xc] sm:$0xf] %vm627, %v621
      %632 = vst.msk [vmem:[%s170 + $0x10] sm:$0xf] %vm627, %v622
      %633 = vst.msk [vmem:[%s170 + $0x14] sm:$0xf] %vm627, %v623
      %634 = vst.msk [vmem:[%s170 + $0x18] sm:$0xf] %vm627, %v624
      %635 = vst.msk [vmem:[%s170 + $0x1c] sm:$0xf] %vm627, %v625
      %636 = vst.msk [vmem:[%s170 + $0x20] sm:$0xf] %vm627, %v626
      %p637 = scmp.lt.s32.totalorder %s14, 1
      %s638 = scalar_select %p637, %s14, 1
      %s639 = smul.addr %s638, 9
      %s640 = smul.addr %s639, 4
      %s641 = scalar_lea.vmem %s3, %s640
      // Predicated region
      $region33: #{discriminator_forward.4} parent=31 // pred_check
        %p642 = pneg %p100
      $region34: #{discriminator_forward.4} parent=31 // pred_check_branch
        %644 = sbr.rel (%p642) target = $region36
      $region35: #{discriminator_forward.4} parent=31 // pred_region
        _
      $region36: #{discriminator_forward.4} parent=31 // pred_fallthru
        _
    $region32: #{discriminator_forward.4} parent=5 // pred_fallthru
      _
    %p645 = scmp.le.s32.totalorder 2, %s9
    // Predicated region
    $region37: #{discriminator_forward.4} parent=5 // pred_check
      %p646 = pneg %p645
    $region38: #{discriminator_forward.4} parent=5 // pred_check_branch
      %648 = sbr.rel (%p646) target = $region40
    $region39: #{discriminator_forward.4} parent=5 // pred_region
      %s649 = ssub.s32 %s9, 2
      // Predicated region
      $region41: #{discriminator_forward.4} parent=39 // pred_check
        %p650 = pneg %p106
      $region42: #{discriminator_forward.4} parent=39 // pred_check_branch
        %652 = sbr.rel (%p650) target = $region44
      $region43: #{discriminator_forward.4} parent=39 // pred_region
        %p653 = scmp.lt.s32.totalorder %s15, 1
        %s654 = scalar_select %p653, %s15, 1
        %s655 = smul.addr %s654, 9
        %s656 = smul.addr %s655, 4
        %s657 = scalar_lea.vmem %s3, %s656
      $region44: #{discriminator_forward.4} parent=39 // pred_fallthru
        _
    $region40: #{discriminator_forward.4} parent=5 // pred_fallthru
      _
  $region6: #{discriminator_forward.4} parent=0 // loop_footer
    %s13 = sadd.s32 1, %s9
  $region7: #{discriminator_forward.4} parent=0 // loop_footer_branch
    %8 = sbr.rel target = $region3
  $region8: #{discriminator_forward.4} parent=0 // loop_exit
    _

// kernel: discriminator_forward.7
$region0: #{discriminator_forward.7}
  #allocation0 [shape = 'u32[]', space=smem, size = 0x4, offset = 0x4, fixed_abs, tag = 'smem constant byte address 0x4 - core index']
  #allocation1 [shape = 'u32[72,128]{1,0:T(1,128)}', space=vmem, size = 0x9000, scoped, tag = 'internal scratch']
  %s0 = inlined_call_operand.vmem [shape: bf16[2,1536], index: 0, kind: input, shape index: {}]
  %s1 = inlined_call_operand.vmem [shape: bf16[1536,128], index: 1, kind: input, shape index: {}]
  %s2 = inlined_call_operand.vmem [shape: f32[1,128], index: 2, kind: input, shape index: {}]
  %s3 = inlined_call_operand.vmem [shape: f32[2,128], index: 3, kind: output, shape index: {}]
  %s4 = sld [smem:[#allocation0]]
  $region49: #{discriminator_forward.7} parent=0
    _
  %s6 = ssub.s32 1, %s4
  %s7 = scalar_select 0, %s6, %s4
  loop: start=0, step=1, limit=5
  $region2: #{discriminator_forward.7} parent=0 // loop_pre_header
    _
  $region3: #{discriminator_forward.7} parent=0 // loop_header
    %s9 = sphi 0, %s13
    %p10 = scmp.ge.s32.totalorder %s9, 5
    %s19 = sphi 0, %s21
    %s22 = sphi 0, %s19
    %s23 = sphi 0, %s22
    %s39 = sphi 0, %s23
    %s45 = sphi 0, %s47
    %s48 = sphi 0, %s45
    %s49 = sphi 0, %s48
    %s65 = sphi 0, %s49
    %s69 = sphi 0, %s69
    %s71 = sphi 0, %s69
    %s72 = sphi 0, %s71
    %s86 = sphi 0, %s72
    %s90 = sphi 0, %s90
    %s92 = sphi 0, %s90
    %s93 = sphi 0, %s92
    %s107 = sphi 0, %s93
  $region4: #{discriminator_forward.7} parent=0 // loop_header_branch
    %12 = sbr.rel (%p10) target = $region8
  $region5: #{discriminator_forward.7} parent=0 // loop_body
    %s14 = ssub.s32 %s9, 1
    %s15 = ssub.s32 %s9, 2
    %s16 = sadd.s32 %s9, 1
    %s17 = ssub.s32 %s9, %s16
    %p18 = scmp.eq.s32.totalorder %s17, 0
    %s20 = sadd.s32 %s19, 1
    %s21 = scalar_select %p18, %s19, %s20
    %p24 = pneg %p18
    %p25 = scmp.eq.s32.totalorder %s9, 2
    %p26 = por %p24, %p25
    %p27 = scmp.ne.s32.totalorder %s19, %s22
    %p28 = scmp.eq.s32.totalorder %s9, 0
    %p29 = por %p27, %p28
    %p30 = scmp.ne.s32.totalorder %s19, %s22
    %p31 = scmp.eq.s32.totalorder %s14, 2
    %p32 = por %p30, %p31
    %p33 = scmp.ne.s32.totalorder %s22, %s23
    %p34 = scmp.eq.s32.totalorder %s14, 0
    %p35 = por %p33, %p34
    %p36 = scmp.ne.s32.totalorder %s22, %s23
    %p37 = scmp.eq.s32.totalorder %s15, 2
    %p38 = por %p36, %p37
    %p40 = scmp.ne.s32.totalorder %s23, %s39
    %p41 = scmp.eq.s32.totalorder %s15, 0
    %p42 = por %p40, %p41
    %s43 = ssub.s32 %s9, %s16
    %p44 = scmp.eq.s32.totalorder %s43, 0
    %s46 = sadd.s32 %s45, 1
    %s47 = scalar_select %p44, %s45, %s46
    %p50 = pneg %p44
    %p51 = scmp.eq.s32.totalorder %s9, 2
    %p52 = por %p50, %p51
    %p53 = scmp.ne.s32.totalorder %s45, %s48
    %p54 = scmp.eq.s32.totalorder %s9, 0
    %p55 = por %p53, %p54
    %p56 = scmp.ne.s32.totalorder %s45, %s48
    %p57 = scmp.eq.s32.totalorder %s14, 2
    %p58 = por %p56, %p57
    %p59 = scmp.ne.s32.totalorder %s48, %s49
    %p60 = scmp.eq.s32.totalorder %s14, 0
    %p61 = por %p59, %p60
    %p62 = scmp.ne.s32.totalorder %s48, %s49
    %p63 = scmp.eq.s32.totalorder %s15, 2
    %p64 = por %p62, %p63
    %p66 = scmp.ne.s32.totalorder %s49, %s65
    %p67 = scmp.eq.s32.totalorder %s15, 0
    %p68 = por %p66, %p67
    %s70 = sadd.s32 %s69, 1
    %p73 = scmp.eq.s32.totalorder %s9, 2
    %p74 = scmp.ne.s32.totalorder %s69, %s71
    %p75 = scmp.eq.s32.totalorder %s9, 0
    %p76 = por %p74, %p75
    %p77 = scmp.ne.s32.totalorder %s69, %s71
    %p78 = scmp.eq.s32.totalorder %s14, 2
    %p79 = por %p77, %p78
    %p80 = scmp.ne.s32.totalorder %s71, %s72
    %p81 = scmp.eq.s32.totalorder %s14, 0
    %p82 = por %p80, %p81
    %p83 = scmp.ne.s32.totalorder %s71, %s72
    %p84 = scmp.eq.s32.totalorder %s15, 2
    %p85 = por %p83, %p84
    %p87 = scmp.ne.s32.totalorder %s72, %s86
    %p88 = scmp.eq.s32.totalorder %s15, 0
    %p89 = por %p87, %p88
    %s91 = sadd.s32 %s90, 1
    %p94 = scmp.eq.s32.totalorder %s9, 2
    %p95 = scmp.ne.s32.totalorder %s90, %s92
    %p96 = scmp.eq.s32.totalorder %s9, 0
    %p97 = por %p95, %p96
    %p98 = scmp.ne.s32.totalorder %s90, %s92
    %p99 = scmp.eq.s32.totalorder %s14, 2
    %p100 = por %p98, %p99
    %p101 = scmp.ne.s32.totalorder %s92, %s93
    %p102 = scmp.eq.s32.totalorder %s14, 0
    %p103 = por %p101, %p102
    %p104 = scmp.ne.s32.totalorder %s92, %s93
    %p105 = scmp.eq.s32.totalorder %s15, 2
    %p106 = por %p104, %p105
    %p108 = scmp.ne.s32.totalorder %s93, %s107
    %p109 = scmp.eq.s32.totalorder %s15, 0
    %p110 = por %p108, %p109
    %p111 = scmp.le.s32.totalorder 1, %s9
    %p112 = scmp.lt.s32.totalorder %s9, 4
    %p113 = pnand %p111, %p112
    %p114 = pneg %p113
    // Predicated region
    $region9: #{discriminator_forward.7} parent=5 // pred_check
      _
    $region10: #{discriminator_forward.7} parent=5 // pred_check_branch
      %116 = sbr.rel (%p113) target = $region12
    $region11: #{discriminator_forward.7} parent=5 // pred_region
      %s117 = ssub.s32 %s9, 1
      // Predicated region
      $region13: #{discriminator_forward.7} parent=11 // pred_check
        %p118 = pneg %p82
      $region14: #{discriminator_forward.7} parent=11 // pred_check_branch
        %120 = sbr.rel (%p118) target = $region16
      $region15: #{discriminator_forward.7} parent=11 // pred_region
        _
      $region16: #{discriminator_forward.7} parent=11 // pred_fallthru
        _
    $region12: #{discriminator_forward.7} parent=5 // pred_fallthru
      _
    %p121 = scmp.lt.s32.totalorder %s9, 3
    // Predicated region
    $region17: #{discriminator_forward.7} parent=5 // pred_check
      %p122 = pneg %p121
    $region18: #{discriminator_forward.7} parent=5 // pred_check_branch
      %124 = sbr.rel (%p122) target = $region20
    $region19: #{discriminator_forward.7} parent=5 // pred_region
      // Predicated region
      $region21: #{discriminator_forward.7} parent=19 // pred_check
        %p125 = pneg %p29
      $region22: #{discriminator_forward.7} parent=19 // pred_check_branch
        %127 = sbr.rel (%p125) target = $region24
      $region23: #{discriminator_forward.7} parent=19 // pred_region
        %s128 = smul.u32 4, %s9
        %p129 = scmp.lt.s32.totalorder %s128, 11
        %s130 = scalar_select %p129, %s128, 11
        %s131 = scalar_lea.vmem %s0, %s130
        %s132 = smul.u32 4, %s9
      $region24: #{discriminator_forward.7} parent=19 // pred_fallthru
        _
      // Predicated region
      $region25: #{discriminator_forward.7} parent=19 // pred_check
        %p133 = pneg %p55
      $region26: #{discriminator_forward.7} parent=19 // pred_check_branch
        %135 = sbr.rel (%p133) target = $region28
      $region27: #{discriminator_forward.7} parent=19 // pred_region
        %s136 = smul.u32 64, %s9
        %p137 = scmp.lt.s32.totalorder %s136, 191
        %s138 = scalar_select %p137, %s136, 191
        %s139 = smul.addr %s138, 4
        %s140 = scalar_lea.vmem %s1, %s139
        %s141 = smul.u32 64, %s9
      $region28: #{discriminator_forward.7} parent=19 // pred_fallthru
        _
    $region20: #{discriminator_forward.7} parent=5 // pred_fallthru
      _
    %p142 = scmp.le.s32.totalorder 1, %s9
    %p143 = scmp.lt.s32.totalorder %s9, 4
    %p144 = pnand %p142, %p143
    %p145 = pneg %p144
    // Predicated region
    $region29: #{discriminator_forward.7} parent=5 // pred_check
      _
    $region30: #{discriminator_forward.7} parent=5 // pred_check_branch
      %147 = sbr.rel (%p144) target = $region32
    $region31: #{discriminator_forward.7} parent=5 // pred_region
      %s148 = ssub.s32 %s9, 1
      %s149 = smul.u32 4, %s14
      %p150 = scmp.lt.s32.totalorder %s149, 11
      %s151 = scalar_select %p150, %s149, 11
      %s152 = scalar_lea.vmem %s0, %s151
      %p153 = pneg %p35
      %p154 = pneg %p32
      %s155 = smul.u32 64, %s14
      %p156 = scmp.lt.s32.totalorder %s155, 191
      %s157 = scalar_select %p156, %s155, 191
      %s158 = smul.addr %s157, 4
      %s159 = scalar_lea.vmem %s1, %s158
      %p160 = pneg %p61
      %p161 = pneg %p58
      %p162 = pneg %p82
      %p163 = pneg %p79
      %p164 = pneg %p103
      %p165 = pneg %p100
      %s166 = smul.u32 4, %s14
      %p167 = scmp.lt.s32.totalorder %s166, 11
      %s168 = scalar_select %p167, %s166, 11
      %s169 = scalar_lea.vmem %s0, %s168
      %s170 = smul.u32 4, %s14
      %s171 = smul.u32 64, %s14
      %p172 = scmp.lt.s32.totalorder %s171, 191
      %s173 = scalar_select %p172, %s171, 191
      %s174 = smul.addr %s173, 4
      %s175 = scalar_lea.vmem %s1, %s174
      %s176 = smul.u32 64, %s14
      %p177 = scmp.eq.s32.totalorder %s14, 0
      // Predicated region
      $region33: #{discriminator_forward.7} parent=31 // pred_check
        %p178 = pneg %p177
      $region34: #{discriminator_forward.7} parent=31 // pred_check_branch
        %180 = sbr.rel (%p178) target = $region36
      $region35: #{discriminator_forward.7} parent=31 // pred_region
        %v181 = vld [vmem:[%s2] sm:$0x1]
        %v183 = vperm.slane %v181, 0
        %185 = vst [vmem:[%s3] sm:$0x3] %v183
      $region36: #{discriminator_forward.7} parent=31 // pred_fallthru
        _
      %v186 = vld [vmem:[%s3] sm:$0x3]
      %v187 = vld [vmem:[%s169] sm:$0xf]
      %v188 = vld [vmem:[%s175] sm:$0xf]
      %v189 = vld [vmem:[%s175 + $0x4] sm:$0xf]
      %v190 = vld [vmem:[%s175 + $0x8] sm:$0xf]
      %v191 = vld [vmem:[%s175 + $0xc] sm:$0xf]
      %v192 = vld [vmem:[%s175 + $0x10] sm:$0xf]
      %v193 = vld [vmem:[%s175 + $0x14] sm:$0xf]
      %v194 = vld [vmem:[%s175 + $0x18] sm:$0xf]
      %v195 = vld [vmem:[%s175 + $0x1c] sm:$0xf]
      %v196 = vld [vmem:[%s175 + $0x20] sm:$0xf]
      %v197 = vld [vmem:[%s175 + $0x24] sm:$0xf]
      %v198 = vld [vmem:[%s175 + $0x28] sm:$0xf]
      %v199 = vld [vmem:[%s175 + $0x2c] sm:$0xf]
      %v200 = vld [vmem:[%s175 + $0x30] sm:$0xf]
      %v201 = vld [vmem:[%s175 + $0x34] sm:$0xf]
      %v202 = vld [vmem:[%s175 + $0x38] sm:$0xf]
      %v203 = vld [vmem:[%s175 + $0x3c] sm:$0xf]
      %v204 = vld [vmem:[%s175 + $0x40] sm:$0xf]
      %v205 = vld [vmem:[%s175 + $0x44] sm:$0xf]
      %v206 = vld [vmem:[%s175 + $0x48] sm:$0xf]
      %v207 = vld [vmem:[%s175 + $0x4c] sm:$0xf]
      %v208 = vld [vmem:[%s175 + $0x50] sm:$0xf]
      %v209 = vld [vmem:[%s175 + $0x54] sm:$0xf]
      %v210 = vld [vmem:[%s175 + $0x58] sm:$0xf]
      %v211 = vld [vmem:[%s175 + $0x5c] sm:$0xf]
      %v212 = vld [vmem:[%s175 + $0x60] sm:$0xf]
      %v213 = vld [vmem:[%s175 + $0x64] sm:$0xf]
      %v214 = vld [vmem:[%s175 + $0x68] sm:$0xf]
      %v215 = vld [vmem:[%s175 + $0x6c] sm:$0xf]
      %v216 = vld [vmem:[%s175 + $0x70] sm:$0xf]
      %v217 = vld [vmem:[%s175 + $0x74] sm:$0xf]
      %v218 = vld [vmem:[%s175 + $0x78] sm:$0xf]
      %v219 = vld [vmem:[%s175 + $0x7c] sm:$0xf]
      %v220 = vld [vmem:[%s175 + $0x80] sm:$0xf]
      %v221 = vld [vmem:[%s175 + $0x84] sm:$0xf]
      %v222 = vld [vmem:[%s175 + $0x88] sm:$0xf]
      %v223 = vld [vmem:[%s175 + $0x8c] sm:$0xf]
      %v224 = vld [vmem:[%s175 + $0x90] sm:$0xf]
      %v225 = vld [vmem:[%s175 + $0x94] sm:$0xf]
      %v226 = vld [vmem:[%s175 + $0x98] sm:$0xf]
      %v227 = vld [vmem:[%s175 + $0x9c] sm:$0xf]
      %v228 = vld [vmem:[%s175 + $0xa0] sm:$0xf]
      %v229 = vld [vmem:[%s175 + $0xa4] sm:$0xf]
      %v230 = vld [vmem:[%s175 + $0xa8] sm:$0xf]
      %v231 = vld [vmem:[%s175 + $0xac] sm:$0xf]
      %v232 = vld [vmem:[%s175 + $0xb0] sm:$0xf]
      %v233 = vld [vmem:[%s175 + $0xb4] sm:$0xf]
      %v234 = vld [vmem:[%s175 + $0xb8] sm:$0xf]
      %v235 = vld [vmem:[%s175 + $0xbc] sm:$0xf]
      %v236 = vld [vmem:[%s175 + $0xc0] sm:$0xf]
      %v237 = vld [vmem:[%s175 + $0xc4] sm:$0xf]
      %v238 = vld [vmem:[%s175 + $0xc8] sm:$0xf]
      %v239 = vld [vmem:[%s175 + $0xcc] sm:$0xf]
      %v240 = vld [vmem:[%s175 + $0xd0] sm:$0xf]
      %v241 = vld [vmem:[%s175 + $0xd4] sm:$0xf]
      %v242 = vld [vmem:[%s175 + $0xd8] sm:$0xf]
      %v243 = vld [vmem:[%s175 + $0xdc] sm:$0xf]
      %v244 = vld [vmem:[%s175 + $0xe0] sm:$0xf]
      %v245 = vld [vmem:[%s175 + $0xe4] sm:$0xf]
      %v246 = vld [vmem:[%s175 + $0xe8] sm:$0xf]
      %v247 = vld [vmem:[%s175 + $0xec] sm:$0xf]
      %v248 = vld [vmem:[%s175 + $0xf0] sm:$0xf]
      %v249 = vld [vmem:[%s175 + $0xf4] sm:$0xf]
      %v250 = vld [vmem:[%s175 + $0xf8] sm:$0xf]
      %v251 = vld [vmem:[%s175 + $0xfc] sm:$0xf]
      %253 = vst [vmem:[#allocation1] ss:$9 sm:$0xff] %v187
      %v254 = vld [vmem:[#allocation1] sm:$0xff]
      %v255 = vld [vmem:[#allocation1 + $0x9] sm:$0xff]
      %v256 = vld [vmem:[#allocation1 + $0x12] sm:$0xff]
      %v257 = vld [vmem:[#allocation1 + $0x1b] sm:$0xff]
      %v326 = vunpack.c.l.b16 %v188
      %v327 = vunpack.c.l.b16 %v189
      %v328 = vunpack.c.l.b16 %v190
      %v329 = vunpack.c.l.b16 %v191
      %v330 = vunpack.c.l.b16 %v192
      %v331 = vunpack.c.l.b16 %v193
      %v332 = vunpack.c.l.b16 %v194
      %v333 = vunpack.c.l.b16 %v195
      %v334 = vunpack.c.l.b16 %v196
      %v335 = vunpack.c.l.b16 %v197
      %v336 = vunpack.c.l.b16 %v198
      %v337 = vunpack.c.l.b16 %v199
      %v338 = vunpack.c.l.b16 %v200
      %v339 = vunpack.c.l.b16 %v201
      %v340 = vunpack.c.l.b16 %v202
      %v341 = vunpack.c.l.b16 %v203
      %v342 = vunpack.c.l.b16 %v204
      %v343 = vunpack.c.l.b16 %v205
      %v344 = vunpack.c.l.b16 %v206
      %v345 = vunpack.c.l.b16 %v207
      %v346 = vunpack.c.l.b16 %v208
      %v347 = vunpack.c.l.b16 %v209
      %v348 = vunpack.c.l.b16 %v210
      %v349 = vunpack.c.l.b16 %v211
      %v350 = vunpack.c.l.b16 %v212
      %v351 = vunpack.c.l.b16 %v213
      %v352 = vunpack.c.l.b16 %v214
      %v353 = vunpack.c.l.b16 %v215
      %v354 = vunpack.c.l.b16 %v216
      %v355 = vunpack.c.l.b16 %v217
      %v356 = vunpack.c.l.b16 %v218
      %v357 = vunpack.c.l.b16 %v219
      %v358 = vunpack.c.l.b16 %v220
      %v359 = vunpack.c.l.b16 %v221
      %v360 = vunpack.c.l.b16 %v222
      %v361 = vunpack.c.l.b16 %v223
      %v362 = vunpack.c.l.b16 %v224
      %v363 = vunpack.c.l.b16 %v225
      %v364 = vunpack.c.l.b16 %v226
      %v365 = vunpack.c.l.b16 %v227
      %v366 = vunpack.c.l.b16 %v228
      %v367 = vunpack.c.l.b16 %v229
      %v368 = vunpack.c.l.b16 %v230
      %v369 = vunpack.c.l.b16 %v231
      %v370 = vunpack.c.l.b16 %v232
      %v371 = vunpack.c.l.b16 %v233
      %v372 = vunpack.c.l.b16 %v234
      %v373 = vunpack.c.l.b16 %v235
      %v374 = vunpack.c.l.b16 %v236
      %v375 = vunpack.c.l.b16 %v237
      %v376 = vunpack.c.l.b16 %v238
      %v377 = vunpack.c.l.b16 %v239
      %v378 = vunpack.c.l.b16 %v240
      %v379 = vunpack.c.l.b16 %v241
      %v380 = vunpack.c.l.b16 %v242
      %v381 = vunpack.c.l.b16 %v243
      %v382 = vunpack.c.l.b16 %v244
      %v383 = vunpack.c.l.b16 %v245
      %v384 = vunpack.c.l.b16 %v246
      %v385 = vunpack.c.l.b16 %v247
      %v386 = vunpack.c.l.b16 %v248
      %v387 = vunpack.c.l.b16 %v249
      %v388 = vunpack.c.l.b16 %v250
      %v389 = vunpack.c.l.b16 %v251
      %v390 = vpack.c.b16 %v327, %v326
      %v391 = vpack.c.b16 %v329, %v328
      %v392 = vpack.c.b16 %v331, %v330
      %v393 = vpack.c.b16 %v333, %v332
      %v394 = vpack.c.b16 %v335, %v334
      %v395 = vpack.c.b16 %v337, %v336
      %v396 = vpack.c.b16 %v339, %v338
      %v397 = vpack.c.b16 %v341, %v340
      %v398 = vpack.c.b16 %v343, %v342
      %v399 = vpack.c.b16 %v345, %v344
      %v400 = vpack.c.b16 %v347, %v346
      %v401 = vpack.c.b16 %v349, %v348
      %v402 = vpack.c.b16 %v351, %v350
      %v403 = vpack.c.b16 %v353, %v352
      %v404 = vpack.c.b16 %v355, %v354
      %v405 = vpack.c.b16 %v357, %v356
      %v406 = vpack.c.b16 %v359, %v358
      %v407 = vpack.c.b16 %v361, %v360
      %v408 = vpack.c.b16 %v363, %v362
      %v409 = vpack.c.b16 %v365, %v364
      %v410 = vpack.c.b16 %v367, %v366
      %v411 = vpack.c.b16 %v369, %v368
      %v412 = vpack.c.b16 %v371, %v370
      %v413 = vpack.c.b16 %v373, %v372
      %v414 = vpack.c.b16 %v375, %v374
      %v415 = vpack.c.b16 %v377, %v376
      %v416 = vpack.c.b16 %v379, %v378
      %v417 = vpack.c.b16 %v381, %v380
      %v418 = vpack.c.b16 %v383, %v382
      %v419 = vpack.c.b16 %v385, %v384
      %v420 = vpack.c.b16 %v387, %v386
      %v421 = vpack.c.b16 %v389, %v388
      %454 = vmatpush.bf16.msra.mxu0 %v397
      %455 = vmatpush.bf16.msra.mxu0 %v396
      %456 = vmatpush.bf16.msra.mxu0 %v395
      %457 = vmatpush.bf16.msra.mxu0 %v394
      %458 = vmatpush.bf16.msra.mxu0 %v393
      %459 = vmatpush.bf16.msra.mxu0 %v392
      %460 = vmatpush.bf16.msra.mxu0 %v391
      %461 = vmatpush.bf16.msra.mxu0 %v390
      %462 = vmatmul.bf16.gmra.mxu0 %v254
      %v463 = vpop.f32.mrf.mxu0
      %v464 = vadd.f32 0.0, %v463
      %v465 = vpop.f32.mrf.mxu0
      %466 = vdwg.mxu0
      %467 = vmatpush.bf16.msra.mxu0 %v405
      %468 = vmatpush.bf16.msra.mxu0 %v404
      %469 = vmatpush.bf16.msra.mxu0 %v403
      %470 = vmatpush.bf16.msra.mxu0 %v402
      %471 = vmatpush.bf16.msra.mxu0 %v401
      %472 = vmatpush.bf16.msra.mxu0 %v400
      %473 = vmatpush.bf16.msra.mxu0 %v399
      %474 = vmatpush.bf16.msra.mxu0 %v398
      %475 = vmatmul.bf16.gmra.mxu0 %v255
      %v476 = vpop.f32.mrf.mxu0
      %v477 = vadd.f32 %v464, %v476
      %v478 = vpop.f32.mrf.mxu0
      %479 = vdwg.mxu0
      %480 = vmatpush.bf16.msra.mxu0 %v413
      %481 = vmatpush.bf16.msra.mxu0 %v412
      %482 = vmatpush.bf16.msra.mxu0 %v411
      %483 = vmatpush.bf16.msra.mxu0 %v410
      %484 = vmatpush.bf16.msra.mxu0 %v409
      %485 = vmatpush.bf16.msra.mxu0 %v408
      %486 = vmatpush.bf16.msra.mxu0 %v407
      %487 = vmatpush.bf16.msra.mxu0 %v406
      %488 = vmatmul.bf16.gmra.mxu0 %v256
      %v489 = vpop.f32.mrf.mxu0
      %v490 = vadd.f32 %v477, %v489
      %v491 = vpop.f32.mrf.mxu0
      %492 = vdwg.mxu0
      %493 = vmatpush.bf16.msra.mxu0 %v421
      %494 = vmatpush.bf16.msra.mxu0 %v420
      %495 = vmatpush.bf16.msra.mxu0 %v419
      %496 = vmatpush.bf16.msra.mxu0 %v418
      %497 = vmatpush.bf16.msra.mxu0 %v417
      %498 = vmatpush.bf16.msra.mxu0 %v416
      %499 = vmatpush.bf16.msra.mxu0 %v415
      %500 = vmatpush.bf16.msra.mxu0 %v414
      %501 = vmatmul.bf16.gmra.mxu0 %v257
      %v502 = vpop.f32.mrf.mxu0
      %v503 = vadd.f32 %v490, %v502
      %v504 = vpop.f32.mrf.mxu0
      %505 = vdwg.mxu0
      %v506 = vadd.f32 %v186, %v503
      %507 = vst [vmem:[%s3] sm:$0x3] %v506
      // Predicated region
      $region37: #{discriminator_forward.7} parent=31 // pred_check
        %p508 = pneg %p100
      $region38: #{discriminator_forward.7} parent=31 // pred_check_branch
        %510 = sbr.rel (%p508) target = $region40
      $region39: #{discriminator_forward.7} parent=31 // pred_region
        _
      $region40: #{discriminator_forward.7} parent=31 // pred_fallthru
        _
      // Predicated region
      $region41: #{discriminator_forward.7} parent=31 // pred_check
        %p511 = pneg %p100
      $region42: #{discriminator_forward.7} parent=31 // pred_check_branch
        %513 = sbr.rel (%p511) target = $region44
      $region43: #{discriminator_forward.7} parent=31 // pred_region
        _
      $region44: #{discriminator_forward.7} parent=31 // pred_fallthru
        _
    $region32: #{discriminator_forward.7} parent=5 // pred_fallthru
      _
    %p514 = scmp.le.s32.totalorder 2, %s9
    // Predicated region
    $region45: #{discriminator_forward.7} parent=5 // pred_check
      %p515 = pneg %p514
    $region46: #{discriminator_forward.7} parent=5 // pred_check_branch
      %517 = sbr.rel (%p515) target = $region48
    $region47: #{discriminator_forward.7} parent=5 // pred_region
      %s518 = ssub.s32 %s9, 2
    $region48: #{discriminator_forward.7} parent=5 // pred_fallthru
      _
  $region6: #{discriminator_forward.7} parent=0 // loop_footer
    %s13 = sadd.s32 1, %s9
  $region7: #{discriminator_forward.7} parent=0 // loop_footer_branch
    %8 = sbr.rel target = $region3
  $region8: #{discriminator_forward.7} parent=0 // loop_exit
    _

// kernel: discriminator_forward.5
$region0: #{discriminator_forward.5}
  #allocation0 [shape = 'u32[]', space=smem, size = 0x4, offset = 0x4, fixed_abs, tag = 'smem constant byte address 0x4 - core index']
  #allocation1 [shape = 'u32[72,128]{1,0:T(1,128)}', space=vmem, size = 0x9000, scoped, tag = 'internal scratch']
  %s0 = inlined_call_operand.vmem [shape: bf16[2,32,256], index: 0, kind: input, shape index: {}]
  %s1 = inlined_call_operand.hbm [shape: bf16[4,256,128], index: 1, kind: input, shape index: {}]
  %s2 = inlined_call_operand.vmem [shape: f32[1,128], index: 2, kind: input, shape index: {}]
  %s3 = inlined_call_operand.vmem [shape: bf16[2,20,128], index: 3, kind: output, shape index: {0}]
  %s4 = inlined_call_operand.vmem [shape: f32[2,2,128], index: 4, kind: output, shape index: {1}]
  %5 = xla_tuple %s3, %s4
  %s6 = sld [smem:[#allocation0]]
  $region57: #{discriminator_forward.5} parent=0
    _
  %s8 = ssub.s32 1, %s6
  %s9 = scalar_select 0, %s8, %s6
  $region1: #{discriminator_forward.5} parent=0
    #allocation2 [shape = 'u8[262144]{0}', space=vmem, size = 0x40000, scoped, tag = 'input window, operand 1, single buffered']
    #allocation3 [shape = 's32[2]{0}', space=sflag, size = 0x8, scoped, tag = 'scoped memory for discriminator_forward.5']
    %10 = vsyncpa [#allocation3], 0
    loop: start=0, step=1, limit=4
    $region2: #{discriminator_forward.5} parent=1 // loop_pre_header
      _
    $region3: #{discriminator_forward.5} parent=1 // loop_header
      %s12 = sphi 0, %s16
      %p13 = scmp.ge.s32.totalorder %s12, 4
      %s22 = sphi 0, %s24
      %s25 = sphi 0, %s22
      %s26 = sphi 0, %s25
      %s42 = sphi 0, %s26
      %s46 = sphi 0, %s46
      %s48 = sphi 0, %s46
      %s49 = sphi 0, %s48
      %s63 = sphi 0, %s49
      %s67 = sphi 0, %s67
      %s69 = sphi 0, %s67
      %s70 = sphi 0, %s69
      %s84 = sphi 0, %s70
      %s90 = sphi 0, %s92
      %s93 = sphi 0, %s90
      %s94 = sphi 0, %s93
      %s110 = sphi 0, %s94
      %s116 = sphi 0, %s118
      %s119 = sphi 0, %s116
      %s120 = sphi 0, %s119
      %s136 = sphi 0, %s120
    $region4: #{discriminator_forward.5} parent=1 // loop_header_branch
      %15 = sbr.rel (%p13) target = $region8
    $region5: #{discriminator_forward.5} parent=1 // loop_body
      %s17 = ssub.s32 %s12, 1
      %s18 = ssub.s32 %s12, 2
      %s19 = sadd.s32 %s12, 1
      %s20 = ssub.s32 %s12, %s19
      %p21 = scmp.eq.s32.totalorder %s20, 0
      %s23 = sadd.s32 %s22, 1
      %s24 = scalar_select %p21, %s22, %s23
      %p27 = pneg %p21
      %p28 = scmp.eq.s32.totalorder %s12, 1
      %p29 = por %p27, %p28
      %p30 = scmp.ne.s32.totalorder %s22, %s25
      %p31 = scmp.eq.s32.totalorder %s12, 0
      %p32 = por %p30, %p31
      %p33 = scmp.ne.s32.totalorder %s22, %s25
      %p34 = scmp.eq.s32.totalorder %s17, 1
      %p35 = por %p33, %p34
      %p36 = scmp.ne.s32.totalorder %s25, %s26
      %p37 = scmp.eq.s32.totalorder %s17, 0
      %p38 = por %p36, %p37
      %p39 = scmp.ne.s32.totalorder %s25, %s26
      %p40 = scmp.eq.s32.totalorder %s18, 1
      %p41 = por %p39, %p40
      %p43 = scmp.ne.s32.totalorder %s26, %s42
      %p44 = scmp.eq.s32.totalorder %s18, 0
      %p45 = por %p43, %p44
      %s47 = sadd.s32 %s46, 1
      %p50 = scmp.eq.s32.totalorder %s12, 1
      %p51 = scmp.ne.s32.totalorder %s46, %s48
      %p52 = scmp.eq.s32.totalorder %s12, 0
      %p53 = por %p51, %p52
      %p54 = scmp.ne.s32.totalorder %s46, %s48
      %p55 = scmp.eq.s32.totalorder %s17, 1
      %p56 = por %p54, %p55
      %p57 = scmp.ne.s32.totalorder %s48, %s49
      %p58 = scmp.eq.s32.totalorder %s17, 0
      %p59 = por %p57, %p58
      %p60 = scmp.ne.s32.totalorder %s48, %s49
      %p61 = scmp.eq.s32.totalorder %s18, 1
      %p62 = por %p60, %p61
      %p64 = scmp.ne.s32.totalorder %s49, %s63
      %p65 = scmp.eq.s32.totalorder %s18, 0
      %p66 = por %p64, %p65
      %s68 = sadd.s32 %s67, 1
      %p71 = scmp.eq.s32.totalorder %s12, 1
      %p72 = scmp.ne.s32.totalorder %s67, %s69
      %p73 = scmp.eq.s32.totalorder %s12, 0
      %p74 = por %p72, %p73
      %p75 = scmp.ne.s32.totalorder %s67, %s69
      %p76 = scmp.eq.s32.totalorder %s17, 1
      %p77 = por %p75, %p76
      %p78 = scmp.ne.s32.totalorder %s69, %s70
      %p79 = scmp.eq.s32.totalorder %s17, 0
      %p80 = por %p78, %p79
      %p81 = scmp.ne.s32.totalorder %s69, %s70
      %p82 = scmp.eq.s32.totalorder %s18, 1
      %p83 = por %p81, %p82
      %p85 = scmp.ne.s32.totalorder %s70, %s84
      %p86 = scmp.eq.s32.totalorder %s18, 0
      %p87 = por %p85, %p86
      %s88 = ssub.s32 %s12, %s19
      %p89 = scmp.eq.s32.totalorder %s88, 0
      %s91 = sadd.s32 %s90, 1
      %s92 = scalar_select %p89, %s90, %s91
      %p95 = pneg %p89
      %p96 = scmp.eq.s32.totalorder %s12, 1
      %p97 = por %p95, %p96
      %p98 = scmp.ne.s32.totalorder %s90, %s93
      %p99 = scmp.eq.s32.totalorder %s12, 0
      %p100 = por %p98, %p99
      %p101 = scmp.ne.s32.totalorder %s90, %s93
      %p102 = scmp.eq.s32.totalorder %s17, 1
      %p103 = por %p101, %p102
      %p104 = scmp.ne.s32.totalorder %s93, %s94
      %p105 = scmp.eq.s32.totalorder %s17, 0
      %p106 = por %p104, %p105
      %p107 = scmp.ne.s32.totalorder %s93, %s94
      %p108 = scmp.eq.s32.totalorder %s18, 1
      %p109 = por %p107, %p108
      %p111 = scmp.ne.s32.totalorder %s94, %s110
      %p112 = scmp.eq.s32.totalorder %s18, 0
      %p113 = por %p111, %p112
      %s114 = ssub.s32 %s12, %s19
      %p115 = scmp.eq.s32.totalorder %s114, 0
      %s117 = sadd.s32 %s116, 1
      %s118 = scalar_select %p115, %s116, %s117
      %p121 = pneg %p115
      %p122 = scmp.eq.s32.totalorder %s12, 1
      %p123 = por %p121, %p122
      %p124 = scmp.ne.s32.totalorder %s116, %s119
      %p125 = scmp.eq.s32.totalorder %s12, 0
      %p126 = por %p124, %p125
      %p127 = scmp.ne.s32.totalorder %s116, %s119
      %p128 = scmp.eq.s32.totalorder %s17, 1
      %p129 = por %p127, %p128
      %p130 = scmp.ne.s32.totalorder %s119, %s120
      %p131 = scmp.eq.s32.totalorder %s17, 0
      %p132 = por %p130, %p131
      %p133 = scmp.ne.s32.totalorder %s119, %s120
      %p134 = scmp.eq.s32.totalorder %s18, 1
      %p135 = por %p133, %p134
      %p137 = scmp.ne.s32.totalorder %s120, %s136
      %p138 = scmp.eq.s32.totalorder %s18, 0
      %p139 = por %p137, %p138
      %p140 = scmp.le.s32.totalorder 1, %s12
      %p141 = scmp.lt.s32.totalorder %s12, 3
      %p142 = pnand %p140, %p141
      %p143 = pneg %p142
      // Predicated region
      $region9: #{discriminator_forward.5} parent=5 // pred_check
        _
      $region10: #{discriminator_forward.5} parent=5 // pred_check_branch
        %145 = sbr.rel (%p142) target = $region12
      $region11: #{discriminator_forward.5} parent=5 // pred_region
        %s146 = ssub.s32 %s12, 1
        // Predicated region
        $region13: #{discriminator_forward.5} parent=11 // pred_check
          %p147 = pneg %p59
        $region14: #{discriminator_forward.5} parent=11 // pred_check_branch
          %149 = sbr.rel (%p147) target = $region16
        $region15: #{discriminator_forward.5} parent=11 // pred_region
          %151 = vsyncadd [#allocation3], 0
          %s152 = sshll.u32 %s1, 4
          %s153 = int_to_ptr.hbm [resolvable:$true] %s152
          %s154 = sshll.u32 [#allocation2], 4
          %s155 = int_to_ptr.vmem [resolvable:$true] %s154
          %160 = dma.hbm_to_vmem [thread:$0]  %s153, 8192, %s155, [#allocation3], 64, 64, 4
        $region16: #{discriminator_forward.5} parent=11 // pred_fallthru
          _
        // Predicated region
        $region17: #{discriminator_forward.5} parent=11 // pred_check
          %p161 = pneg %p80
        $region18: #{discriminator_forward.5} parent=11 // pred_check_branch
          %163 = sbr.rel (%p161) target = $region20
        $region19: #{discriminator_forward.5} parent=11 // pred_region
          _
        $region20: #{discriminator_forward.5} parent=11 // pred_fallthru
          _
      $region12: #{discriminator_forward.5} parent=5 // pred_fallthru
        _
      %p164 = scmp.lt.s32.totalorder %s12, 2
      // Predicated region
      $region21: #{discriminator_forward.5} parent=5 // pred_check
        %p165 = pneg %p164
      $region22: #{discriminator_forward.5} parent=5 // pred_check_branch
        %167 = sbr.rel (%p165) target = $region24
      $region23: #{discriminator_forward.5} parent=5 // pred_region
        // Predicated region
        $region25: #{discriminator_forward.5} parent=23 // pred_check
          %p168 = pneg %p32
        $region26: #{discriminator_forward.5} parent=23 // pred_check_branch
          %170 = sbr.rel (%p168) target = $region28
        $region27: #{discriminator_forward.5} parent=23 // pred_region
          %p171 = scmp.lt.s32.totalorder %s12, 1
          %s172 = scalar_select %p171, %s12, 1
          %s173 = smul.addr %s172, 8
          %s174 = smul.addr %s173, 4
          %s175 = scalar_lea.vmem %s0, %s174
        $region28: #{discriminator_forward.5} parent=23 // pred_fallthru
          _
      $region24: #{discriminator_forward.5} parent=5 // pred_fallthru
        _
      %p176 = scmp.le.s32.totalorder 1, %s12
      %p177 = scmp.lt.s32.totalorder %s12, 3
      %p178 = pnand %p176, %p177
      %p179 = pneg %p178
      // Predicated region
      $region29: #{discriminator_forward.5} parent=5 // pred_check
        _
      $region30: #{discriminator_forward.5} parent=5 // pred_check_branch
        %181 = sbr.rel (%p178) target = $region32
      $region31: #{discriminator_forward.5} parent=5 // pred_region
        %s182 = ssub.s32 %s12, 1
        // Predicated region
        $region33: #{discriminator_forward.5} parent=31 // pred_check
          %p183 = pneg %p59
        $region34: #{discriminator_forward.5} parent=31 // pred_check_branch
          %185 = sbr.rel (%p183) target = $region36
        $region35: #{discriminator_forward.5} parent=31 // pred_region
          %187 = dma.done [#allocation3], 8192
        $region36: #{discriminator_forward.5} parent=31 // pred_fallthru
          _
        %p188 = scmp.lt.s32.totalorder %s17, 1
        %s189 = scalar_select %p188, %s17, 1
        %s190 = smul.addr %s189, 8
        %s191 = smul.addr %s190, 4
        %s192 = scalar_lea.vmem %s0, %s191
        %p193 = pneg %p38
        %p194 = pneg %p35
        %p195 = pneg %p59
        %p196 = pneg %p56
        %p197 = pneg %p80
        %p198 = pneg %p77
        %p199 = pneg %p106
        %p200 = pneg %p103
        %p201 = scmp.lt.s32.totalorder %s17, 1
        %s202 = scalar_select %p201, %s17, 1
        %s203 = smul.addr %s202, 3
        %s204 = smul.addr %s203, 4
        %s205 = scalar_lea.vmem %s3, %s204
        %p206 = pneg %p132
        %p207 = pneg %p129
        %p208 = scmp.lt.s32.totalorder %s17, 1
        %s209 = scalar_select %p208, %s17, 1
        %s210 = smul.addr %s209, 2
        %s211 = scalar_lea.vmem %s4, %s210
        %p212 = scmp.lt.s32.totalorder %s17, 1
        %s213 = scalar_select %p212, %s17, 1
        %s214 = smul.addr %s213, 8
        %s215 = smul.addr %s214, 4
        %s216 = scalar_lea.vmem %s0, %s215
        %p217 = scmp.lt.s32.totalorder %s17, 1
        %s218 = scalar_select %p217, %s17, 1
        %s219 = smul.addr %s218, 3
        %s220 = smul.addr %s219, 4
        %s221 = scalar_lea.vmem %s3, %s220
        %p222 = scmp.lt.s32.totalorder %s17, 1
        %s223 = scalar_select %p222, %s17, 1
        %s224 = smul.addr %s223, 2
        %s225 = scalar_lea.vmem %s4, %s224
        %v226 = vld [vmem:[%s216] sm:$0xff]
        %v227 = vld [vmem:[%s216 + $0x8] sm:$0xff]
        %v228 = vld [vmem:[%s216 + $0x10] sm:$0x33]
        %v229 = vld [vmem:[#allocation2] sm:$0xf]
        %v230 = vld [vmem:[#allocation2 + $0x4] sm:$0xf]
        %v231 = vld [vmem:[#allocation2 + $0x8] sm:$0xf]
        %v232 = vld [vmem:[#allocation2 + $0xc] sm:$0xf]
        %v233 = vld [vmem:[#allocation2 + $0x10] sm:$0xf]
        %v234 = vld [vmem:[#allocation2 + $0x14] sm:$0xf]
        %v235 = vld [vmem:[#allocation2 + $0x18] sm:$0xf]
        %v236 = vld [vmem:[#allocation2 + $0x1c] sm:$0xf]
        %v237 = vld [vmem:[#allocation2 + $0x20] sm:$0xf]
        %v238 = vld [vmem:[#allocation2 + $0x24] sm:$0xf]
        %v239 = vld [vmem:[#allocation2 + $0x28] sm:$0xf]
        %v240 = vld [vmem:[#allocation2 + $0x2c] sm:$0xf]
        %v241 = vld [vmem:[#allocation2 + $0x30] sm:$0xf]
        %v242 = vld [vmem:[#allocation2 + $0x34] sm:$0xf]
        %v243 = vld [vmem:[#allocation2 + $0x38] sm:$0xf]
        %v244 = vld [vmem:[#allocation2 + $0x3c] sm:$0xf]
        %v245 = vld [vmem:[#allocation2 + $0x40] sm:$0xf]
        %v246 = vld [vmem:[#allocation2 + $0x44] sm:$0xf]
        %v247 = vld [vmem:[#allocation2 + $0x48] sm:$0xf]
        %v248 = vld [vmem:[#allocation2 + $0x4c] sm:$0xf]
        %v249 = vld [vmem:[#allocation2 + $0x50] sm:$0xf]
        %v250 = vld [vmem:[#allocation2 + $0x54] sm:$0xf]
        %v251 = vld [vmem:[#allocation2 + $0x58] sm:$0xf]
        %v252 = vld [vmem:[#allocation2 + $0x5c] sm:$0xf]
        %v253 = vld [vmem:[#allocation2 + $0x60] sm:$0xf]
        %v254 = vld [vmem:[#allocation2 + $0x64] sm:$0xf]
        %v255 = vld [vmem:[#allocation2 + $0x68] sm:$0xf]
        %v256 = vld [vmem:[#allocation2 + $0x6c] sm:$0xf]
        %v257 = vld [vmem:[#allocation2 + $0x70] sm:$0xf]
        %v258 = vld [vmem:[#allocation2 + $0x74] sm:$0xf]
        %v259 = vld [vmem:[#allocation2 + $0x78] sm:$0xf]
        %v260 = vld [vmem:[#allocation2 + $0x7c] sm:$0xf]
        %v261 = vld [vmem:[%s216 + $0x10] sm:$0x77]
        %s262 = scalar_lea.vmem [#allocation2], 128
        %v263 = vld [vmem:[%s262] sm:$0xf]
        %v264 = vld [vmem:[%s262 + $0x4] sm:$0xf]
        %v265 = vld [vmem:[%s262 + $0x8] sm:$0xf]
        %v266 = vld [vmem:[%s262 + $0xc] sm:$0xf]
        %v267 = vld [vmem:[%s262 + $0x10] sm:$0xf]
        %v268 = vld [vmem:[%s262 + $0x14] sm:$0xf]
        %v269 = vld [vmem:[%s262 + $0x18] sm:$0xf]
        %v270 = vld [vmem:[%s262 + $0x1c] sm:$0xf]
        %v271 = vld [vmem:[%s262 + $0x20] sm:$0xf]
        %v272 = vld [vmem:[%s262 + $0x24] sm:$0xf]
        %v273 = vld [vmem:[%s262 + $0x28] sm:$0xf]
        %v274 = vld [vmem:[%s262 + $0x2c] sm:$0xf]
        %v275 = vld [vmem:[%s262 + $0x30] sm:$0xf]
        %v276 = vld [vmem:[%s262 + $0x34] sm:$0xf]
        %v277 = vld [vmem:[%s262 + $0x38] sm:$0xf]
        %v278 = vld [vmem:[%s262 + $0x3c] sm:$0xf]
        %v279 = vld [vmem:[%s262 + $0x40] sm:$0xf]
        %v280 = vld [vmem:[%s262 + $0x44] sm:$0xf]
        %v281 = vld [vmem:[%s262 + $0x48] sm:$0xf]
        %v282 = vld [vmem:[%s262 + $0x4c] sm:$0xf]
        %v283 = vld [vmem:[%s262 + $0x50] sm:$0xf]
        %v284 = vld [vmem:[%s262 + $0x54] sm:$0xf]
        %v285 = vld [vmem:[%s262 + $0x58] sm:$0xf]
        %v286 = vld [vmem:[%s262 + $0x5c] sm:$0xf]
        %v287 = vld [vmem:[%s262 + $0x60] sm:$0xf]
        %v288 = vld [vmem:[%s262 + $0x64] sm:$0xf]
        %v289 = vld [vmem:[%s262 + $0x68] sm:$0xf]
        %v290 = vld [vmem:[%s262 + $0x6c] sm:$0xf]
        %v291 = vld [vmem:[%s262 + $0x70] sm:$0xf]
        %v292 = vld [vmem:[%s262 + $0x74] sm:$0xf]
        %v293 = vld [vmem:[%s262 + $0x78] sm:$0xf]
        %v294 = vld [vmem:[%s262 + $0x7c] sm:$0xf]
        %v298 = vunpack.c.l.b16 %v226
        %v299 = vunpack.c.h.b16 %v226
        %v300 = vunpack.c.l.b16 %v227
        %v301 = vunpack.c.h.b16 %v227
        %v302 = vunpack.c.l.b16 %v261
        %v303 = vunpack.c.h.b16 %v261
        %v304 = vpack.c.b16 %v300, %v298
        %v305 = vpack.c.b16 %v301, %v299
        %v306 = vpack.c.b16 %v302, %v302
        %v307 = vpack.c.b16 %v303, %v303
        %vm308 = vsmask.f32 7424
        %v310 = vshrl.u32 %v304, 16
        %v312 = vshll.u32 %v304, 16
        %v314 = vrot.slane %v312, 1
        %v315 = vor.u32 %v310, %v314
        %v317 = vshll.u32 %v306, 16
        %v319 = vrot.slane %v317, 1
        %v320 = vsel %vm308, %v315, %v319
        %v322 = vshrl.u32 %v305, 16
        %v324 = vshll.u32 %v305, 16
        %v326 = vrot.slane %v324, 1
        %v327 = vor.u32 %v322, %v326
        %v329 = vshll.u32 %v307, 16
        %v331 = vrot.slane %v329, 1
        %v332 = vsel %vm308, %v327, %v331
        %v333 = vshrl.u32 %v306, 16
        %v335 = vor.u32 %v333, %v319
        %v336 = vshrl.u32 %v307, 16
        %v338 = vor.u32 %v336, %v331
        %v375 = vunpack.c.l.b16 %v263
        %v376 = vunpack.c.l.b16 %v264
        %v377 = vunpack.c.l.b16 %v265
        %v378 = vunpack.c.l.b16 %v266
        %v379 = vunpack.c.l.b16 %v267
        %v380 = vunpack.c.l.b16 %v268
        %v381 = vunpack.c.l.b16 %v269
        %v382 = vunpack.c.l.b16 %v270
        %v383 = vunpack.c.l.b16 %v271
        %v384 = vunpack.c.l.b16 %v272
        %v385 = vunpack.c.l.b16 %v273
        %v386 = vunpack.c.l.b16 %v274
        %v387 = vunpack.c.l.b16 %v275
        %v388 = vunpack.c.l.b16 %v276
        %v389 = vunpack.c.l.b16 %v277
        %v390 = vunpack.c.l.b16 %v278
        %v391 = vunpack.c.l.b16 %v279
        %v392 = vunpack.c.l.b16 %v280
        %v393 = vunpack.c.l.b16 %v281
        %v394 = vunpack.c.l.b16 %v282
        %v395 = vunpack.c.l.b16 %v283
        %v396 = vunpack.c.l.b16 %v284
        %v397 = vunpack.c.l.b16 %v285
        %v398 = vunpack.c.l.b16 %v286
        %v399 = vunpack.c.l.b16 %v287
        %v400 = vunpack.c.l.b16 %v288
        %v401 = vunpack.c.l.b16 %v289
        %v402 = vunpack.c.l.b16 %v290
        %v403 = vunpack.c.l.b16 %v291
        %v404 = vunpack.c.l.b16 %v292
        %v405 = vunpack.c.l.b16 %v293
        %v406 = vunpack.c.l.b16 %v294
        %v407 = vpack.c.b16 %v376, %v375
        %v408 = vpack.c.b16 %v378, %v377
        %v409 = vpack.c.b16 %v380, %v379
        %v410 = vpack.c.b16 %v382, %v381
        %v411 = vpack.c.b16 %v384, %v383
        %v412 = vpack.c.b16 %v386, %v385
        %v413 = vpack.c.b16 %v388, %v387
        %v414 = vpack.c.b16 %v390, %v389
        %v415 = vpack.c.b16 %v392, %v391
        %v416 = vpack.c.b16 %v394, %v393
        %v417 = vpack.c.b16 %v396, %v395
        %v418 = vpack.c.b16 %v398, %v397
        %v419 = vpack.c.b16 %v400, %v399
        %v420 = vpack.c.b16 %v402, %v401
        %v421 = vpack.c.b16 %v404, %v403
        %v422 = vpack.c.b16 %v406, %v405
        %439 = vmatpush.bf16.msra.mxu0 %v414
        %440 = vmatpush.bf16.msra.mxu0 %v413
        %441 = vmatpush.bf16.msra.mxu0 %v412
        %442 = vmatpush.bf16.msra.mxu0 %v411
        %443 = vmatpush.bf16.msra.mxu0 %v410
        %444 = vmatpush.bf16.msra.mxu0 %v409
        %445 = vmatpush.bf16.msra.mxu0 %v408
        %446 = vmatpush.bf16.msra.mxu0 %v407
        %447 = vmatmul.bf16.gmra.mxu0 %v320
        %v448 = vpop.f32.mrf.mxu0
        %v449 = vadd.f32 0.0, %v448
        %v450 = vpop.f32.mrf.mxu0
        %v451 = vadd.f32 0.0, %v450
        %452 = vmatmul.bf16.gmra.mxu0 %v335
        %v453 = vpop.f32.mrf.mxu0
        %v454 = vadd.f32 0.0, %v453
        %v455 = vpop.f32.mrf.mxu0
        %456 = vdwg.mxu0
        %457 = vmatpush.bf16.msra.mxu0 %v422
        %458 = vmatpush.bf16.msra.mxu0 %v421
        %459 = vmatpush.bf16.msra.mxu0 %v420
        %460 = vmatpush.bf16.msra.mxu0 %v419
        %461 = vmatpush.bf16.msra.mxu0 %v418
        %462 = vmatpush.bf16.msra.mxu0 %v417
        %463 = vmatpush.bf16.msra.mxu0 %v416
        %464 = vmatpush.bf16.msra.mxu0 %v415
        %465 = vmatmul.bf16.gmra.mxu0 %v332
        %v466 = vpop.f32.mrf.mxu0
        %v467 = vadd.f32 %v449, %v466
        %v468 = vpop.f32.mrf.mxu0
        %v469 = vadd.f32 %v451, %v468
        %470 = vmatmul.bf16.gmra.mxu0 %v338
        %v471 = vpop.f32.mrf.mxu0
        %v472 = vadd.f32 %v454, %v471
        %v473 = vpop.f32.mrf.mxu0
        %474 = vdwg.mxu0
        %v476 = vunpack.c.l.b16 %v228
        %v477 = vunpack.c.h.b16 %v228
        %v478 = vpack.c.b16 %v476, %v476
        %v479 = vpack.c.b16 %v477, %v477
        %v516 = vunpack.c.l.b16 %v229
        %v517 = vunpack.c.l.b16 %v230
        %v518 = vunpack.c.l.b16 %v231
        %v519 = vunpack.c.l.b16 %v232
        %v520 = vunpack.c.l.b16 %v233
        %v521 = vunpack.c.l.b16 %v234
        %v522 = vunpack.c.l.b16 %v235
        %v523 = vunpack.c.l.b16 %v236
        %v524 = vunpack.c.l.b16 %v237
        %v525 = vunpack.c.l.b16 %v238
        %v526 = vunpack.c.l.b16 %v239
        %v527 = vunpack.c.l.b16 %v240
        %v528 = vunpack.c.l.b16 %v241
        %v529 = vunpack.c.l.b16 %v242
        %v530 = vunpack.c.l.b16 %v243
        %v531 = vunpack.c.l.b16 %v244
        %v532 = vunpack.c.l.b16 %v245
        %v533 = vunpack.c.l.b16 %v246
        %v534 = vunpack.c.l.b16 %v247
        %v535 = vunpack.c.l.b16 %v248
        %v536 = vunpack.c.l.b16 %v249
        %v537 = vunpack.c.l.b16 %v250
        %v538 = vunpack.c.l.b16 %v251
        %v539 = vunpack.c.l.b16 %v252
        %v540 = vunpack.c.l.b16 %v253
        %v541 = vunpack.c.l.b16 %v254
        %v542 = vunpack.c.l.b16 %v255
        %v543 = vunpack.c.l.b16 %v256
        %v544 = vunpack.c.l.b16 %v257
        %v545 = vunpack.c.l.b16 %v258
        %v546 = vunpack.c.l.b16 %v259
        %v547 = vunpack.c.l.b16 %v260
        %v548 = vpack.c.b16 %v517, %v516
        %v549 = vpack.c.b16 %v519, %v518
        %v550 = vpack.c.b16 %v521, %v520
        %v551 = vpack.c.b16 %v523, %v522
        %v552 = vpack.c.b16 %v525, %v524
        %v553 = vpack.c.b16 %v527, %v526
        %v554 = vpack.c.b16 %v529, %v528
        %v555 = vpack.c.b16 %v531, %v530
        %v556 = vpack.c.b16 %v533, %v532
        %v557 = vpack.c.b16 %v535, %v534
        %v558 = vpack.c.b16 %v537, %v536
        %v559 = vpack.c.b16 %v539, %v538
        %v560 = vpack.c.b16 %v541, %v540
        %v561 = vpack.c.b16 %v543, %v542
        %v562 = vpack.c.b16 %v545, %v544
        %v563 = vpack.c.b16 %v547, %v546
        %580 = vmatpush.bf16.msra.mxu0 %v555
        %581 = vmatpush.bf16.msra.mxu0 %v554
        %582 = vmatpush.bf16.msra.mxu0 %v553
        %583 = vmatpush.bf16.msra.mxu0 %v552
        %584 = vmatpush.bf16.msra.mxu0 %v551
        %585 = vmatpush.bf16.msra.mxu0 %v550
        %586 = vmatpush.bf16.msra.mxu0 %v549
        %587 = vmatpush.bf16.msra.mxu0 %v548
        %588 = vmatmul.bf16.gmra.mxu0 %v304
        %v589 = vpop.f32.mrf.mxu0
        %v590 = vadd.f32 %v467, %v589
        %v591 = vpop.f32.mrf.mxu0
        %v592 = vadd.f32 %v469, %v591
        %593 = vmatmul.bf16.gmra.mxu0 %v478
        %v594 = vpop.f32.mrf.mxu0
        %v595 = vadd.f32 %v472, %v594
        %v596 = vpop.f32.mrf.mxu0
        %597 = vdwg.mxu0
        %598 = vmatpush.bf16.msra.mxu0 %v563
        %599 = vmatpush.bf16.msra.mxu0 %v562
        %600 = vmatpush.bf16.msra.mxu0 %v561
        %601 = vmatpush.bf16.msra.mxu0 %v560
        %602 = vmatpush.bf16.msra.mxu0 %v559
        %603 = vmatpush.bf16.msra.mxu0 %v558
        %604 = vmatpush.bf16.msra.mxu0 %v557
        %605 = vmatpush.bf16.msra.mxu0 %v556
        %606 = vmatmul.bf16.gmra.mxu0 %v305
        %v607 = vpop.f32.mrf.mxu0
        %v608 = vadd.f32 %v590, %v607
        %v609 = vpop.f32.mrf.mxu0
        %v610 = vadd.f32 %v592, %v609
        %611 = vmatmul.bf16.gmra.mxu0 %v479
        %v612 = vpop.f32.mrf.mxu0
        %v613 = vadd.f32 %v595, %v612
        %v614 = vpop.f32.mrf.mxu0
        %615 = vdwg.mxu0
        %v616 = vld [vmem:[%s216] sm:$0xcc]
        %v617 = vld [vmem:[%s216 + $0x8] sm:$0xff]
        %v618 = vld [vmem:[%s216 + $0x10] sm:$0xff]
        %v619 = vld [vmem:[%s216 + $0x18] sm:$0x11]
        %s620 = scalar_lea.vmem [#allocation2], 256
        %v621 = vld [vmem:[%s620] sm:$0xf]
        %v622 = vld [vmem:[%s620 + $0x4] sm:$0xf]
        %v623 = vld [vmem:[%s620 + $0x8] sm:$0xf]
        %v624 = vld [vmem:[%s620 + $0xc] sm:$0xf]
        %v625 = vld [vmem:[%s620 + $0x10] sm:$0xf]
        %v626 = vld [vmem:[%s620 + $0x14] sm:$0xf]
        %v627 = vld [vmem:[%s620 + $0x18] sm:$0xf]
        %v628 = vld [vmem:[%s620 + $0x1c] sm:$0xf]
        %v629 = vld [vmem:[%s620 + $0x20] sm:$0xf]
        %v630 = vld [vmem:[%s620 + $0x24] sm:$0xf]
        %v631 = vld [vmem:[%s620 + $0x28] sm:$0xf]
        %v632 = vld [vmem:[%s620 + $0x2c] sm:$0xf]
        %v633 = vld [vmem:[%s620 + $0x30] sm:$0xf]
        %v634 = vld [vmem:[%s620 + $0x34] sm:$0xf]
        %v635 = vld [vmem:[%s620 + $0x38] sm:$0xf]
        %v636 = vld [vmem:[%s620 + $0x3c] sm:$0xf]
        %v637 = vld [vmem:[%s620 + $0x40] sm:$0xf]
        %v638 = vld [vmem:[%s620 + $0x44] sm:$0xf]
        %v639 = vld [vmem:[%s620 + $0x48] sm:$0xf]
        %v640 = vld [vmem:[%s620 + $0x4c] sm:$0xf]
        %v641 = vld [vmem:[%s620 + $0x50] sm:$0xf]
        %v642 = vld [vmem:[%s620 + $0x54] sm:$0xf]
        %v643 = vld [vmem:[%s620 + $0x58] sm:$0xf]
        %v644 = vld [vmem:[%s620 + $0x5c] sm:$0xf]
        %v645 = vld [vmem:[%s620 + $0x60] sm:$0xf]
        %v646 = vld [vmem:[%s620 + $0x64] sm:$0xf]
        %v647 = vld [vmem:[%s620 + $0x68] sm:$0xf]
        %v648 = vld [vmem:[%s620 + $0x6c] sm:$0xf]
        %v649 = vld [vmem:[%s620 + $0x70] sm:$0xf]
        %v650 = vld [vmem:[%s620 + $0x74] sm:$0xf]
        %v651 = vld [vmem:[%s620 + $0x78] sm:$0xf]
        %v652 = vld [vmem:[%s620 + $0x7c] sm:$0xf]
        %v657 = vunpack.c.l.b16 %v616
        %v658 = vunpack.c.h.b16 %v616
        %v659 = vunpack.c.l.b16 %v617
        %v660 = vunpack.c.h.b16 %v617
        %v661 = vunpack.c.l.b16 %v618
        %v662 = vunpack.c.h.b16 %v618
        %v663 = vunpack.c.l.b16 %v619
        %v664 = vunpack.c.h.b16 %v619
        %v665 = vpack.c.b16 %v659, %v657
        %v666 = vpack.c.b16 %v660, %v658
        %v667 = vpack.c.b16 %v663, %v661
        %v668 = vpack.c.b16 %v664, %v662
        %vm669 = vsmask.f32 5376
        %v671 = vshrl.u32 %v665, 16
        %v673 = vrot.slane %v671, 2
        %v674 = vshll.u32 %v665, 16
        %v676 = vrot.slane %v674, 3
        %v677 = vor.u32 %v673, %v676
        %v679 = vshrl.u32 %v667, 16
        %v681 = vrot.slane %v679, 2
        %v682 = vshll.u32 %v667, 16
        %v684 = vrot.slane %v682, 3
        %v685 = vor.u32 %v681, %v684
        %v686 = vsel %vm669, %v677, %v685
        %v688 = vshrl.u32 %v666, 16
        %v690 = vrot.slane %v688, 2
        %v691 = vshll.u32 %v666, 16
        %v693 = vrot.slane %v691, 3
        %v694 = vor.u32 %v690, %v693
        %v696 = vshrl.u32 %v668, 16
        %v698 = vrot.slane %v696, 2
        %v699 = vshll.u32 %v668, 16
        %v701 = vrot.slane %v699, 3
        %v702 = vor.u32 %v698, %v701
        %v703 = vsel %vm669, %v694, %v702
        %v740 = vunpack.c.l.b16 %v621
        %v741 = vunpack.c.l.b16 %v622
        %v742 = vunpack.c.l.b16 %v623
        %v743 = vunpack.c.l.b16 %v624
        %v744 = vunpack.c.l.b16 %v625
        %v745 = vunpack.c.l.b16 %v626
        %v746 = vunpack.c.l.b16 %v627
        %v747 = vunpack.c.l.b16 %v628
        %v748 = vunpack.c.l.b16 %v629
        %v749 = vunpack.c.l.b16 %v630
        %v750 = vunpack.c.l.b16 %v631
        %v751 = vunpack.c.l.b16 %v632
        %v752 = vunpack.c.l.b16 %v633
        %v753 = vunpack.c.l.b16 %v634
        %v754 = vunpack.c.l.b16 %v635
        %v755 = vunpack.c.l.b16 %v636
        %v756 = vunpack.c.l.b16 %v637
        %v757 = vunpack.c.l.b16 %v638
        %v758 = vunpack.c.l.b16 %v639
        %v759 = vunpack.c.l.b16 %v640
        %v760 = vunpack.c.l.b16 %v641
        %v761 = vunpack.c.l.b16 %v642
        %v762 = vunpack.c.l.b16 %v643
        %v763 = vunpack.c.l.b16 %v644
        %v764 = vunpack.c.l.b16 %v645
        %v765 = vunpack.c.l.b16 %v646
        %v766 = vunpack.c.l.b16 %v647
        %v767 = vunpack.c.l.b16 %v648
        %v768 = vunpack.c.l.b16 %v649
        %v769 = vunpack.c.l.b16 %v650
        %v770 = vunpack.c.l.b16 %v651
        %v771 = vunpack.c.l.b16 %v652
        %v772 = vpack.c.b16 %v741, %v740
        %v773 = vpack.c.b16 %v743, %v742
        %v774 = vpack.c.b16 %v745, %v744
        %v775 = vpack.c.b16 %v747, %v746
        %v776 = vpack.c.b16 %v749, %v748
        %v777 = vpack.c.b16 %v751, %v750
        %v778 = vpack.c.b16 %v753, %v752
        %v779 = vpack.c.b16 %v755, %v754
        %v780 = vpack.c.b16 %v757, %v756
        %v781 = vpack.c.b16 %v759, %v758
        %v782 = vpack.c.b16 %v761, %v760
        %v783 = vpack.c.b16 %v763, %v762
        %v784 = vpack.c.b16 %v765, %v764
        %v785 = vpack.c.b16 %v767, %v766
        %v786 = vpack.c.b16 %v769, %v768
        %v787 = vpack.c.b16 %v771, %v770
        %804 = vmatpush.bf16.msra.mxu0 %v779
        %805 = vmatpush.bf16.msra.mxu0 %v778
        %806 = vmatpush.bf16.msra.mxu0 %v777
        %807 = vmatpush.bf16.msra.mxu0 %v776
        %808 = vmatpush.bf16.msra.mxu0 %v775
        %809 = vmatpush.bf16.msra.mxu0 %v774
        %810 = vmatpush.bf16.msra.mxu0 %v773
        %811 = vmatpush.bf16.msra.mxu0 %v772
        %812 = vmatmul.bf16.gmra.mxu0 %v686
        %v813 = vpop.f32.mrf.mxu0
        %v814 = vadd.f32 0.0, %v813
        %v815 = vpop.f32.mrf.mxu0
        %v816 = vadd.f32 0.0, %v815
        %817 = vmatmul.bf16.gmra.mxu0 %v685
        %v818 = vpop.f32.mrf.mxu0
        %v819 = vadd.f32 0.0, %v818
        %v820 = vpop.f32.mrf.mxu0
        %821 = vdwg.mxu0
        %822 = vmatpush.bf16.msra.mxu0 %v787
        %823 = vmatpush.bf16.msra.mxu0 %v786
        %824 = vmatpush.bf16.msra.mxu0 %v785
        %825 = vmatpush.bf16.msra.mxu0 %v784
        %826 = vmatpush.bf16.msra.mxu0 %v783
        %827 = vmatpush.bf16.msra.mxu0 %v782
        %828 = vmatpush.bf16.msra.mxu0 %v781
        %829 = vmatpush.bf16.msra.mxu0 %v780
        %830 = vmatmul.bf16.gmra.mxu0 %v703
        %v831 = vpop.f32.mrf.mxu0
        %v832 = vadd.f32 %v814, %v831
        %v833 = vpop.f32.mrf.mxu0
        %v834 = vadd.f32 %v816, %v833
        %835 = vmatmul.bf16.gmra.mxu0 %v702
        %v836 = vpop.f32.mrf.mxu0
        %v837 = vadd.f32 %v819, %v836
        %v838 = vpop.f32.mrf.mxu0
        %839 = vdwg.mxu0
        %v840 = vadd.f32 %v608, %v832
        %v841 = vadd.f32 %v610, %v834
        %v842 = vadd.f32 %v613, %v837
        %v843 = vld [vmem:[%s216] sm:$0x88]
        %s844 = scalar_lea.vmem [#allocation2], 384
        %v845 = vld [vmem:[%s844] sm:$0xf]
        %v846 = vld [vmem:[%s844 + $0x4] sm:$0xf]
        %v847 = vld [vmem:[%s844 + $0x8] sm:$0xf]
        %v848 = vld [vmem:[%s844 + $0xc] sm:$0xf]
        %v849 = vld [vmem:[%s844 + $0x10] sm:$0xf]
        %v850 = vld [vmem:[%s844 + $0x14] sm:$0xf]
        %v851 = vld [vmem:[%s844 + $0x18] sm:$0xf]
        %v852 = vld [vmem:[%s844 + $0x1c] sm:$0xf]
        %v853 = vld [vmem:[%s844 + $0x20] sm:$0xf]
        %v854 = vld [vmem:[%s844 + $0x24] sm:$0xf]
        %v855 = vld [vmem:[%s844 + $0x28] sm:$0xf]
        %v856 = vld [vmem:[%s844 + $0x2c] sm:$0xf]
        %v857 = vld [vmem:[%s844 + $0x30] sm:$0xf]
        %v858 = vld [vmem:[%s844 + $0x34] sm:$0xf]
        %v859 = vld [vmem:[%s844 + $0x38] sm:$0xf]
        %v860 = vld [vmem:[%s844 + $0x3c] sm:$0xf]
        %v861 = vld [vmem:[%s844 + $0x40] sm:$0xf]
        %v862 = vld [vmem:[%s844 + $0x44] sm:$0xf]
        %v863 = vld [vmem:[%s844 + $0x48] sm:$0xf]
        %v864 = vld [vmem:[%s844 + $0x4c] sm:$0xf]
        %v865 = vld [vmem:[%s844 + $0x50] sm:$0xf]
        %v866 = vld [vmem:[%s844 + $0x54] sm:$0xf]
        %v867 = vld [vmem:[%s844 + $0x58] sm:$0xf]
        %v868 = vld [vmem:[%s844 + $0x5c] sm:$0xf]
        %v869 = vld [vmem:[%s844 + $0x60] sm:$0xf]
        %v870 = vld [vmem:[%s844 + $0x64] sm:$0xf]
        %v871 = vld [vmem:[%s844 + $0x68] sm:$0xf]
        %v872 = vld [vmem:[%s844 + $0x6c] sm:$0xf]
        %v873 = vld [vmem:[%s844 + $0x70] sm:$0xf]
        %v874 = vld [vmem:[%s844 + $0x74] sm:$0xf]
        %v875 = vld [vmem:[%s844 + $0x78] sm:$0xf]
        %v876 = vld [vmem:[%s844 + $0x7c] sm:$0xf]
        %v878 = vunpack.c.l.b16 %v843
        %v879 = vunpack.c.h.b16 %v843
        %v880 = vpack.c.b16 %v659, %v878
        %v881 = vpack.c.b16 %v660, %v879
        %vm882 = vcmask 1044480
        %v883 = vrot.slane %v880, 3
        %v884 = vrot.slane %v667, 3
        %v885 = vsel %vm882, %v883, %v884
        %v886 = vrot.slane %v881, 3
        %v887 = vrot.slane %v668, 3
        %v888 = vsel %vm882, %v886, %v887
        %v925 = vunpack.c.l.b16 %v845
        %v926 = vunpack.c.l.b16 %v846
        %v927 = vunpack.c.l.b16 %v847
        %v928 = vunpack.c.l.b16 %v848
        %v929 = vunpack.c.l.b16 %v849
        %v930 = vunpack.c.l.b16 %v850
        %v931 = vunpack.c.l.b16 %v851
        %v932 = vunpack.c.l.b16 %v852
        %v933 = vunpack.c.l.b16 %v853
        %v934 = vunpack.c.l.b16 %v854
        %v935 = vunpack.c.l.b16 %v855
        %v936 = vunpack.c.l.b16 %v856
        %v937 = vunpack.c.l.b16 %v857
        %v938 = vunpack.c.l.b16 %v858
        %v939 = vunpack.c.l.b16 %v859
        %v940 = vunpack.c.l.b16 %v860
        %v941 = vunpack.c.l.b16 %v861
        %v942 = vunpack.c.l.b16 %v862
        %v943 = vunpack.c.l.b16 %v863
        %v944 = vunpack.c.l.b16 %v864
        %v945 = vunpack.c.l.b16 %v865
        %v946 = vunpack.c.l.b16 %v866
        %v947 = vunpack.c.l.b16 %v867
        %v948 = vunpack.c.l.b16 %v868
        %v949 = vunpack.c.l.b16 %v869
        %v950 = vunpack.c.l.b16 %v870
        %v951 = vunpack.c.l.b16 %v871
        %v952 = vunpack.c.l.b16 %v872
        %v953 = vunpack.c.l.b16 %v873
        %v954 = vunpack.c.l.b16 %v874
        %v955 = vunpack.c.l.b16 %v875
        %v956 = vunpack.c.l.b16 %v876
        %v957 = vpack.c.b16 %v926, %v925
        %v958 = vpack.c.b16 %v928, %v927
        %v959 = vpack.c.b16 %v930, %v929
        %v960 = vpack.c.b16 %v932, %v931
        %v961 = vpack.c.b16 %v934, %v933
        %v962 = vpack.c.b16 %v936, %v935
        %v963 = vpack.c.b16 %v938, %v937
        %v964 = vpack.c.b16 %v940, %v939
        %v965 = vpack.c.b16 %v942, %v941
        %v966 = vpack.c.b16 %v944, %v943
        %v967 = vpack.c.b16 %v946, %v945
        %v968 = vpack.c.b16 %v948, %v947
        %v969 = vpack.c.b16 %v950, %v949
        %v970 = vpack.c.b16 %v952, %v951
        %v971 = vpack.c.b16 %v954, %v953
        %v972 = vpack.c.b16 %v956, %v955
        %989 = vmatpush.bf16.msra.mxu0 %v964
        %990 = vmatpush.bf16.msra.mxu0 %v963
        %991 = vmatpush.bf16.msra.mxu0 %v962
        %992 = vmatpush.bf16.msra.mxu0 %v961
        %993 = vmatpush.bf16.msra.mxu0 %v960
        %994 = vmatpush.bf16.msra.mxu0 %v959
        %995 = vmatpush.bf16.msra.mxu0 %v958
        %996 = vmatpush.bf16.msra.mxu0 %v957
        %997 = vmatmul.bf16.gmra.mxu0 %v885
        %v998 = vpop.f32.mrf.mxu0
        %v999 = vadd.f32 0.0, %v998
        %v1000 = vpop.f32.mrf.mxu0
        %v1001 = vadd.f32 0.0, %v1000
        %1002 = vmatmul.bf16.gmra.mxu0 %v884
        %v1003 = vpop.f32.mrf.mxu0
        %v1004 = vadd.f32 0.0, %v1003
        %v1005 = vpop.f32.mrf.mxu0
        %1006 = vdwg.mxu0
        %1007 = vmatpush.bf16.msra.mxu0 %v972
        %1008 = vmatpush.bf16.msra.mxu0 %v971
        %1009 = vmatpush.bf16.msra.mxu0 %v970
        %1010 = vmatpush.bf16.msra.mxu0 %v969
        %1011 = vmatpush.bf16.msra.mxu0 %v968
        %1012 = vmatpush.bf16.msra.mxu0 %v967
        %1013 = vmatpush.bf16.msra.mxu0 %v966
        %1014 = vmatpush.bf16.msra.mxu0 %v965
        %1015 = vmatmul.bf16.gmra.mxu0 %v888
        %v1016 = vpop.f32.mrf.mxu0
        %v1017 = vadd.f32 %v999, %v1016
        %v1018 = vpop.f32.mrf.mxu0
        %v1019 = vadd.f32 %v1001, %v1018
        %1020 = vmatmul.bf16.gmra.mxu0 %v887
        %v1021 = vpop.f32.mrf.mxu0
        %v1022 = vadd.f32 %v1004, %v1021
        %v1023 = vpop.f32.mrf.mxu0
        %1024 = vdwg.mxu0
        %v1025 = vadd.f32 %v840, %v1017
        %v1026 = vadd.f32 %v841, %v1019
        %v1027 = vadd.f32 %v842, %v1022
        %v1028 = vld [vmem:[%s2] sm:$0x1]
        %v1030 = vperm.slane %v1028, 0
        %v1032 = vadd.f32 %v1025, %v1030
        %v1033 = vadd.f32 %v1026, %v1030
        %v1034 = vadd.f32 %v1027, %v1030
        %v1035 = vlaneseq
        %v1036 = vshrl.u32 %v1035, 7
        %v1037 = vadd.s32 %v1036, 8
        %v1038 = vadd.s32 %v1036, 16
        %vm1039 = vcmp.lt.s32.totalorder %v1036, 0
        %v1040 = vsub.s32 0, %v1036
        %v1041 = vsel %vm1039, %v1040, %v1036
        %v1042 = vand.u32 %v1041, 65535
        %v1043 = vshrl.u32 %v1041, 16
        %v1045 = vmul.u32 %v1042, 52429
        %v1046 = vmul.u32 %v1042, 52428
        %v1047 = vmul.u32 %v1043, 52429
        %v1048 = vmul.u32 %v1043, 52428
        %v1049 = vshll.u32 %v1046, 16
        %v1050 = vshrl.u32 %v1046, 16
        %v1051 = vshll.u32 %v1047, 16
        %v1052 = vshrl.u32 %v1047, 16
        %vm1053 = vc.u32 %v1045, %v1049
        %v1054 = vsel %vm1053, 1, 0
        %v1055 = vadd.s32 %v1045, %v1049
        %v1056 = vadd.s32 %v1048, %v1054
        %vm1057 = vc.u32 %v1055, %v1051
        %v1058 = vsel %vm1057, 1, 0
        %v1059 = vadd.s32 %v1055, %v1051
        %v1060 = vadd.s32 %v1056, %v1058
        %v1061 = vadd.s32 %v1060, %v1050
        %v1062 = vadd.s32 %v1061, %v1052
        %v1063 = vshrl.u32 %v1062, 2
        %v1064 = vmul.u32 %v1063, 5
        %v1065 = vsub.s32 %v1041, %v1064
        %v1066 = vsub.s32 0, %v1065
        %v1067 = vsel %vm1039, %v1066, %v1065
        %vm1068 = vcmp.lt.s32.totalorder %v1037, 0
        %v1069 = vsub.s32 0, %v1037
        %v1070 = vsel %vm1068, %v1069, %v1037
        %v1071 = vand.u32 %v1070, 65535
        %v1072 = vshrl.u32 %v1070, 16
        %v1074 = vmul.u32 %v1071, 52429
        %v1075 = vmul.u32 %v1071, 52428
        %v1076 = vmul.u32 %v1072, 52429
        %v1077 = vmul.u32 %v1072, 52428
        %v1078 = vshll.u32 %v1075, 16
        %v1079 = vshrl.u32 %v1075, 16
        %v1080 = vshll.u32 %v1076, 16
        %v1081 = vshrl.u32 %v1076, 16
        %vm1082 = vc.u32 %v1074, %v1078
        %v1083 = vsel %vm1082, 1, 0
        %v1084 = vadd.s32 %v1074, %v1078
        %v1085 = vadd.s32 %v1077, %v1083
        %vm1086 = vc.u32 %v1084, %v1080
        %v1087 = vsel %vm1086, 1, 0
        %v1088 = vadd.s32 %v1084, %v1080
        %v1089 = vadd.s32 %v1085, %v1087
        %v1090 = vadd.s32 %v1089, %v1079
        %v1091 = vadd.s32 %v1090, %v1081
        %v1092 = vshrl.u32 %v1091, 2
        %v1093 = vmul.u32 %v1092, 5
        %v1094 = vsub.s32 %v1070, %v1093
        %v1095 = vsub.s32 0, %v1094
        %v1096 = vsel %vm1068, %v1095, %v1094
        %vm1097 = vcmp.lt.s32.totalorder %v1038, 0
        %v1098 = vsub.s32 0, %v1038
        %v1099 = vsel %vm1097, %v1098, %v1038
        %v1100 = vand.u32 %v1099, 65535
        %v1101 = vshrl.u32 %v1099, 16
        %v1103 = vmul.u32 %v1100, 52429
        %v1104 = vmul.u32 %v1100, 52428
        %v1105 = vmul.u32 %v1101, 52429
        %v1106 = vmul.u32 %v1101, 52428
        %v1107 = vshll.u32 %v1104, 16
        %v1108 = vshrl.u32 %v1104, 16
        %v1109 = vshll.u32 %v1105, 16
        %v1110 = vshrl.u32 %v1105, 16
        %vm1111 = vc.u32 %v1103, %v1107
        %v1112 = vsel %vm1111, 1, 0
        %v1113 = vadd.s32 %v1103, %v1107
        %v1114 = vadd.s32 %v1106, %v1112
        %vm1115 = vc.u32 %v1113, %v1109
        %v1116 = vsel %vm1115, 1, 0
        %v1117 = vadd.s32 %v1113, %v1109
        %v1118 = vadd.s32 %v1114, %v1116
        %v1119 = vadd.s32 %v1118, %v1108
        %v1120 = vadd.s32 %v1119, %v1110
        %v1121 = vshrl.u32 %v1120, 2
        %v1122 = vmul.u32 %v1121, 5
        %v1123 = vsub.s32 %v1099, %v1122
        %v1124 = vsub.s32 0, %v1123
        %v1125 = vsel %vm1097, %v1124, %v1123
        %vm1126 = vcmp.ne.s32.totalorder %v1067, 0
        %vm1127 = vcmp.ne.s32.totalorder %v1096, 0
        %vm1128 = vcmp.ne.s32.totalorder %v1125, 0
        %vm1129 = vcmp.lt.s32.totalorder %v1067, 0
        %vm1130 = vcmp.lt.s32.totalorder %v1096, 0
        %vm1131 = vcmp.lt.s32.totalorder %v1125, 0
        %vm1132 = vmand %vm1129, %vm1126
        %vm1133 = vmand %vm1130, %vm1127
        %vm1134 = vmand %vm1131, %vm1128
        %v1135 = vadd.s32 %v1067, 5
        %v1136 = vadd.s32 %v1096, 5
        %v1137 = vadd.s32 %v1125, 5
        %v1138 = vsel %vm1132, %v1135, %v1067
        %v1139 = vsel %vm1133, %v1136, %v1096
        %v1140 = vsel %vm1134, %v1137, %v1125
        %vm1141 = vcmp.ne.s32.totalorder %v1138, 4
        %vm1142 = vcmp.ne.s32.totalorder %v1139, 4
        %vm1143 = vcmp.ne.s32.totalorder %v1140, 4
        %v1144 = vsel %vm1141, 1, 0
        %v1145 = vsel %vm1142, 1, 0
        %v1146 = vsel %vm1143, 1, 0
        %vm1147 = vcmp.eq.s32.totalorder %v1144, 1
        %vm1148 = vcmp.eq.s32.totalorder %v1145, 1
        %vm1149 = vcmp.eq.s32.totalorder %v1146, 1
        %v1150 = vsel %vm1147, %v1032, 0.0
        %v1151 = vsel %vm1148, %v1033, 0.0
        %v1152 = vsel %vm1149, %v1034, 0.0
        %v1153 = vadd.f32 %v1150, %v1151
        %vm1154 = vcmask 1043456
        %v1155 = vsel %vm1154, %v1152, 0.0
        %v1156 = vadd.f32 %v1153, %v1155
        %v1157 = vrot.slane %v1156, 4
        %v1158 = vadd.f32 %v1156, %v1157
        %v1159 = vrot.slane %v1158, 2
        %v1160 = vadd.f32 %v1158, %v1159
        %v1161 = vrot.slane %v1160, 1
        %v1162 = vadd.f32 %v1160, %v1161
        %1163 = vst [vmem:[%s225] sm:$0x1] %v1162
        %v1164 = vmul.f32 %v1150, %v1150
        %v1165 = vmul.f32 %v1151, %v1151
        %v1166 = vmul.f32 %v1152, %v1152
        %v1167 = vadd.f32 %v1164, %v1165
        %v1168 = vsel %vm1154, %v1166, 0.0
        %v1169 = vadd.f32 %v1167, %v1168
        %v1170 = vrot.slane %v1169, 4
        %v1171 = vadd.f32 %v1169, %v1170
        %v1172 = vrot.slane %v1171, 2
        %v1173 = vadd.f32 %v1171, %v1172
        %v1174 = vrot.slane %v1173, 1
        %v1175 = vadd.f32 %v1173, %v1174
        %1176 = vst [vmem:[%s225 + $0x1] sm:$0x1] %v1175
        %v1177 = vpack.c.bf16 %v1032, %v1032
        %v1178 = vpack.c.bf16 %v1033, %v1033
        %v1179 = vpack.c.bf16 %v1034, %v1034
        %1180 = vst [vmem:[%s221] sm:$0xf] %v1177
        %1181 = vst [vmem:[%s221 + $0x4] sm:$0xf] %v1178
        %1182 = vst [vmem:[%s221 + $0x8] sm:$0x3] %v1179
        %p1183 = scmp.lt.s32.totalorder %s17, 1
        %s1184 = scalar_select %p1183, %s17, 1
        %s1185 = smul.addr %s1184, 3
        %s1186 = smul.addr %s1185, 4
        %s1187 = scalar_lea.vmem %s3, %s1186
        %p1188 = scmp.lt.s32.totalorder %s17, 1
        %s1189 = scalar_select %p1188, %s17, 1
        %s1190 = smul.addr %s1189, 2
        %s1191 = scalar_lea.vmem %s4, %s1190
        // Predicated region
        $region37: #{discriminator_forward.5} parent=31 // pred_check
          %p1192 = pneg %p103
        $region38: #{discriminator_forward.5} parent=31 // pred_check_branch
          %1194 = sbr.rel (%p1192) target = $region40
        $region39: #{discriminator_forward.5} parent=31 // pred_region
          _
        $region40: #{discriminator_forward.5} parent=31 // pred_fallthru
          _
        // Predicated region
        $region41: #{discriminator_forward.5} parent=31 // pred_check
          %p1195 = pneg %p129
        $region42: #{discriminator_forward.5} parent=31 // pred_check_branch
          %1197 = sbr.rel (%p1195) target = $region44
        $region43: #{discriminator_forward.5} parent=31 // pred_region
          _
        $region44: #{discriminator_forward.5} parent=31 // pred_fallthru
          _
      $region32: #{discriminator_forward.5} parent=5 // pred_fallthru
        _
      %p1198 = scmp.le.s32.totalorder 2, %s12
      // Predicated region
      $region45: #{discriminator_forward.5} parent=5 // pred_check
        %p1199 = pneg %p1198
      $region46: #{discriminator_forward.5} parent=5 // pred_check_branch
        %1201 = sbr.rel (%p1199) target = $region48
      $region47: #{discriminator_forward.5} parent=5 // pred_region
        %s1202 = ssub.s32 %s12, 2
        // Predicated region
        $region49: #{discriminator_forward.5} parent=47 // pred_check
          %p1203 = pneg %p109
        $region50: #{discriminator_forward.5} parent=47 // pred_check_branch
          %1205 = sbr.rel (%p1203) target = $region52
        $region51: #{discriminator_forward.5} parent=47 // pred_region
          %p1206 = scmp.lt.s32.totalorder %s18, 1
          %s1207 = scalar_select %p1206, %s18, 1
          %s1208 = smul.addr %s1207, 3
          %s1209 = smul.addr %s1208, 4
          %s1210 = scalar_lea.vmem %s3, %s1209
        $region52: #{discriminator_forward.5} parent=47 // pred_fallthru
          _
        // Predicated region
        $region53: #{discriminator_forward.5} parent=47 // pred_check
          %p1211 = pneg %p135
        $region54: #{discriminator_forward.5} parent=47 // pred_check_branch
          %1213 = sbr.rel (%p1211) target = $region56
        $region55: #{discriminator_forward.5} parent=47 // pred_region
          %p1214 = scmp.lt.s32.totalorder %s18, 1
          %s1215 = scalar_select %p1214, %s18, 1
          %s1216 = smul.addr %s1215, 2
          %s1217 = scalar_lea.vmem %s4, %s1216
        $region56: #{discriminator_forward.5} parent=47 // pred_fallthru
          _
      $region48: #{discriminator_forward.5} parent=5 // pred_fallthru
        _
    $region6: #{discriminator_forward.5} parent=1 // loop_footer
      %s16 = sadd.s32 1, %s12
    $region7: #{discriminator_forward.5} parent=1 // loop_footer_branch
      %11 = sbr.rel target = $region3
    $region8: #{discriminator_forward.5} parent=1 // loop_exit
      _
    %1218 = vsyncpa [#allocation3], 1
    %s1219 = scalar_lea.sflag [#allocation3], 1
    %1220 = vsyncpa %s1219, 1

// kernel: discriminator_forward.6
$region0: #{discriminator_forward.6}
  #allocation0 [shape = 'u32[]', space=smem, size = 0x4, offset = 0x4, fixed_abs, tag = 'smem constant byte address 0x4 - core index']
  #allocation1 [shape = 'u32[72,128]{1,0:T(1,128)}', space=vmem, size = 0x9000, scoped, tag = 'internal scratch']
  %s0 = inlined_call_operand.vmem [shape: bf16[2,16,512], index: 0, kind: input, shape index: {}]
  %s1 = inlined_call_operand.vmem [shape: bf16[4,512,256], index: 1, kind: input, shape index: {}]
  %s2 = inlined_call_operand.vmem [shape: f32[1,256], index: 2, kind: input, shape index: {}]
  %s3 = inlined_call_operand.vmem [shape: bf16[2,6,256], index: 3, kind: output, shape index: {0}]
  %s4 = inlined_call_operand.vmem [shape: f32[2,2,256], index: 4, kind: output, shape index: {1}]
  %5 = xla_tuple %s3, %s4
  %s6 = sld [smem:[#allocation0]]
  $region53: #{discriminator_forward.6} parent=0
    _
  %s8 = ssub.s32 1, %s6
  %s9 = scalar_select 0, %s8, %s6
  loop: start=0, step=1, limit=4
  $region2: #{discriminator_forward.6} parent=0 // loop_pre_header
    _
  $region3: #{discriminator_forward.6} parent=0 // loop_header
    %s11 = sphi 0, %s15
    %p12 = scmp.ge.s32.totalorder %s11, 4
    %s21 = sphi 0, %s23
    %s24 = sphi 0, %s21
    %s25 = sphi 0, %s24
    %s41 = sphi 0, %s25
    %s45 = sphi 0, %s45
    %s47 = sphi 0, %s45
    %s48 = sphi 0, %s47
    %s62 = sphi 0, %s48
    %s66 = sphi 0, %s66
    %s68 = sphi 0, %s66
    %s69 = sphi 0, %s68
    %s83 = sphi 0, %s69
    %s89 = sphi 0, %s91
    %s92 = sphi 0, %s89
    %s93 = sphi 0, %s92
    %s109 = sphi 0, %s93
    %s115 = sphi 0, %s117
    %s118 = sphi 0, %s115
    %s119 = sphi 0, %s118
    %s135 = sphi 0, %s119
  $region4: #{discriminator_forward.6} parent=0 // loop_header_branch
    %14 = sbr.rel (%p12) target = $region8
  $region5: #{discriminator_forward.6} parent=0 // loop_body
    %s16 = ssub.s32 %s11, 1
    %s17 = ssub.s32 %s11, 2
    %s18 = sadd.s32 %s11, 1
    %s19 = ssub.s32 %s11, %s18
    %p20 = scmp.eq.s32.totalorder %s19, 0
    %s22 = sadd.s32 %s21, 1
    %s23 = scalar_select %p20, %s21, %s22
    %p26 = pneg %p20
    %p27 = scmp.eq.s32.totalorder %s11, 1
    %p28 = por %p26, %p27
    %p29 = scmp.ne.s32.totalorder %s21, %s24
    %p30 = scmp.eq.s32.totalorder %s11, 0
    %p31 = por %p29, %p30
    %p32 = scmp.ne.s32.totalorder %s21, %s24
    %p33 = scmp.eq.s32.totalorder %s16, 1
    %p34 = por %p32, %p33
    %p35 = scmp.ne.s32.totalorder %s24, %s25
    %p36 = scmp.eq.s32.totalorder %s16, 0
    %p37 = por %p35, %p36
    %p38 = scmp.ne.s32.totalorder %s24, %s25
    %p39 = scmp.eq.s32.totalorder %s17, 1
    %p40 = por %p38, %p39
    %p42 = scmp.ne.s32.totalorder %s25, %s41
    %p43 = scmp.eq.s32.totalorder %s17, 0
    %p44 = por %p42, %p43
    %s46 = sadd.s32 %s45, 1
    %p49 = scmp.eq.s32.totalorder %s11, 1
    %p50 = scmp.ne.s32.totalorder %s45, %s47
    %p51 = scmp.eq.s32.totalorder %s11, 0
    %p52 = por %p50, %p51
    %p53 = scmp.ne.s32.totalorder %s45, %s47
    %p54 = scmp.eq.s32.totalorder %s16, 1
    %p55 = por %p53, %p54
    %p56 = scmp.ne.s32.totalorder %s47, %s48
    %p57 = scmp.eq.s32.totalorder %s16, 0
    %p58 = por %p56, %p57
    %p59 = scmp.ne.s32.totalorder %s47, %s48
    %p60 = scmp.eq.s32.totalorder %s17, 1
    %p61 = por %p59, %p60
    %p63 = scmp.ne.s32.totalorder %s48, %s62
    %p64 = scmp.eq.s32.totalorder %s17, 0
    %p65 = por %p63, %p64
    %s67 = sadd.s32 %s66, 1
    %p70 = scmp.eq.s32.totalorder %s11, 1
    %p71 = scmp.ne.s32.totalorder %s66, %s68
    %p72 = scmp.eq.s32.totalorder %s11, 0
    %p73 = por %p71, %p72
    %p74 = scmp.ne.s32.totalorder %s66, %s68
    %p75 = scmp.eq.s32.totalorder %s16, 1
    %p76 = por %p74, %p75
    %p77 = scmp.ne.s32.totalorder %s68, %s69
    %p78 = scmp.eq.s32.totalorder %s16, 0
    %p79 = por %p77, %p78
    %p80 = scmp.ne.s32.totalorder %s68, %s69
    %p81 = scmp.eq.s32.totalorder %s17, 1
    %p82 = por %p80, %p81
    %p84 = scmp.ne.s32.totalorder %s69, %s83
    %p85 = scmp.eq.s32.totalorder %s17, 0
    %p86 = por %p84, %p85
    %s87 = ssub.s32 %s11, %s18
    %p88 = scmp.eq.s32.totalorder %s87, 0
    %s90 = sadd.s32 %s89, 1
    %s91 = scalar_select %p88, %s89, %s90
    %p94 = pneg %p88
    %p95 = scmp.eq.s32.totalorder %s11, 1
    %p96 = por %p94, %p95
    %p97 = scmp.ne.s32.totalorder %s89, %s92
    %p98 = scmp.eq.s32.totalorder %s11, 0
    %p99 = por %p97, %p98
    %p100 = scmp.ne.s32.totalorder %s89, %s92
    %p101 = scmp.eq.s32.totalorder %s16, 1
    %p102 = por %p100, %p101
    %p103 = scmp.ne.s32.totalorder %s92, %s93
    %p104 = scmp.eq.s32.totalorder %s16, 0
    %p105 = por %p103, %p104
    %p106 = scmp.ne.s32.totalorder %s92, %s93
    %p107 = scmp.eq.s32.totalorder %s17, 1
    %p108 = por %p106, %p107
    %p110 = scmp.ne.s32.totalorder %s93, %s109
    %p111 = scmp.eq.s32.totalorder %s17, 0
    %p112 = por %p110, %p111
    %s113 = ssub.s32 %s11, %s18
    %p114 = scmp.eq.s32.totalorder %s113, 0
    %s116 = sadd.s32 %s115, 1
    %s117 = scalar_select %p114, %s115, %s116
    %p120 = pneg %p114
    %p121 = scmp.eq.s32.totalorder %s11, 1
    %p122 = por %p120, %p121
    %p123 = scmp.ne.s32.totalorder %s115, %s118
    %p124 = scmp.eq.s32.totalorder %s11, 0
    %p125 = por %p123, %p124
    %p126 = scmp.ne.s32.totalorder %s115, %s118
    %p127 = scmp.eq.s32.totalorder %s16, 1
    %p128 = por %p126, %p127
    %p129 = scmp.ne.s32.totalorder %s118, %s119
    %p130 = scmp.eq.s32.totalorder %s16, 0
    %p131 = por %p129, %p130
    %p132 = scmp.ne.s32.totalorder %s118, %s119
    %p133 = scmp.eq.s32.totalorder %s17, 1
    %p134 = por %p132, %p133
    %p136 = scmp.ne.s32.totalorder %s119, %s135
    %p137 = scmp.eq.s32.totalorder %s17, 0
    %p138 = por %p136, %p137
    %p139 = scmp.le.s32.totalorder 1, %s11
    %p140 = scmp.lt.s32.totalorder %s11, 3
    %p141 = pnand %p139, %p140
    %p142 = pneg %p141
    // Predicated region
    $region9: #{discriminator_forward.6} parent=5 // pred_check
      _
    $region10: #{discriminator_forward.6} parent=5 // pred_check_branch
      %144 = sbr.rel (%p141) target = $region12
    $region11: #{discriminator_forward.6} parent=5 // pred_region
      %s145 = ssub.s32 %s11, 1
      // Predicated region
      $region13: #{discriminator_forward.6} parent=11 // pred_check
        %p146 = pneg %p58
      $region14: #{discriminator_forward.6} parent=11 // pred_check_branch
        %148 = sbr.rel (%p146) target = $region16
      $region15: #{discriminator_forward.6} parent=11 // pred_region
        _
      $region16: #{discriminator_forward.6} parent=11 // pred_fallthru
        _
      // Predicated region
      $region17: #{discriminator_forward.6} parent=11 // pred_check
        %p149 = pneg %p79
      $region18: #{discriminator_forward.6} parent=11 // pred_check_branch
        %151 = sbr.rel (%p149) target = $region20
      $region19: #{discriminator_forward.6} parent=11 // pred_region
        _
      $region20: #{discriminator_forward.6} parent=11 // pred_fallthru
        _
    $region12: #{discriminator_forward.6} parent=5 // pred_fallthru
      _
    %p152 = scmp.lt.s32.totalorder %s11, 2
    // Predicated region
    $region21: #{discriminator_forward.6} parent=5 // pred_check
      %p153 = pneg %p152
    $region22: #{discriminator_forward.6} parent=5 // pred_check_branch
      %155 = sbr.rel (%p153) target = $region24
    $region23: #{discriminator_forward.6} parent=5 // pred_region
      // Predicated region
      $region25: #{discriminator_forward.6} parent=23 // pred_check
        %p156 = pneg %p31
      $region26: #{discriminator_forward.6} parent=23 // pred_check_branch
        %158 = sbr.rel (%p156) target = $region28
      $region27: #{discriminator_forward.6} parent=23 // pred_region
        %p159 = scmp.lt.s32.totalorder %s11, 1
        %s160 = scalar_select %p159, %s11, 1
        %s161 = smul.addr %s160, 8
        %s162 = smul.addr %s161, 4
        %s163 = scalar_lea.vmem %s0, %s162
      $region28: #{discriminator_forward.6} parent=23 // pred_fallthru
        _
    $region24: #{discriminator_forward.6} parent=5 // pred_fallthru
      _
    %p164 = scmp.le.s32.totalorder 1, %s11
    %p165 = scmp.lt.s32.totalorder %s11, 3
    %p166 = pnand %p164, %p165
    %p167 = pneg %p166
    // Predicated region
    $region29: #{discriminator_forward.6} parent=5 // pred_check
      _
    $region30: #{discriminator_forward.6} parent=5 // pred_check_branch
      %169 = sbr.rel (%p166) target = $region32
    $region31: #{discriminator_forward.6} parent=5 // pred_region
      %s170 = ssub.s32 %s11, 1
      %p171 = scmp.lt.s32.totalorder %s16, 1
      %s172 = scalar_select %p171, %s16, 1
      %s173 = smul.addr %s172, 8
      %s174 = smul.addr %s173, 4
      %s175 = scalar_lea.vmem %s0, %s174
      %p176 = pneg %p37
      %p177 = pneg %p34
      %p178 = pneg %p58
      %p179 = pneg %p55
      %p180 = pneg %p79
      %p181 = pneg %p76
      %p182 = pneg %p105
      %p183 = pneg %p102
      %p184 = scmp.lt.s32.totalorder %s16, 1
      %s185 = scalar_select %p184, %s16, 1
      %s186 = smul.addr %s185, 2
      %s187 = smul.addr %s186, 4
      %s188 = scalar_lea.vmem %s3, %s187
      %p189 = pneg %p131
      %p190 = pneg %p128
      %p191 = scmp.lt.s32.totalorder %s16, 1
      %s192 = scalar_select %p191, %s16, 1
      %s193 = smul.addr %s192, 2
      %s194 = smul.addr %s193, 2
      %s195 = scalar_lea.vmem %s4, %s194
      %p196 = scmp.lt.s32.totalorder %s16, 1
      %s197 = scalar_select %p196, %s16, 1
      %s198 = smul.addr %s197, 8
      %s199 = smul.addr %s198, 4
      %s200 = scalar_lea.vmem %s0, %s199
      %p201 = scmp.lt.s32.totalorder %s16, 1
      %s202 = scalar_select %p201, %s16, 1
      %s203 = smul.addr %s202, 2
      %s204 = smul.addr %s203, 4
      %s205 = scalar_lea.vmem %s3, %s204
      %p206 = scmp.lt.s32.totalorder %s16, 1
      %s207 = scalar_select %p206, %s16, 1
      %s208 = smul.addr %s207, 2
      %s209 = smul.addr %s208, 2
      %s210 = scalar_lea.vmem %s4, %s209
      %v211 = vld [vmem:[%s200] sm:$0x77]
      %v212 = vld [vmem:[%s200 + $0x8] sm:$0x77]
      %v213 = vld [vmem:[%s1] sm:$0xff]
      %v214 = vld [vmem:[%s1 + $0x8] sm:$0xff]
      %v215 = vld [vmem:[%s1 + $0x10] sm:$0xff]
      %v216 = vld [vmem:[%s1 + $0x18] sm:$0xff]
      %v217 = vld [vmem:[%s1 + $0x20] sm:$0xff]
      %v218 = vld [vmem:[%s1 + $0x28] sm:$0xff]
      %v219 = vld [vmem:[%s1 + $0x30] sm:$0xff]
      %v220 = vld [vmem:[%s1 + $0x38] sm:$0xff]
      %v221 = vld [vmem:[%s1 + $0x40] sm:$0xff]
      %v222 = vld [vmem:[%s1 + $0x48] sm:$0xff]
      %v223 = vld [vmem:[%s1 + $0x50] sm:$0xff]
      %v224 = vld [vmem:[%s1 + $0x58] sm:$0xff]
      %v225 = vld [vmem:[%s1 + $0x60] sm:$0xff]
      %v226 = vld [vmem:[%s1 + $0x68] sm:$0xff]
      %v227 = vld [vmem:[%s1 + $0x70] sm:$0xff]
      %v228 = vld [vmem:[%s1 + $0x78] sm:$0xff]
      %v229 = vld [vmem:[%s1 + $0x80] sm:$0xff]
      %v230 = vld [vmem:[%s1 + $0x88] sm:$0xff]
      %v231 = vld [vmem:[%s1 + $0x90] sm:$0xff]
      %v232 = vld [vmem:[%s1 + $0x98] sm:$0xff]
      %v233 = vld [vmem:[%s1 + $0xa0] sm:$0xff]
      %v234 = vld [vmem:[%s1 + $0xa8] sm:$0xff]
      %v235 = vld [vmem:[%s1 + $0xb0] sm:$0xff]
      %v236 = vld [vmem:[%s1 + $0xb8] sm:$0xff]
      %v237 = vld [vmem:[%s1 + $0xc0] sm:$0xff]
      %v238 = vld [vmem:[%s1 + $0xc8] sm:$0xff]
      %v239 = vld [vmem:[%s1 + $0xd0] sm:$0xff]
      %v240 = vld [vmem:[%s1 + $0xd8] sm:$0xff]
      %v241 = vld [vmem:[%s1 + $0xe0] sm:$0xff]
      %v242 = vld [vmem:[%s1 + $0xe8] sm:$0xff]
      %v243 = vld [vmem:[%s1 + $0xf0] sm:$0xff]
      %v244 = vld [vmem:[%s1 + $0xf8] sm:$0xff]
      %v245 = vld [vmem:[%s1 + $0x100] sm:$0xff]
      %v246 = vld [vmem:[%s1 + $0x108] sm:$0xff]
      %v247 = vld [vmem:[%s1 + $0x110] sm:$0xff]
      %v248 = vld [vmem:[%s1 + $0x118] sm:$0xff]
      %v249 = vld [vmem:[%s1 + $0x120] sm:$0xff]
      %v250 = vld [vmem:[%s1 + $0x128] sm:$0xff]
      %v251 = vld [vmem:[%s1 + $0x130] sm:$0xff]
      %v252 = vld [vmem:[%s1 + $0x138] sm:$0xff]
      %v253 = vld [vmem:[%s1 + $0x140] sm:$0xff]
      %v254 = vld [vmem:[%s1 + $0x148] sm:$0xff]
      %v255 = vld [vmem:[%s1 + $0x150] sm:$0xff]
      %v256 = vld [vmem:[%s1 + $0x158] sm:$0xff]
      %v257 = vld [vmem:[%s1 + $0x160] sm:$0xff]
      %v258 = vld [vmem:[%s1 + $0x168] sm:$0xff]
      %v259 = vld [vmem:[%s1 + $0x170] sm:$0xff]
      %v260 = vld [vmem:[%s1 + $0x178] sm:$0xff]
      %v261 = vld [vmem:[%s1 + $0x180] sm:$0xff]
      %v262 = vld [vmem:[%s1 + $0x188] sm:$0xff]
      %v263 = vld [vmem:[%s1 + $0x190] sm:$0xff]
      %v264 = vld [vmem:[%s1 + $0x198] sm:$0xff]
      %v265 = vld [vmem:[%s1 + $0x1a0] sm:$0xff]
      %v266 = vld [vmem:[%s1 + $0x1a8] sm:$0xff]
      %v267 = vld [vmem:[%s1 + $0x1b0] sm:$0xff]
      %v268 = vld [vmem:[%s1 + $0x1b8] sm:$0xff]
      %v269 = vld [vmem:[%s1 + $0x1c0] sm:$0xff]
      %v270 = vld [vmem:[%s1 + $0x1c8] sm:$0xff]
      %v271 = vld [vmem:[%s1 + $0x1d0] sm:$0xff]
      %v272 = vld [vmem:[%s1 + $0x1d8] sm:$0xff]
      %v273 = vld [vmem:[%s1 + $0x1e0] sm:$0xff]
      %v274 = vld [vmem:[%s1 + $0x1e8] sm:$0xff]
      %v275 = vld [vmem:[%s1 + $0x1f0] sm:$0xff]
      %v276 = vld [vmem:[%s1 + $0x1f8] sm:$0xff]
      %v277 = vld [vmem:[%s200] sm:$0xff]
      %v278 = vld [vmem:[%s200 + $0x8] sm:$0xff]
      %s279 = scalar_lea.vmem %s1, 512
      %v280 = vld [vmem:[%s279] sm:$0xff]
      %v281 = vld [vmem:[%s279 + $0x8] sm:$0xff]
      %v282 = vld [vmem:[%s279 + $0x10] sm:$0xff]
      %v283 = vld [vmem:[%s279 + $0x18] sm:$0xff]
      %v284 = vld [vmem:[%s279 + $0x20] sm:$0xff]
      %v285 = vld [vmem:[%s279 + $0x28] sm:$0xff]
      %v286 = vld [vmem:[%s279 + $0x30] sm:$0xff]
      %v287 = vld [vmem:[%s279 + $0x38] sm:$0xff]
      %v288 = vld [vmem:[%s279 + $0x40] sm:$0xff]
      %v289 = vld [vmem:[%s279 + $0x48] sm:$0xff]
      %v290 = vld [vmem:[%s279 + $0x50] sm:$0xff]
      %v291 = vld [vmem:[%s279 + $0x58] sm:$0xff]
      %v292 = vld [vmem:[%s279 + $0x60] sm:$0xff]
      %v293 = vld [vmem:[%s279 + $0x68] sm:$0xff]
      %v294 = vld [vmem:[%s279 + $0x70] sm:$0xff]
      %v295 = vld [vmem:[%s279 + $0x78] sm:$0xff]
      %v296 = vld [vmem:[%s279 + $0x80] sm:$0xff]
      %v297 = vld [vmem:[%s279 + $0x88] sm:$0xff]
      %v298 = vld [vmem:[%s279 + $0x90] sm:$0xff]
      %v299 = vld [vmem:[%s279 + $0x98] sm:$0xff]
      %v300 = vld [vmem:[%s279 + $0xa0] sm:$0xff]
      %v301 = vld [vmem:[%s279 + $0xa8] sm:$0xff]
      %v302 = vld [vmem:[%s279 + $0xb0] sm:$0xff]
      %v303 = vld [vmem:[%s279 + $0xb8] sm:$0xff]
      %v304 = vld [vmem:[%s279 + $0xc0] sm:$0xff]
      %v305 = vld [vmem:[%s279 + $0xc8] sm:$0xff]
      %v306 = vld [vmem:[%s279 + $0xd0] sm:$0xff]
      %v307 = vld [vmem:[%s279 + $0xd8] sm:$0xff]
      %v308 = vld [vmem:[%s279 + $0xe0] sm:$0xff]
      %v309 = vld [vmem:[%s279 + $0xe8] sm:$0xff]
      %v310 = vld [vmem:[%s279 + $0xf0] sm:$0xff]
      %v311 = vld [vmem:[%s279 + $0xf8] sm:$0xff]
      %v312 = vld [vmem:[%s279 + $0x100] sm:$0xff]
      %v313 = vld [vmem:[%s279 + $0x108] sm:$0xff]
      %v314 = vld [vmem:[%s279 + $0x110] sm:$0xff]
      %v315 = vld [vmem:[%s279 + $0x118] sm:$0xff]
      %v316 = vld [vmem:[%s279 + $0x120] sm:$0xff]
      %v317 = vld [vmem:[%s279 + $0x128] sm:$0xff]
      %v318 = vld [vmem:[%s279 + $0x130] sm:$0xff]
      %v319 = vld [vmem:[%s279 + $0x138] sm:$0xff]
      %v320 = vld [vmem:[%s279 + $0x140] sm:$0xff]
      %v321 = vld [vmem:[%s279 + $0x148] sm:$0xff]
      %v322 = vld [vmem:[%s279 + $0x150] sm:$0xff]
      %v323 = vld [vmem:[%s279 + $0x158] sm:$0xff]
      %v324 = vld [vmem:[%s279 + $0x160] sm:$0xff]
      %v325 = vld [vmem:[%s279 + $0x168] sm:$0xff]
      %v326 = vld [vmem:[%s279 + $0x170] sm:$0xff]
      %v327 = vld [vmem:[%s279 + $0x178] sm:$0xff]
      %v328 = vld [vmem:[%s279 + $0x180] sm:$0xff]
      %v329 = vld [vmem:[%s279 + $0x188] sm:$0xff]
      %v330 = vld [vmem:[%s279 + $0x190] sm:$0xff]
      %v331 = vld [vmem:[%s279 + $0x198] sm:$0xff]
      %v332 = vld [vmem:[%s279 + $0x1a0] sm:$0xff]
      %v333 = vld [vmem:[%s279 + $0x1a8] sm:$0xff]
      %v334 = vld [vmem:[%s279 + $0x1b0] sm:$0xff]
      %v335 = vld [vmem:[%s279 + $0x1b8] sm:$0xff]
      %v336 = vld [vmem:[%s279 + $0x1c0] sm:$0xff]
      %v337 = vld [vmem:[%s279 + $0x1c8] sm:$0xff]
      %v338 = vld [vmem:[%s279 + $0x1d0] sm:$0xff]
      %v339 = vld [vmem:[%s279 + $0x1d8] sm:$0xff]
      %v340 = vld [vmem:[%s279 + $0x1e0] sm:$0xff]
      %v341 = vld [vmem:[%s279 + $0x1e8] sm:$0xff]
      %v342 = vld [vmem:[%s279 + $0x1f0] sm:$0xff]
      %v343 = vld [vmem:[%s279 + $0x1f8] sm:$0xff]
      %v346 = vunpack.c.l.b16 %v277
      %v347 = vunpack.c.h.b16 %v277
      %v348 = vunpack.c.l.b16 %v278
      %v349 = vunpack.c.h.b16 %v278
      %v350 = vpack.c.b16 %v346, %v346
      %v351 = vpack.c.b16 %v347, %v347
      %v352 = vpack.c.b16 %v348, %v348
      %v353 = vpack.c.b16 %v349, %v349
      %v355 = vshrl.u32 %v350, 16
      %v357 = vshll.u32 %v350, 16
      %v359 = vrot.slane %v357, 1
      %v360 = vor.u32 %v355, %v359
      %v362 = vshrl.u32 %v351, 16
      %v364 = vshll.u32 %v351, 16
      %v366 = vrot.slane %v364, 1
      %v367 = vor.u32 %v362, %v366
      %v369 = vshrl.u32 %v352, 16
      %v371 = vshll.u32 %v352, 16
      %v373 = vrot.slane %v371, 1
      %v374 = vor.u32 %v369, %v373
      %v376 = vshrl.u32 %v353, 16
      %v378 = vshll.u32 %v353, 16
      %v380 = vrot.slane %v378, 1
      %v381 = vor.u32 %v376, %v380
      %v450 = vunpack.c.l.b16 %v280
      %v451 = vunpack.c.h.b16 %v280
      %v452 = vunpack.c.l.b16 %v281
      %v453 = vunpack.c.h.b16 %v281
      %v454 = vunpack.c.l.b16 %v282
      %v455 = vunpack.c.h.b16 %v282
      %v456 = vunpack.c.l.b16 %v283
      %v457 = vunpack.c.h.b16 %v283
      %v458 = vunpack.c.l.b16 %v284
      %v459 = vunpack.c.h.b16 %v284
      %v460 = vunpack.c.l.b16 %v285
      %v461 = vunpack.c.h.b16 %v285
      %v462 = vunpack.c.l.b16 %v286
      %v463 = vunpack.c.h.b16 %v286
      %v464 = vunpack.c.l.b16 %v287
      %v465 = vunpack.c.h.b16 %v287
      %v466 = vunpack.c.l.b16 %v288
      %v467 = vunpack.c.h.b16 %v288
      %v468 = vunpack.c.l.b16 %v289
      %v469 = vunpack.c.h.b16 %v289
      %v470 = vunpack.c.l.b16 %v290
      %v471 = vunpack.c.h.b16 %v290
      %v472 = vunpack.c.l.b16 %v291
      %v473 = vunpack.c.h.b16 %v291
      %v474 = vunpack.c.l.b16 %v292
      %v475 = vunpack.c.h.b16 %v292
      %v476 = vunpack.c.l.b16 %v293
      %v477 = vunpack.c.h.b16 %v293
      %v478 = vunpack.c.l.b16 %v294
      %v479 = vunpack.c.h.b16 %v294
      %v480 = vunpack.c.l.b16 %v295
      %v481 = vunpack.c.h.b16 %v295
      %v482 = vunpack.c.l.b16 %v296
      %v483 = vunpack.c.h.b16 %v296
      %v484 = vunpack.c.l.b16 %v297
      %v485 = vunpack.c.h.b16 %v297
      %v486 = vunpack.c.l.b16 %v298
      %v487 = vunpack.c.h.b16 %v298
      %v488 = vunpack.c.l.b16 %v299
      %v489 = vunpack.c.h.b16 %v299
      %v490 = vunpack.c.l.b16 %v300
      %v491 = vunpack.c.h.b16 %v300
      %v492 = vunpack.c.l.b16 %v301
      %v493 = vunpack.c.h.b16 %v301
      %v494 = vunpack.c.l.b16 %v302
      %v495 = vunpack.c.h.b16 %v302
      %v496 = vunpack.c.l.b16 %v303
      %v497 = vunpack.c.h.b16 %v303
      %v498 = vunpack.c.l.b16 %v304
      %v499 = vunpack.c.h.b16 %v304
      %v500 = vunpack.c.l.b16 %v305
      %v501 = vunpack.c.h.b16 %v305
      %v502 = vunpack.c.l.b16 %v306
      %v503 = vunpack.c.h.b16 %v306
      %v504 = vunpack.c.l.b16 %v307
      %v505 = vunpack.c.h.b16 %v307
      %v506 = vunpack.c.l.b16 %v308
      %v507 = vunpack.c.h.b16 %v308
      %v508 = vunpack.c.l.b16 %v309
      %v509 = vunpack.c.h.b16 %v309
      %v510 = vunpack.c.l.b16 %v310
      %v511 = vunpack.c.h.b16 %v310
      %v512 = vunpack.c.l.b16 %v311
      %v513 = vunpack.c.h.b16 %v311
      %v514 = vunpack.c.l.b16 %v312
      %v515 = vunpack.c.h.b16 %v312
      %v516 = vunpack.c.l.b16 %v313
      %v517 = vunpack.c.h.b16 %v313
      %v518 = vunpack.c.l.b16 %v314
      %v519 = vunpack.c.h.b16 %v314
      %v520 = vunpack.c.l.b16 %v315
      %v521 = vunpack.c.h.b16 %v315
      %v522 = vunpack.c.l.b16 %v316
      %v523 = vunpack.c.h.b16 %v316
      %v524 = vunpack.c.l.b16 %v317
      %v525 = vunpack.c.h.b16 %v317
      %v526 = vunpack.c.l.b16 %v318
      %v527 = vunpack.c.h.b16 %v318
      %v528 = vunpack.c.l.b16 %v319
      %v529 = vunpack.c.h.b16 %v319
      %v530 = vunpack.c.l.b16 %v320
      %v531 = vunpack.c.h.b16 %v320
      %v532 = vunpack.c.l.b16 %v321
      %v533 = vunpack.c.h.b16 %v321
      %v534 = vunpack.c.l.b16 %v322
      %v535 = vunpack.c.h.b16 %v322
      %v536 = vunpack.c.l.b16 %v323
      %v537 = vunpack.c.h.b16 %v323
      %v538 = vunpack.c.l.b16 %v324
      %v539 = vunpack.c.h.b16 %v324
      %v540 = vunpack.c.l.b16 %v325
      %v541 = vunpack.c.h.b16 %v325
      %v542 = vunpack.c.l.b16 %v326
      %v543 = vunpack.c.h.b16 %v326
      %v544 = vunpack.c.l.b16 %v327
      %v545 = vunpack.c.h.b16 %v327
      %v546 = vunpack.c.l.b16 %v328
      %v547 = vunpack.c.h.b16 %v328
      %v548 = vunpack.c.l.b16 %v329
      %v549 = vunpack.c.h.b16 %v329
      %v550 = vunpack.c.l.b16 %v330
      %v551 = vunpack.c.h.b16 %v330
      %v552 = vunpack.c.l.b16 %v331
      %v553 = vunpack.c.h.b16 %v331
      %v554 = vunpack.c.l.b16 %v332
      %v555 = vunpack.c.h.b16 %v332
      %v556 = vunpack.c.l.b16 %v333
      %v557 = vunpack.c.h.b16 %v333
      %v558 = vunpack.c.l.b16 %v334
      %v559 = vunpack.c.h.b16 %v334
      %v560 = vunpack.c.l.b16 %v335
      %v561 = vunpack.c.h.b16 %v335
      %v562 = vunpack.c.l.b16 %v336
      %v563 = vunpack.c.h.b16 %v336
      %v564 = vunpack.c.l.b16 %v337
      %v565 = vunpack.c.h.b16 %v337
      %v566 = vunpack.c.l.b16 %v338
      %v567 = vunpack.c.h.b16 %v338
      %v568 = vunpack.c.l.b16 %v339
      %v569 = vunpack.c.h.b16 %v339
      %v570 = vunpack.c.l.b16 %v340
      %v571 = vunpack.c.h.b16 %v340
      %v572 = vunpack.c.l.b16 %v341
      %v573 = vunpack.c.h.b16 %v341
      %v574 = vunpack.c.l.b16 %v342
      %v575 = vunpack.c.h.b16 %v342
      %v576 = vunpack.c.l.b16 %v343
      %v577 = vunpack.c.h.b16 %v343
      %v578 = vpack.c.b16 %v452, %v450
      %v579 = vpack.c.b16 %v453, %v451
      %v580 = vpack.c.b16 %v456, %v454
      %v581 = vpack.c.b16 %v457, %v455
      %v582 = vpack.c.b16 %v460, %v458
      %v583 = vpack.c.b16 %v461, %v459
      %v584 = vpack.c.b16 %v464, %v462
      %v585 = vpack.c.b16 %v465, %v463
      %v586 = vpack.c.b16 %v468, %v466
      %v587 = vpack.c.b16 %v469, %v467
      %v588 = vpack.c.b16 %v472, %v470
      %v589 = vpack.c.b16 %v473, %v471
      %v590 = vpack.c.b16 %v476, %v474
      %v591 = vpack.c.b16 %v477, %v475
      %v592 = vpack.c.b16 %v480, %v478
      %v593 = vpack.c.b16 %v481, %v479
      %v594 = vpack.c.b16 %v484, %v482
      %v595 = vpack.c.b16 %v485, %v483
      %v596 = vpack.c.b16 %v488, %v486
      %v597 = vpack.c.b16 %v489, %v487
      %v598 = vpack.c.b16 %v492, %v490
      %v599 = vpack.c.b16 %v493, %v491
      %v600 = vpack.c.b16 %v496, %v494
      %v601 = vpack.c.b16 %v497, %v495
      %v602 = vpack.c.b16 %v500, %v498
      %v603 = vpack.c.b16 %v501, %v499
      %v604 = vpack.c.b16 %v504, %v502
      %v605 = vpack.c.b16 %v505, %v503
      %v606 = vpack.c.b16 %v508, %v506
      %v607 = vpack.c.b16 %v509, %v507
      %v608 = vpack.c.b16 %v512, %v510
      %v609 = vpack.c.b16 %v513, %v511
      %v610 = vpack.c.b16 %v516, %v514
      %v611 = vpack.c.b16 %v517, %v515
      %v612 = vpack.c.b16 %v520, %v518
      %v613 = vpack.c.b16 %v521, %v519
      %v614 = vpack.c.b16 %v524, %v522
      %v615 = vpack.c.b16 %v525, %v523
      %v616 = vpack.c.b16 %v528, %v526
      %v617 = vpack.c.b16 %v529, %v527
      %v618 = vpack.c.b16 %v532, %v530
      %v619 = vpack.c.b16 %v533, %v531
      %v620 = vpack.c.b16 %v536, %v534
      %v621 = vpack.c.b16 %v537, %v535
      %v622 = vpack.c.b16 %v540, %v538
      %v623 = vpack.c.b16 %v541, %v539
      %v624 = vpack.c.b16 %v544, %v542
      %v625 = vpack.c.b16 %v545, %v543
      %v626 = vpack.c.b16 %v548, %v546
      %v627 = vpack.c.b16 %v549, %v547
      %v628 = vpack.c.b16 %v552, %v550
      %v629 = vpack.c.b16 %v553, %v551
      %v630 = vpack.c.b16 %v556, %v554
      %v631 = vpack.c.b16 %v557, %v555
      %v632 = vpack.c.b16 %v560, %v558
      %v633 = vpack.c.b16 %v561, %v559
      %v634 = vpack.c.b16 %v564, %v562
      %v635 = vpack.c.b16 %v565, %v563
      %v636 = vpack.c.b16 %v568, %v566
      %v637 = vpack.c.b16 %v569, %v567
      %v638 = vpack.c.b16 %v572, %v570
      %v639 = vpack.c.b16 %v573, %v571
      %v640 = vpack.c.b16 %v576, %v574
      %v641 = vpack.c.b16 %v577, %v575
      %706 = vmatpush.bf16.msra.mxu0 %v592
      %707 = vmatpush.bf16.msra.mxu0 %v590
      %708 = vmatpush.bf16.msra.mxu0 %v588
      %709 = vmatpush.bf16.msra.mxu0 %v586
      %710 = vmatpush.bf16.msra.mxu0 %v584
      %711 = vmatpush.bf16.msra.mxu0 %v582
      %712 = vmatpush.bf16.msra.mxu0 %v580
      %713 = vmatpush.bf16.msra.mxu0 %v578
      %714 = vmatmul.bf16.gmra.mxu0 %v360
      %v715 = vpop.f32.mrf.mxu0
      %v716 = vadd.f32 0.0, %v715
      %v717 = vpop.f32.mrf.mxu0
      %718 = vdwg.mxu0
      %719 = vmatpush.bf16.msra.mxu0 %v608
      %720 = vmatpush.bf16.msra.mxu0 %v606
      %721 = vmatpush.bf16.msra.mxu0 %v604
      %722 = vmatpush.bf16.msra.mxu0 %v602
      %723 = vmatpush.bf16.msra.mxu0 %v600
      %724 = vmatpush.bf16.msra.mxu0 %v598
      %725 = vmatpush.bf16.msra.mxu0 %v596
      %726 = vmatpush.bf16.msra.mxu0 %v594
      %727 = vmatmul.bf16.gmra.mxu0 %v367
      %v728 = vpop.f32.mrf.mxu0
      %v729 = vadd.f32 %v716, %v728
      %v730 = vpop.f32.mrf.mxu0
      %731 = vdwg.mxu0
      %732 = vmatpush.bf16.msra.mxu0 %v624
      %733 = vmatpush.bf16.msra.mxu0 %v622
      %734 = vmatpush.bf16.msra.mxu0 %v620
      %735 = vmatpush.bf16.msra.mxu0 %v618
      %736 = vmatpush.bf16.msra.mxu0 %v616
      %737 = vmatpush.bf16.msra.mxu0 %v614
      %738 = vmatpush.bf16.msra.mxu0 %v612
      %739 = vmatpush.bf16.msra.mxu0 %v610
      %740 = vmatmul.bf16.gmra.mxu0 %v374
      %v741 = vpop.f32.mrf.mxu0
      %v742 = vadd.f32 %v729, %v741
      %v743 = vpop.f32.mrf.mxu0
      %744 = vdwg.mxu0
      %745 = vmatpush.bf16.msra.mxu0 %v640
      %746 = vmatpush.bf16.msra.mxu0 %v638
      %747 = vmatpush.bf16.msra.mxu0 %v636
      %748 = vmatpush.bf16.msra.mxu0 %v634
      %749 = vmatpush.bf16.msra.mxu0 %v632
      %750 = vmatpush.bf16.msra.mxu0 %v630
      %751 = vmatpush.bf16.msra.mxu0 %v628
      %752 = vmatpush.bf16.msra.mxu0 %v626
      %753 = vmatmul.bf16.gmra.mxu0 %v381
      %v754 = vpop.f32.mrf.mxu0
      %v755 = vadd.f32 %v742, %v754
      %v756 = vpop.f32.mrf.mxu0
      %757 = vdwg.mxu0
      %758 = vmatpush.bf16.msra.mxu0 %v593
      %759 = vmatpush.bf16.msra.mxu0 %v591
      %760 = vmatpush.bf16.msra.mxu0 %v589
      %761 = vmatpush.bf16.msra.mxu0 %v587
      %762 = vmatpush.bf16.msra.mxu0 %v585
      %763 = vmatpush.bf16.msra.mxu0 %v583
      %764 = vmatpush.bf16.msra.mxu0 %v581
      %765 = vmatpush.bf16.msra.mxu0 %v579
      %766 = vmatmul.bf16.gmra.mxu0 %v360
      %v767 = vpop.f32.mrf.mxu0
      %v768 = vadd.f32 0.0, %v767
      %v769 = vpop.f32.mrf.mxu0
      %770 = vdwg.mxu0
      %771 = vmatpush.bf16.msra.mxu0 %v609
      %772 = vmatpush.bf16.msra.mxu0 %v607
      %773 = vmatpush.bf16.msra.mxu0 %v605
      %774 = vmatpush.bf16.msra.mxu0 %v603
      %775 = vmatpush.bf16.msra.mxu0 %v601
      %776 = vmatpush.bf16.msra.mxu0 %v599
      %777 = vmatpush.bf16.msra.mxu0 %v597
      %778 = vmatpush.bf16.msra.mxu0 %v595
      %779 = vmatmul.bf16.gmra.mxu0 %v367
      %v780 = vpop.f32.mrf.mxu0
      %v781 = vadd.f32 %v768, %v780
      %v782 = vpop.f32.mrf.mxu0
      %783 = vdwg.mxu0
      %784 = vmatpush.bf16.msra.mxu0 %v625
      %785 = vmatpush.bf16.msra.mxu0 %v623
      %786 = vmatpush.bf16.msra.mxu0 %v621
      %787 = vmatpush.bf16.msra.mxu0 %v619
      %788 = vmatpush.bf16.msra.mxu0 %v617
      %789 = vmatpush.bf16.msra.mxu0 %v615
      %790 = vmatpush.bf16.msra.mxu0 %v613
      %791 = vmatpush.bf16.msra.mxu0 %v611
      %792 = vmatmul.bf16.gmra.mxu0 %v374
      %v793 = vpop.f32.mrf.mxu0
      %v794 = vadd.f32 %v781, %v793
      %v795 = vpop.f32.mrf.mxu0
      %796 = vdwg.mxu0
      %797 = vmatpush.bf16.msra.mxu0 %v641
      %798 = vmatpush.bf16.msra.mxu0 %v639
      %799 = vmatpush.bf16.msra.mxu0 %v637
      %800 = vmatpush.bf16.msra.mxu0 %v635
      %801 = vmatpush.bf16.msra.mxu0 %v633
      %802 = vmatpush.bf16.msra.mxu0 %v631
      %803 = vmatpush.bf16.msra.mxu0 %v629
      %804 = vmatpush.bf16.msra.mxu0 %v627
      %805 = vmatmul.bf16.gmra.mxu0 %v381
      %v806 = vpop.f32.mrf.mxu0
      %v807 = vadd.f32 %v794, %v806
      %v808 = vpop.f32.mrf.mxu0
      %809 = vdwg.mxu0
      %v812 = vunpack.c.l.b16 %v211
      %v813 = vunpack.c.h.b16 %v211
      %v814 = vunpack.c.l.b16 %v212
      %v815 = vunpack.c.h.b16 %v212
      %v816 = vpack.c.b16 %v812, %v812
      %v817 = vpack.c.b16 %v813, %v813
      %v818 = vpack.c.b16 %v814, %v814
      %v819 = vpack.c.b16 %v815, %v815
      %v888 = vunpack.c.l.b16 %v213
      %v889 = vunpack.c.h.b16 %v213
      %v890 = vunpack.c.l.b16 %v214
      %v891 = vunpack.c.h.b16 %v214
      %v892 = vunpack.c.l.b16 %v215
      %v893 = vunpack.c.h.b16 %v215
      %v894 = vunpack.c.l.b16 %v216
      %v895 = vunpack.c.h.b16 %v216
      %v896 = vunpack.c.l.b16 %v217
      %v897 = vunpack.c.h.b16 %v217
      %v898 = vunpack.c.l.b16 %v218
      %v899 = vunpack.c.h.b16 %v218
      %v900 = vunpack.c.l.b16 %v219
      %v901 = vunpack.c.h.b16 %v219
      %v902 = vunpack.c.l.b16 %v220
      %v903 = vunpack.c.h.b16 %v220
      %v904 = vunpack.c.l.b16 %v221
      %v905 = vunpack.c.h.b16 %v221
      %v906 = vunpack.c.l.b16 %v222
      %v907 = vunpack.c.h.b16 %v222
      %v908 = vunpack.c.l.b16 %v223
      %v909 = vunpack.c.h.b16 %v223
      %v910 = vunpack.c.l.b16 %v224
      %v911 = vunpack.c.h.b16 %v224
      %v912 = vunpack.c.l.b16 %v225
      %v913 = vunpack.c.h.b16 %v225
      %v914 = vunpack.c.l.b16 %v226
      %v915 = vunpack.c.h.b16 %v226
      %v916 = vunpack.c.l.b16 %v227
      %v917 = vunpack.c.h.b16 %v227
      %v918 = vunpack.c.l.b16 %v228
      %v919 = vunpack.c.h.b16 %v228
      %v920 = vunpack.c.l.b16 %v229
      %v921 = vunpack.c.h.b16 %v229
      %v922 = vunpack.c.l.b16 %v230
      %v923 = vunpack.c.h.b16 %v230
      %v924 = vunpack.c.l.b16 %v231
      %v925 = vunpack.c.h.b16 %v231
      %v926 = vunpack.c.l.b16 %v232
      %v927 = vunpack.c.h.b16 %v232
      %v928 = vunpack.c.l.b16 %v233
      %v929 = vunpack.c.h.b16 %v233
      %v930 = vunpack.c.l.b16 %v234
      %v931 = vunpack.c.h.b16 %v234
      %v932 = vunpack.c.l.b16 %v235
      %v933 = vunpack.c.h.b16 %v235
      %v934 = vunpack.c.l.b16 %v236
      %v935 = vunpack.c.h.b16 %v236
      %v936 = vunpack.c.l.b16 %v237
      %v937 = vunpack.c.h.b16 %v237
      %v938 = vunpack.c.l.b16 %v238
      %v939 = vunpack.c.h.b16 %v238
      %v940 = vunpack.c.l.b16 %v239
      %v941 = vunpack.c.h.b16 %v239
      %v942 = vunpack.c.l.b16 %v240
      %v943 = vunpack.c.h.b16 %v240
      %v944 = vunpack.c.l.b16 %v241
      %v945 = vunpack.c.h.b16 %v241
      %v946 = vunpack.c.l.b16 %v242
      %v947 = vunpack.c.h.b16 %v242
      %v948 = vunpack.c.l.b16 %v243
      %v949 = vunpack.c.h.b16 %v243
      %v950 = vunpack.c.l.b16 %v244
      %v951 = vunpack.c.h.b16 %v244
      %v952 = vunpack.c.l.b16 %v245
      %v953 = vunpack.c.h.b16 %v245
      %v954 = vunpack.c.l.b16 %v246
      %v955 = vunpack.c.h.b16 %v246
      %v956 = vunpack.c.l.b16 %v247
      %v957 = vunpack.c.h.b16 %v247
      %v958 = vunpack.c.l.b16 %v248
      %v959 = vunpack.c.h.b16 %v248
      %v960 = vunpack.c.l.b16 %v249
      %v961 = vunpack.c.h.b16 %v249
      %v962 = vunpack.c.l.b16 %v250
      %v963 = vunpack.c.h.b16 %v250
      %v964 = vunpack.c.l.b16 %v251
      %v965 = vunpack.c.h.b16 %v251
      %v966 = vunpack.c.l.b16 %v252
      %v967 = vunpack.c.h.b16 %v252
      %v968 = vunpack.c.l.b16 %v253
      %v969 = vunpack.c.h.b16 %v253
      %v970 = vunpack.c.l.b16 %v254
      %v971 = vunpack.c.h.b16 %v254
      %v972 = vunpack.c.l.b16 %v255
      %v973 = vunpack.c.h.b16 %v255
      %v974 = vunpack.c.l.b16 %v256
      %v975 = vunpack.c.h.b16 %v256
      %v976 = vunpack.c.l.b16 %v257
      %v977 = vunpack.c.h.b16 %v257
      %v978 = vunpack.c.l.b16 %v258
      %v979 = vunpack.c.h.b16 %v258
      %v980 = vunpack.c.l.b16 %v259
      %v981 = vunpack.c.h.b16 %v259
      %v982 = vunpack.c.l.b16 %v260
      %v983 = vunpack.c.h.b16 %v260
      %v984 = vunpack.c.l.b16 %v261
      %v985 = vunpack.c.h.b16 %v261
      %v986 = vunpack.c.l.b16 %v262
      %v987 = vunpack.c.h.b16 %v262
      %v988 = vunpack.c.l.b16 %v263
      %v989 = vunpack.c.h.b16 %v263
      %v990 = vunpack.c.l.b16 %v264
      %v991 = vunpack.c.h.b16 %v264
      %v992 = vunpack.c.l.b16 %v265
      %v993 = vunpack.c.h.b16 %v265
      %v994 = vunpack.c.l.b16 %v266
      %v995 = vunpack.c.h.b16 %v266
      %v996 = vunpack.c.l.b16 %v267
      %v997 = vunpack.c.h.b16 %v267
      %v998 = vunpack.c.l.b16 %v268
      %v999 = vunpack.c.h.b16 %v268
      %v1000 = vunpack.c.l.b16 %v269
      %v1001 = vunpack.c.h.b16 %v269
      %v1002 = vunpack.c.l.b16 %v270
      %v1003 = vunpack.c.h.b16 %v270
      %v1004 = vunpack.c.l.b16 %v271
      %v1005 = vunpack.c.h.b16 %v271
      %v1006 = vunpack.c.l.b16 %v272
      %v1007 = vunpack.c.h.b16 %v272
      %v1008 = vunpack.c.l.b16 %v273
      %v1009 = vunpack.c.h.b16 %v273
      %v1010 = vunpack.c.l.b16 %v274
      %v1011 = vunpack.c.h.b16 %v274
      %v1012 = vunpack.c.l.b16 %v275
      %v1013 = vunpack.c.h.b16 %v275
      %v1014 = vunpack.c.l.b16 %v276
      %v1015 = vunpack.c.h.b16 %v276
      %v1016 = vpack.c.b16 %v890, %v888
      %v1017 = vpack.c.b16 %v891, %v889
      %v1018 = vpack.c.b16 %v894, %v892
      %v1019 = vpack.c.b16 %v895, %v893
      %v1020 = vpack.c.b16 %v898, %v896
      %v1021 = vpack.c.b16 %v899, %v897
      %v1022 = vpack.c.b16 %v902, %v900
      %v1023 = vpack.c.b16 %v903, %v901
      %v1024 = vpack.c.b16 %v906, %v904
      %v1025 = vpack.c.b16 %v907, %v905
      %v1026 = vpack.c.b16 %v910, %v908
      %v1027 = vpack.c.b16 %v911, %v909
      %v1028 = vpack.c.b16 %v914, %v912
      %v1029 = vpack.c.b16 %v915, %v913
      %v1030 = vpack.c.b16 %v918, %v916
      %v1031 = vpack.c.b16 %v919, %v917
      %v1032 = vpack.c.b16 %v922, %v920
      %v1033 = vpack.c.b16 %v923, %v921
      %v1034 = vpack.c.b16 %v926, %v924
      %v1035 = vpack.c.b16 %v927, %v925
      %v1036 = vpack.c.b16 %v930, %v928
      %v1037 = vpack.c.b16 %v931, %v929
      %v1038 = vpack.c.b16 %v934, %v932
      %v1039 = vpack.c.b16 %v935, %v933
      %v1040 = vpack.c.b16 %v938, %v936
      %v1041 = vpack.c.b16 %v939, %v937
      %v1042 = vpack.c.b16 %v942, %v940
      %v1043 = vpack.c.b16 %v943, %v941
      %v1044 = vpack.c.b16 %v946, %v944
      %v1045 = vpack.c.b16 %v947, %v945
      %v1046 = vpack.c.b16 %v950, %v948
      %v1047 = vpack.c.b16 %v951, %v949
      %v1048 = vpack.c.b16 %v954, %v952
      %v1049 = vpack.c.b16 %v955, %v953
      %v1050 = vpack.c.b16 %v958, %v956
      %v1051 = vpack.c.b16 %v959, %v957
      %v1052 = vpack.c.b16 %v962, %v960
      %v1053 = vpack.c.b16 %v963, %v961
      %v1054 = vpack.c.b16 %v966, %v964
      %v1055 = vpack.c.b16 %v967, %v965
      %v1056 = vpack.c.b16 %v970, %v968
      %v1057 = vpack.c.b16 %v971, %v969
      %v1058 = vpack.c.b16 %v974, %v972
      %v1059 = vpack.c.b16 %v975, %v973
      %v1060 = vpack.c.b16 %v978, %v976
      %v1061 = vpack.c.b16 %v979, %v977
      %v1062 = vpack.c.b16 %v982, %v980
      %v1063 = vpack.c.b16 %v983, %v981
      %v1064 = vpack.c.b16 %v986, %v984
      %v1065 = vpack.c.b16 %v987, %v985
      %v1066 = vpack.c.b16 %v990, %v988
      %v1067 = vpack.c.b16 %v991, %v989
      %v1068 = vpack.c.b16 %v994, %v992
      %v1069 = vpack.c.b16 %v995, %v993
      %v1070 = vpack.c.b16 %v998, %v996
      %v1071 = vpack.c.b16 %v999, %v997
      %v1072 = vpack.c.b16 %v1002, %v1000
      %v1073 = vpack.c.b16 %v1003, %v1001
      %v1074 = vpack.c.b16 %v1006, %v1004
      %v1075 = vpack.c.b16 %v1007, %v1005
      %v1076 = vpack.c.b16 %v1010, %v1008
      %v1077 = vpack.c.b16 %v1011, %v1009
      %v1078 = vpack.c.b16 %v1014, %v1012
      %v1079 = vpack.c.b16 %v1015, %v1013
      %1144 = vmatpush.bf16.msra.mxu0 %v1030
      %1145 = vmatpush.bf16.msra.mxu0 %v1028
      %1146 = vmatpush.bf16.msra.mxu0 %v1026
      %1147 = vmatpush.bf16.msra.mxu0 %v1024
      %1148 = vmatpush.bf16.msra.mxu0 %v1022
      %1149 = vmatpush.bf16.msra.mxu0 %v1020
      %1150 = vmatpush.bf16.msra.mxu0 %v1018
      %1151 = vmatpush.bf16.msra.mxu0 %v1016
      %1152 = vmatmul.bf16.gmra.mxu0 %v816
      %v1153 = vpop.f32.mrf.mxu0
      %v1154 = vadd.f32 %v755, %v1153
      %v1155 = vpop.f32.mrf.mxu0
      %1156 = vdwg.mxu0
      %1157 = vmatpush.bf16.msra.mxu0 %v1046
      %1158 = vmatpush.bf16.msra.mxu0 %v1044
      %1159 = vmatpush.bf16.msra.mxu0 %v1042
      %1160 = vmatpush.bf16.msra.mxu0 %v1040
      %1161 = vmatpush.bf16.msra.mxu0 %v1038
      %1162 = vmatpush.bf16.msra.mxu0 %v1036
      %1163 = vmatpush.bf16.msra.mxu0 %v1034
      %1164 = vmatpush.bf16.msra.mxu0 %v1032
      %1165 = vmatmul.bf16.gmra.mxu0 %v817
      %v1166 = vpop.f32.mrf.mxu0
      %v1167 = vadd.f32 %v1154, %v1166
      %v1168 = vpop.f32.mrf.mxu0
      %1169 = vdwg.mxu0
      %1170 = vmatpush.bf16.msra.mxu0 %v1062
      %1171 = vmatpush.bf16.msra.mxu0 %v1060
      %1172 = vmatpush.bf16.msra.mxu0 %v1058
      %1173 = vmatpush.bf16.msra.mxu0 %v1056
      %1174 = vmatpush.bf16.msra.mxu0 %v1054
      %1175 = vmatpush.bf16.msra.mxu0 %v1052
      %1176 = vmatpush.bf16.msra.mxu0 %v1050
      %1177 = vmatpush.bf16.msra.mxu0 %v1048
      %1178 = vmatmul.bf16.gmra.mxu0 %v818
      %v1179 = vpop.f32.mrf.mxu0
      %v1180 = vadd.f32 %v1167, %v1179
      %v1181 = vpop.f32.mrf.mxu0
      %1182 = vdwg.mxu0
      %1183 = vmatpush.bf16.msra.mxu0 %v1078
      %1184 = vmatpush.bf16.msra.mxu0 %v1076
      %1185 = vmatpush.bf16.msra.mxu0 %v1074
      %1186 = vmatpush.bf16.msra.mxu0 %v1072
      %1187 = vmatpush.bf16.msra.mxu0 %v1070
      %1188 = vmatpush.bf16.msra.mxu0 %v1068
      %1189 = vmatpush.bf16.msra.mxu0 %v1066
      %1190 = vmatpush.bf16.msra.mxu0 %v1064
      %1191 = vmatmul.bf16.gmra.mxu0 %v819
      %v1192 = vpop.f32.mrf.mxu0
      %v1193 = vadd.f32 %v1180, %v1192
      %v1194 = vpop.f32.mrf.mxu0
      %1195 = vdwg.mxu0
      %1196 = vmatpush.bf16.msra.mxu0 %v1031
      %1197 = vmatpush.bf16.msra.mxu0 %v1029
      %1198 = vmatpush.bf16.msra.mxu0 %v1027
      %1199 = vmatpush.bf16.msra.mxu0 %v1025
      %1200 = vmatpush.bf16.msra.mxu0 %v1023
      %1201 = vmatpush.bf16.msra.mxu0 %v1021
      %1202 = vmatpush.bf16.msra.mxu0 %v1019
      %1203 = vmatpush.bf16.msra.mxu0 %v1017
      %1204 = vmatmul.bf16.gmra.mxu0 %v816
      %v1205 = vpop.f32.mrf.mxu0
      %v1206 = vadd.f32 %v807, %v1205
      %v1207 = vpop.f32.mrf.mxu0
      %1208 = vdwg.mxu0
      %1209 = vmatpush.bf16.msra.mxu0 %v1047
      %1210 = vmatpush.bf16.msra.mxu0 %v1045
      %1211 = vmatpush.bf16.msra.mxu0 %v1043
      %1212 = vmatpush.bf16.msra.mxu0 %v1041
      %1213 = vmatpush.bf16.msra.mxu0 %v1039
      %1214 = vmatpush.bf16.msra.mxu0 %v1037
      %1215 = vmatpush.bf16.msra.mxu0 %v1035
      %1216 = vmatpush.bf16.msra.mxu0 %v1033
      %1217 = vmatmul.bf16.gmra.mxu0 %v817
      %v1218 = vpop.f32.mrf.mxu0
      %v1219 = vadd.f32 %v1206, %v1218
      %v1220 = vpop.f32.mrf.mxu0
      %1221 = vdwg.mxu0
      %1222 = vmatpush.bf16.msra.mxu0 %v1063
      %1223 = vmatpush.bf16.msra.mxu0 %v1061
      %1224 = vmatpush.bf16.msra.mxu0 %v1059
      %1225 = vmatpush.bf16.msra.mxu0 %v1057
      %1226 = vmatpush.bf16.msra.mxu0 %v1055
      %1227 = vmatpush.bf16.msra.mxu0 %v1053
      %1228 = vmatpush.bf16.msra.mxu0 %v1051
      %1229 = vmatpush.bf16.msra.mxu0 %v1049
      %1230 = vmatmul.bf16.gmra.mxu0 %v818
      %v1231 = vpop.f32.mrf.mxu0
      %v1232 = vadd.f32 %v1219, %v1231
      %v1233 = vpop.f32.mrf.mxu0
      %1234 = vdwg.mxu0
      %1235 = vmatpush.bf16.msra.mxu0 %v1079
      %1236 = vmatpush.bf16.msra.mxu0 %v1077
      %1237 = vmatpush.bf16.msra.mxu0 %v1075
      %1238 = vmatpush.bf16.msra.mxu0 %v1073
      %1239 = vmatpush.bf16.msra.mxu0 %v1071
      %1240 = vmatpush.bf16.msra.mxu0 %v1069
      %1241 = vmatpush.bf16.msra.mxu0 %v1067
      %1242 = vmatpush.bf16.msra.mxu0 %v1065
      %1243 = vmatmul.bf16.gmra.mxu0 %v819
      %v1244 = vpop.f32.mrf.mxu0
      %v1245 = vadd.f32 %v1232, %v1244
      %v1246 = vpop.f32.mrf.mxu0
      %1247 = vdwg.mxu0
      %v1248 = vld [vmem:[%s200] sm:$0xee]
      %v1249 = vld [vmem:[%s200 + $0x8] sm:$0xee]
      %v1250 = vld [vmem:[%s200 + $0x10] sm:$0x11]
      %v1251 = vld [vmem:[%s200 + $0x18] sm:$0x11]
      %s1252 = scalar_lea.vmem %s1, 1024
      %v1253 = vld [vmem:[%s1252] sm:$0xff]
      %v1254 = vld [vmem:[%s1252 + $0x8] sm:$0xff]
      %v1255 = vld [vmem:[%s1252 + $0x10] sm:$0xff]
      %v1256 = vld [vmem:[%s1252 + $0x18] sm:$0xff]
      %v1257 = vld [vmem:[%s1252 + $0x20] sm:$0xff]
      %v1258 = vld [vmem:[%s1252 + $0x28] sm:$0xff]
      %v1259 = vld [vmem:[%s1252 + $0x30] sm:$0xff]
      %v1260 = vld [vmem:[%s1252 + $0x38] sm:$0xff]
      %v1261 = vld [vmem:[%s1252 + $0x40] sm:$0xff]
      %v1262 = vld [vmem:[%s1252 + $0x48] sm:$0xff]
      %v1263 = vld [vmem:[%s1252 + $0x50] sm:$0xff]
      %v1264 = vld [vmem:[%s1252 + $0x58] sm:$0xff]
      %v1265 = vld [vmem:[%s1252 + $0x60] sm:$0xff]
      %v1266 = vld [vmem:[%s1252 + $0x68] sm:$0xff]
      %v1267 = vld [vmem:[%s1252 + $0x70] sm:$0xff]
      %v1268 = vld [vmem:[%s1252 + $0x78] sm:$0xff]
      %v1269 = vld [vmem:[%s1252 + $0x80] sm:$0xff]
      %v1270 = vld [vmem:[%s1252 + $0x88] sm:$0xff]
      %v1271 = vld [vmem:[%s1252 + $0x90] sm:$0xff]
      %v1272 = vld [vmem:[%s1252 + $0x98] sm:$0xff]
      %v1273 = vld [vmem:[%s1252 + $0xa0] sm:$0xff]
      %v1274 = vld [vmem:[%s1252 + $0xa8] sm:$0xff]
      %v1275 = vld [vmem:[%s1252 + $0xb0] sm:$0xff]
      %v1276 = vld [vmem:[%s1252 + $0xb8] sm:$0xff]
      %v1277 = vld [vmem:[%s1252 + $0xc0] sm:$0xff]
      %v1278 = vld [vmem:[%s1252 + $0xc8] sm:$0xff]
      %v1279 = vld [vmem:[%s1252 + $0xd0] sm:$0xff]
      %v1280 = vld [vmem:[%s1252 + $0xd8] sm:$0xff]
      %v1281 = vld [vmem:[%s1252 + $0xe0] sm:$0xff]
      %v1282 = vld [vmem:[%s1252 + $0xe8] sm:$0xff]
      %v1283 = vld [vmem:[%s1252 + $0xf0] sm:$0xff]
      %v1284 = vld [vmem:[%s1252 + $0xf8] sm:$0xff]
      %v1285 = vld [vmem:[%s1252 + $0x100] sm:$0xff]
      %v1286 = vld [vmem:[%s1252 + $0x108] sm:$0xff]
      %v1287 = vld [vmem:[%s1252 + $0x110] sm:$0xff]
      %v1288 = vld [vmem:[%s1252 + $0x118] sm:$0xff]
      %v1289 = vld [vmem:[%s1252 + $0x120] sm:$0xff]
      %v1290 = vld [vmem:[%s1252 + $0x128] sm:$0xff]
      %v1291 = vld [vmem:[%s1252 + $0x130] sm:$0xff]
      %v1292 = vld [vmem:[%s1252 + $0x138] sm:$0xff]
      %v1293 = vld [vmem:[%s1252 + $0x140] sm:$0xff]
      %v1294 = vld [vmem:[%s1252 + $0x148] sm:$0xff]
      %v1295 = vld [vmem:[%s1252 + $0x150] sm:$0xff]
      %v1296 = vld [vmem:[%s1252 + $0x158] sm:$0xff]
      %v1297 = vld [vmem:[%s1252 + $0x160] sm:$0xff]
      %v1298 = vld [vmem:[%s1252 + $0x168] sm:$0xff]
      %v1299 = vld [vmem:[%s1252 + $0x170] sm:$0xff]
      %v1300 = vld [vmem:[%s1252 + $0x178] sm:$0xff]
      %v1301 = vld [vmem:[%s1252 + $0x180] sm:$0xff]
      %v1302 = vld [vmem:[%s1252 + $0x188] sm:$0xff]
      %v1303 = vld [vmem:[%s1252 + $0x190] sm:$0xff]
      %v1304 = vld [vmem:[%s1252 + $0x198] sm:$0xff]
      %v1305 = vld [vmem:[%s1252 + $0x1a0] sm:$0xff]
      %v1306 = vld [vmem:[%s1252 + $0x1a8] sm:$0xff]
      %v1307 = vld [vmem:[%s1252 + $0x1b0] sm:$0xff]
      %v1308 = vld [vmem:[%s1252 + $0x1b8] sm:$0xff]
      %v1309 = vld [vmem:[%s1252 + $0x1c0] sm:$0xff]
      %v1310 = vld [vmem:[%s1252 + $0x1c8] sm:$0xff]
      %v1311 = vld [vmem:[%s1252 + $0x1d0] sm:$0xff]
      %v1312 = vld [vmem:[%s1252 + $0x1d8] sm:$0xff]
      %v1313 = vld [vmem:[%s1252 + $0x1e0] sm:$0xff]
      %v1314 = vld [vmem:[%s1252 + $0x1e8] sm:$0xff]
      %v1315 = vld [vmem:[%s1252 + $0x1f0] sm:$0xff]
      %v1316 = vld [vmem:[%s1252 + $0x1f8] sm:$0xff]
      %v1321 = vunpack.c.l.b16 %v1248
      %v1322 = vunpack.c.h.b16 %v1248
      %v1323 = vunpack.c.l.b16 %v1249
      %v1324 = vunpack.c.h.b16 %v1249
      %v1325 = vunpack.c.l.b16 %v1250
      %v1326 = vunpack.c.h.b16 %v1250
      %v1327 = vunpack.c.l.b16 %v1251
      %v1328 = vunpack.c.h.b16 %v1251
      %v1329 = vpack.c.b16 %v1325, %v1321
      %v1330 = vpack.c.b16 %v1326, %v1322
      %v1331 = vpack.c.b16 %v1327, %v1323
      %v1332 = vpack.c.b16 %v1328, %v1324
      %v1334 = vshrl.u32 %v1329, 16
      %v1336 = vrot.slane %v1334, 1
      %v1337 = vshll.u32 %v1329, 16
      %v1339 = vrot.slane %v1337, 2
      %v1340 = vor.u32 %v1336, %v1339
      %v1342 = vshrl.u32 %v1330, 16
      %v1344 = vrot.slane %v1342, 1
      %v1345 = vshll.u32 %v1330, 16
      %v1347 = vrot.slane %v1345, 2
      %v1348 = vor.u32 %v1344, %v1347
      %v1350 = vshrl.u32 %v1331, 16
      %v1352 = vrot.slane %v1350, 1
      %v1353 = vshll.u32 %v1331, 16
      %v1355 = vrot.slane %v1353, 2
      %v1356 = vor.u32 %v1352, %v1355
      %v1358 = vshrl.u32 %v1332, 16
      %v1360 = vrot.slane %v1358, 1
      %v1361 = vshll.u32 %v1332, 16
      %v1363 = vrot.slane %v1361, 2
      %v1364 = vor.u32 %v1360, %v1363
      %v1433 = vunpack.c.l.b16 %v1253
      %v1434 = vunpack.c.h.b16 %v1253
      %v1435 = vunpack.c.l.b16 %v1254
      %v1436 = vunpack.c.h.b16 %v1254
      %v1437 = vunpack.c.l.b16 %v1255
      %v1438 = vunpack.c.h.b16 %v1255
      %v1439 = vunpack.c.l.b16 %v1256
      %v1440 = vunpack.c.h.b16 %v1256
      %v1441 = vunpack.c.l.b16 %v1257
      %v1442 = vunpack.c.h.b16 %v1257
      %v1443 = vunpack.c.l.b16 %v1258
      %v1444 = vunpack.c.h.b16 %v1258
      %v1445 = vunpack.c.l.b16 %v1259
      %v1446 = vunpack.c.h.b16 %v1259
      %v1447 = vunpack.c.l.b16 %v1260
      %v1448 = vunpack.c.h.b16 %v1260
      %v1449 = vunpack.c.l.b16 %v1261
      %v1450 = vunpack.c.h.b16 %v1261
      %v1451 = vunpack.c.l.b16 %v1262
      %v1452 = vunpack.c.h.b16 %v1262
      %v1453 = vunpack.c.l.b16 %v1263
      %v1454 = vunpack.c.h.b16 %v1263
      %v1455 = vunpack.c.l.b16 %v1264
      %v1456 = vunpack.c.h.b16 %v1264
      %v1457 = vunpack.c.l.b16 %v1265
      %v1458 = vunpack.c.h.b16 %v1265
      %v1459 = vunpack.c.l.b16 %v1266
      %v1460 = vunpack.c.h.b16 %v1266
      %v1461 = vunpack.c.l.b16 %v1267
      %v1462 = vunpack.c.h.b16 %v1267
      %v1463 = vunpack.c.l.b16 %v1268
      %v1464 = vunpack.c.h.b16 %v1268
      %v1465 = vunpack.c.l.b16 %v1269
      %v1466 = vunpack.c.h.b16 %v1269
      %v1467 = vunpack.c.l.b16 %v1270
      %v1468 = vunpack.c.h.b16 %v1270
      %v1469 = vunpack.c.l.b16 %v1271
      %v1470 = vunpack.c.h.b16 %v1271
      %v1471 = vunpack.c.l.b16 %v1272
      %v1472 = vunpack.c.h.b16 %v1272
      %v1473 = vunpack.c.l.b16 %v1273
      %v1474 = vunpack.c.h.b16 %v1273
      %v1475 = vunpack.c.l.b16 %v1274
      %v1476 = vunpack.c.h.b16 %v1274
      %v1477 = vunpack.c.l.b16 %v1275
      %v1478 = vunpack.c.h.b16 %v1275
      %v1479 = vunpack.c.l.b16 %v1276
      %v1480 = vunpack.c.h.b16 %v1276
      %v1481 = vunpack.c.l.b16 %v1277
      %v1482 = vunpack.c.h.b16 %v1277
      %v1483 = vunpack.c.l.b16 %v1278
      %v1484 = vunpack.c.h.b16 %v1278
      %v1485 = vunpack.c.l.b16 %v1279
      %v1486 = vunpack.c.h.b16 %v1279
      %v1487 = vunpack.c.l.b16 %v1280
      %v1488 = vunpack.c.h.b16 %v1280
      %v1489 = vunpack.c.l.b16 %v1281
      %v1490 = vunpack.c.h.b16 %v1281
      %v1491 = vunpack.c.l.b16 %v1282
      %v1492 = vunpack.c.h.b16 %v1282
      %v1493 = vunpack.c.l.b16 %v1283
      %v1494 = vunpack.c.h.b16 %v1283
      %v1495 = vunpack.c.l.b16 %v1284
      %v1496 = vunpack.c.h.b16 %v1284
      %v1497 = vunpack.c.l.b16 %v1285
      %v1498 = vunpack.c.h.b16 %v1285
      %v1499 = vunpack.c.l.b16 %v1286
      %v1500 = vunpack.c.h.b16 %v1286
      %v1501 = vunpack.c.l.b16 %v1287
      %v1502 = vunpack.c.h.b16 %v1287
      %v1503 = vunpack.c.l.b16 %v1288
      %v1504 = vunpack.c.h.b16 %v1288
      %v1505 = vunpack.c.l.b16 %v1289
      %v1506 = vunpack.c.h.b16 %v1289
      %v1507 = vunpack.c.l.b16 %v1290
      %v1508 = vunpack.c.h.b16 %v1290
      %v1509 = vunpack.c.l.b16 %v1291
      %v1510 = vunpack.c.h.b16 %v1291
      %v1511 = vunpack.c.l.b16 %v1292
      %v1512 = vunpack.c.h.b16 %v1292
      %v1513 = vunpack.c.l.b16 %v1293
      %v1514 = vunpack.c.h.b16 %v1293
      %v1515 = vunpack.c.l.b16 %v1294
      %v1516 = vunpack.c.h.b16 %v1294
      %v1517 = vunpack.c.l.b16 %v1295
      %v1518 = vunpack.c.h.b16 %v1295
      %v1519 = vunpack.c.l.b16 %v1296
      %v1520 = vunpack.c.h.b16 %v1296
      %v1521 = vunpack.c.l.b16 %v1297
      %v1522 = vunpack.c.h.b16 %v1297
      %v1523 = vunpack.c.l.b16 %v1298
      %v1524 = vunpack.c.h.b16 %v1298
      %v1525 = vunpack.c.l.b16 %v1299
      %v1526 = vunpack.c.h.b16 %v1299
      %v1527 = vunpack.c.l.b16 %v1300
      %v1528 = vunpack.c.h.b16 %v1300
      %v1529 = vunpack.c.l.b16 %v1301
      %v1530 = vunpack.c.h.b16 %v1301
      %v1531 = vunpack.c.l.b16 %v1302
      %v1532 = vunpack.c.h.b16 %v1302
      %v1533 = vunpack.c.l.b16 %v1303
      %v1534 = vunpack.c.h.b16 %v1303
      %v1535 = vunpack.c.l.b16 %v1304
      %v1536 = vunpack.c.h.b16 %v1304
      %v1537 = vunpack.c.l.b16 %v1305
      %v1538 = vunpack.c.h.b16 %v1305
      %v1539 = vunpack.c.l.b16 %v1306
      %v1540 = vunpack.c.h.b16 %v1306
      %v1541 = vunpack.c.l.b16 %v1307
      %v1542 = vunpack.c.h.b16 %v1307
      %v1543 = vunpack.c.l.b16 %v1308
      %v1544 = vunpack.c.h.b16 %v1308
      %v1545 = vunpack.c.l.b16 %v1309
      %v1546 = vunpack.c.h.b16 %v1309
      %v1547 = vunpack.c.l.b16 %v1310
      %v1548 = vunpack.c.h.b16 %v1310
      %v1549 = vunpack.c.l.b16 %v1311
      %v1550 = vunpack.c.h.b16 %v1311
      %v1551 = vunpack.c.l.b16 %v1312
      %v1552 = vunpack.c.h.b16 %v1312
      %v1553 = vunpack.c.l.b16 %v1313
      %v1554 = vunpack.c.h.b16 %v1313
      %v1555 = vunpack.c.l.b16 %v1314
      %v1556 = vunpack.c.h.b16 %v1314
      %v1557 = vunpack.c.l.b16 %v1315
      %v1558 = vunpack.c.h.b16 %v1315
      %v1559 = vunpack.c.l.b16 %v1316
      %v1560 = vunpack.c.h.b16 %v1316
      %v1561 = vpack.c.b16 %v1435, %v1433
      %v1562 = vpack.c.b16 %v1436, %v1434
      %v1563 = vpack.c.b16 %v1439, %v1437
      %v1564 = vpack.c.b16 %v1440, %v1438
      %v1565 = vpack.c.b16 %v1443, %v1441
      %v1566 = vpack.c.b16 %v1444, %v1442
      %v1567 = vpack.c.b16 %v1447, %v1445
      %v1568 = vpack.c.b16 %v1448, %v1446
      %v1569 = vpack.c.b16 %v1451, %v1449
      %v1570 = vpack.c.b16 %v1452, %v1450
      %v1571 = vpack.c.b16 %v1455, %v1453
      %v1572 = vpack.c.b16 %v1456, %v1454
      %v1573 = vpack.c.b16 %v1459, %v1457
      %v1574 = vpack.c.b16 %v1460, %v1458
      %v1575 = vpack.c.b16 %v1463, %v1461
      %v1576 = vpack.c.b16 %v1464, %v1462
      %v1577 = vpack.c.b16 %v1467, %v1465
      %v1578 = vpack.c.b16 %v1468, %v1466
      %v1579 = vpack.c.b16 %v1471, %v1469
      %v1580 = vpack.c.b16 %v1472, %v1470
      %v1581 = vpack.c.b16 %v1475, %v1473
      %v1582 = vpack.c.b16 %v1476, %v1474
      %v1583 = vpack.c.b16 %v1479, %v1477
      %v1584 = vpack.c.b16 %v1480, %v1478
      %v1585 = vpack.c.b16 %v1483, %v1481
      %v1586 = vpack.c.b16 %v1484, %v1482
      %v1587 = vpack.c.b16 %v1487, %v1485
      %v1588 = vpack.c.b16 %v1488, %v1486
      %v1589 = vpack.c.b16 %v1491, %v1489
      %v1590 = vpack.c.b16 %v1492, %v1490
      %v1591 = vpack.c.b16 %v1495, %v1493
      %v1592 = vpack.c.b16 %v1496, %v1494
      %v1593 = vpack.c.b16 %v1499, %v1497
      %v1594 = vpack.c.b16 %v1500, %v1498
      %v1595 = vpack.c.b16 %v1503, %v1501
      %v1596 = vpack.c.b16 %v1504, %v1502
      %v1597 = vpack.c.b16 %v1507, %v1505
      %v1598 = vpack.c.b16 %v1508, %v1506
      %v1599 = vpack.c.b16 %v1511, %v1509
      %v1600 = vpack.c.b16 %v1512, %v1510
      %v1601 = vpack.c.b16 %v1515, %v1513
      %v1602 = vpack.c.b16 %v1516, %v1514
      %v1603 = vpack.c.b16 %v1519, %v1517
      %v1604 = vpack.c.b16 %v1520, %v1518
      %v1605 = vpack.c.b16 %v1523, %v1521
      %v1606 = vpack.c.b16 %v1524, %v1522
      %v1607 = vpack.c.b16 %v1527, %v1525
      %v1608 = vpack.c.b16 %v1528, %v1526
      %v1609 = vpack.c.b16 %v1531, %v1529
      %v1610 = vpack.c.b16 %v1532, %v1530
      %v1611 = vpack.c.b16 %v1535, %v1533
      %v1612 = vpack.c.b16 %v1536, %v1534
      %v1613 = vpack.c.b16 %v1539, %v1537
      %v1614 = vpack.c.b16 %v1540, %v1538
      %v1615 = vpack.c.b16 %v1543, %v1541
      %v1616 = vpack.c.b16 %v1544, %v1542
      %v1617 = vpack.c.b16 %v1547, %v1545
      %v1618 = vpack.c.b16 %v1548, %v1546
      %v1619 = vpack.c.b16 %v1551, %v1549
      %v1620 = vpack.c.b16 %v1552, %v1550
      %v1621 = vpack.c.b16 %v1555, %v1553
      %v1622 = vpack.c.b16 %v1556, %v1554
      %v1623 = vpack.c.b16 %v1559, %v1557
      %v1624 = vpack.c.b16 %v1560, %v1558
      %1689 = vmatpush.bf16.msra.mxu0 %v1575
      %1690 = vmatpush.bf16.msra.mxu0 %v1573
      %1691 = vmatpush.bf16.msra.mxu0 %v1571
      %1692 = vmatpush.bf16.msra.mxu0 %v1569
      %1693 = vmatpush.bf16.msra.mxu0 %v1567
      %1694 = vmatpush.bf16.msra.mxu0 %v1565
      %1695 = vmatpush.bf16.msra.mxu0 %v1563
      %1696 = vmatpush.bf16.msra.mxu0 %v1561
      %1697 = vmatmul.bf16.gmra.mxu0 %v1340
      %v1698 = vpop.f32.mrf.mxu0
      %v1699 = vadd.f32 0.0, %v1698
      %v1700 = vpop.f32.mrf.mxu0
      %1701 = vdwg.mxu0
      %1702 = vmatpush.bf16.msra.mxu0 %v1591
      %1703 = vmatpush.bf16.msra.mxu0 %v1589
      %1704 = vmatpush.bf16.msra.mxu0 %v1587
      %1705 = vmatpush.bf16.msra.mxu0 %v1585
      %1706 = vmatpush.bf16.msra.mxu0 %v1583
      %1707 = vmatpush.bf16.msra.mxu0 %v1581
      %1708 = vmatpush.bf16.msra.mxu0 %v1579
      %1709 = vmatpush.bf16.msra.mxu0 %v1577
      %1710 = vmatmul.bf16.gmra.mxu0 %v1348
      %v1711 = vpop.f32.mrf.mxu0
      %v1712 = vadd.f32 %v1699, %v1711
      %v1713 = vpop.f32.mrf.mxu0
      %1714 = vdwg.mxu0
      %1715 = vmatpush.bf16.msra.mxu0 %v1607
      %1716 = vmatpush.bf16.msra.mxu0 %v1605
      %1717 = vmatpush.bf16.msra.mxu0 %v1603
      %1718 = vmatpush.bf16.msra.mxu0 %v1601
      %1719 = vmatpush.bf16.msra.mxu0 %v1599
      %1720 = vmatpush.bf16.msra.mxu0 %v1597
      %1721 = vmatpush.bf16.msra.mxu0 %v1595
      %1722 = vmatpush.bf16.msra.mxu0 %v1593
      %1723 = vmatmul.bf16.gmra.mxu0 %v1356
      %v1724 = vpop.f32.mrf.mxu0
      %v1725 = vadd.f32 %v1712, %v1724
      %v1726 = vpop.f32.mrf.mxu0
      %1727 = vdwg.mxu0
      %1728 = vmatpush.bf16.msra.mxu0 %v1623
      %1729 = vmatpush.bf16.msra.mxu0 %v1621
      %1730 = vmatpush.bf16.msra.mxu0 %v1619
      %1731 = vmatpush.bf16.msra.mxu0 %v1617
      %1732 = vmatpush.bf16.msra.mxu0 %v1615
      %1733 = vmatpush.bf16.msra.mxu0 %v1613
      %1734 = vmatpush.bf16.msra.mxu0 %v1611
      %1735 = vmatpush.bf16.msra.mxu0 %v1609
      %1736 = vmatmul.bf16.gmra.mxu0 %v1364
      %v1737 = vpop.f32.mrf.mxu0
      %v1738 = vadd.f32 %v1725, %v1737
      %v1739 = vpop.f32.mrf.mxu0
      %1740 = vdwg.mxu0
      %1741 = vmatpush.bf16.msra.mxu0 %v1576
      %1742 = vmatpush.bf16.msra.mxu0 %v1574
      %1743 = vmatpush.bf16.msra.mxu0 %v1572
      %1744 = vmatpush.bf16.msra.mxu0 %v1570
      %1745 = vmatpush.bf16.msra.mxu0 %v1568
      %1746 = vmatpush.bf16.msra.mxu0 %v1566
      %1747 = vmatpush.bf16.msra.mxu0 %v1564
      %1748 = vmatpush.bf16.msra.mxu0 %v1562
      %1749 = vmatmul.bf16.gmra.mxu0 %v1340
      %v1750 = vpop.f32.mrf.mxu0
      %v1751 = vadd.f32 0.0, %v1750
      %v1752 = vpop.f32.mrf.mxu0
      %1753 = vdwg.mxu0
      %1754 = vmatpush.bf16.msra.mxu0 %v1592
      %1755 = vmatpush.bf16.msra.mxu0 %v1590
      %1756 = vmatpush.bf16.msra.mxu0 %v1588
      %1757 = vmatpush.bf16.msra.mxu0 %v1586
      %1758 = vmatpush.bf16.msra.mxu0 %v1584
      %1759 = vmatpush.bf16.msra.mxu0 %v1582
      %1760 = vmatpush.bf16.msra.mxu0 %v1580
      %1761 = vmatpush.bf16.msra.mxu0 %v1578
      %1762 = vmatmul.bf16.gmra.mxu0 %v1348
      %v1763 = vpop.f32.mrf.mxu0
      %v1764 = vadd.f32 %v1751, %v1763
      %v1765 = vpop.f32.mrf.mxu0
      %1766 = vdwg.mxu0
      %1767 = vmatpush.bf16.msra.mxu0 %v1608
      %1768 = vmatpush.bf16.msra.mxu0 %v1606
      %1769 = vmatpush.bf16.msra.mxu0 %v1604
      %1770 = vmatpush.bf16.msra.mxu0 %v1602
      %1771 = vmatpush.bf16.msra.mxu0 %v1600
      %1772 = vmatpush.bf16.msra.mxu0 %v1598
      %1773 = vmatpush.bf16.msra.mxu0 %v1596
      %1774 = vmatpush.bf16.msra.mxu0 %v1594
      %1775 = vmatmul.bf16.gmra.mxu0 %v1356
      %v1776 = vpop.f32.mrf.mxu0
      %v1777 = vadd.f32 %v1764, %v1776
      %v1778 = vpop.f32.mrf.mxu0
      %1779 = vdwg.mxu0
      %1780 = vmatpush.bf16.msra.mxu0 %v1624
      %1781 = vmatpush.bf16.msra.mxu0 %v1622
      %1782 = vmatpush.bf16.msra.mxu0 %v1620
      %1783 = vmatpush.bf16.msra.mxu0 %v1618
      %1784 = vmatpush.bf16.msra.mxu0 %v1616
      %1785 = vmatpush.bf16.msra.mxu0 %v1614
      %1786 = vmatpush.bf16.msra.mxu0 %v1612
      %1787 = vmatpush.bf16.msra.mxu0 %v1610
      %1788 = vmatmul.bf16.gmra.mxu0 %v1364
      %v1789 = vpop.f32.mrf.mxu0
      %v1790 = vadd.f32 %v1777, %v1789
      %v1791 = vpop.f32.mrf.mxu0
      %1792 = vdwg.mxu0
      %v1793 = vadd.f32 %v1193, %v1738
      %v1794 = vadd.f32 %v1245, %v1790
      %v1795 = vld [vmem:[%s200] sm:$0xcc]
      %v1796 = vld [vmem:[%s200 + $0x8] sm:$0xcc]
      %s1797 = scalar_lea.vmem %s1, 1536
      %v1798 = vld [vmem:[%s1797] sm:$0xff]
      %v1799 = vld [vmem:[%s1797 + $0x8] sm:$0xff]
      %v1800 = vld [vmem:[%s1797 + $0x10] sm:$0xff]
      %v1801 = vld [vmem:[%s1797 + $0x18] sm:$0xff]
      %v1802 = vld [vmem:[%s1797 + $0x20] sm:$0xff]
      %v1803 = vld [vmem:[%s1797 + $0x28] sm:$0xff]
      %v1804 = vld [vmem:[%s1797 + $0x30] sm:$0xff]
      %v1805 = vld [vmem:[%s1797 + $0x38] sm:$0xff]
      %v1806 = vld [vmem:[%s1797 + $0x40] sm:$0xff]
      %v1807 = vld [vmem:[%s1797 + $0x48] sm:$0xff]
      %v1808 = vld [vmem:[%s1797 + $0x50] sm:$0xff]
      %v1809 = vld [vmem:[%s1797 + $0x58] sm:$0xff]
      %v1810 = vld [vmem:[%s1797 + $0x60] sm:$0xff]
      %v1811 = vld [vmem:[%s1797 + $0x68] sm:$0xff]
      %v1812 = vld [vmem:[%s1797 + $0x70] sm:$0xff]
      %v1813 = vld [vmem:[%s1797 + $0x78] sm:$0xff]
      %v1814 = vld [vmem:[%s1797 + $0x80] sm:$0xff]
      %v1815 = vld [vmem:[%s1797 + $0x88] sm:$0xff]
      %v1816 = vld [vmem:[%s1797 + $0x90] sm:$0xff]
      %v1817 = vld [vmem:[%s1797 + $0x98] sm:$0xff]
      %v1818 = vld [vmem:[%s1797 + $0xa0] sm:$0xff]
      %v1819 = vld [vmem:[%s1797 + $0xa8] sm:$0xff]
      %v1820 = vld [vmem:[%s1797 + $0xb0] sm:$0xff]
      %v1821 = vld [vmem:[%s1797 + $0xb8] sm:$0xff]
      %v1822 = vld [vmem:[%s1797 + $0xc0] sm:$0xff]
      %v1823 = vld [vmem:[%s1797 + $0xc8] sm:$0xff]
      %v1824 = vld [vmem:[%s1797 + $0xd0] sm:$0xff]
      %v1825 = vld [vmem:[%s1797 + $0xd8] sm:$0xff]
      %v1826 = vld [vmem:[%s1797 + $0xe0] sm:$0xff]
      %v1827 = vld [vmem:[%s1797 + $0xe8] sm:$0xff]
      %v1828 = vld [vmem:[%s1797 + $0xf0] sm:$0xff]
      %v1829 = vld [vmem:[%s1797 + $0xf8] sm:$0xff]
      %v1830 = vld [vmem:[%s1797 + $0x100] sm:$0xff]
      %v1831 = vld [vmem:[%s1797 + $0x108] sm:$0xff]
      %v1832 = vld [vmem:[%s1797 + $0x110] sm:$0xff]
      %v1833 = vld [vmem:[%s1797 + $0x118] sm:$0xff]
      %v1834 = vld [vmem:[%s1797 + $0x120] sm:$0xff]
      %v1835 = vld [vmem:[%s1797 + $0x128] sm:$0xff]
      %v1836 = vld [vmem:[%s1797 + $0x130] sm:$0xff]
      %v1837 = vld [vmem:[%s1797 + $0x138] sm:$0xff]
      %v1838 = vld [vmem:[%s1797 + $0x140] sm:$0xff]
      %v1839 = vld [vmem:[%s1797 + $0x148] sm:$0xff]
      %v1840 = vld [vmem:[%s1797 + $0x150] sm:$0xff]
      %v1841 = vld [vmem:[%s1797 + $0x158] sm:$0xff]
      %v1842 = vld [vmem:[%s1797 + $0x160] sm:$0xff]
      %v1843 = vld [vmem:[%s1797 + $0x168] sm:$0xff]
      %v1844 = vld [vmem:[%s1797 + $0x170] sm:$0xff]
      %v1845 = vld [vmem:[%s1797 + $0x178] sm:$0xff]
      %v1846 = vld [vmem:[%s1797 + $0x180] sm:$0xff]
      %v1847 = vld [vmem:[%s1797 + $0x188] sm:$0xff]
      %v1848 = vld [vmem:[%s1797 + $0x190] sm:$0xff]
      %v1849 = vld [vmem:[%s1797 + $0x198] sm:$0xff]
      %v1850 = vld [vmem:[%s1797 + $0x1a0] sm:$0xff]
      %v1851 = vld [vmem:[%s1797 + $0x1a8] sm:$0xff]
      %v1852 = vld [vmem:[%s1797 + $0x1b0] sm:$0xff]
      %v1853 = vld [vmem:[%s1797 + $0x1b8] sm:$0xff]
      %v1854 = vld [vmem:[%s1797 + $0x1c0] sm:$0xff]
      %v1855 = vld [vmem:[%s1797 + $0x1c8] sm:$0xff]
      %v1856 = vld [vmem:[%s1797 + $0x1d0] sm:$0xff]
      %v1857 = vld [vmem:[%s1797 + $0x1d8] sm:$0xff]
      %v1858 = vld [vmem:[%s1797 + $0x1e0] sm:$0xff]
      %v1859 = vld [vmem:[%s1797 + $0x1e8] sm:$0xff]
      %v1860 = vld [vmem:[%s1797 + $0x1f0] sm:$0xff]
      %v1861 = vld [vmem:[%s1797 + $0x1f8] sm:$0xff]
      %v1864 = vunpack.c.l.b16 %v1795
      %v1865 = vunpack.c.h.b16 %v1795
      %v1866 = vunpack.c.l.b16 %v1796
      %v1867 = vunpack.c.h.b16 %v1796
      %v1868 = vpack.c.b16 %v1325, %v1864
      %v1869 = vpack.c.b16 %v1326, %v1865
      %v1870 = vpack.c.b16 %v1327, %v1866
      %v1871 = vpack.c.b16 %v1328, %v1867
      %v1872 = vrot.slane %v1868, 2
      %v1873 = vrot.slane %v1869, 2
      %v1874 = vrot.slane %v1870, 2
      %v1875 = vrot.slane %v1871, 2
      %v1944 = vunpack.c.l.b16 %v1798
      %v1945 = vunpack.c.h.b16 %v1798
      %v1946 = vunpack.c.l.b16 %v1799
      %v1947 = vunpack.c.h.b16 %v1799
      %v1948 = vunpack.c.l.b16 %v1800
      %v1949 = vunpack.c.h.b16 %v1800
      %v1950 = vunpack.c.l.b16 %v1801
      %v1951 = vunpack.c.h.b16 %v1801
      %v1952 = vunpack.c.l.b16 %v1802
      %v1953 = vunpack.c.h.b16 %v1802
      %v1954 = vunpack.c.l.b16 %v1803
      %v1955 = vunpack.c.h.b16 %v1803
      %v1956 = vunpack.c.l.b16 %v1804
      %v1957 = vunpack.c.h.b16 %v1804
      %v1958 = vunpack.c.l.b16 %v1805
      %v1959 = vunpack.c.h.b16 %v1805
      %v1960 = vunpack.c.l.b16 %v1806
      %v1961 = vunpack.c.h.b16 %v1806
      %v1962 = vunpack.c.l.b16 %v1807
      %v1963 = vunpack.c.h.b16 %v1807
      %v1964 = vunpack.c.l.b16 %v1808
      %v1965 = vunpack.c.h.b16 %v1808
      %v1966 = vunpack.c.l.b16 %v1809
      %v1967 = vunpack.c.h.b16 %v1809
      %v1968 = vunpack.c.l.b16 %v1810
      %v1969 = vunpack.c.h.b16 %v1810
      %v1970 = vunpack.c.l.b16 %v1811
      %v1971 = vunpack.c.h.b16 %v1811
      %v1972 = vunpack.c.l.b16 %v1812
      %v1973 = vunpack.c.h.b16 %v1812
      %v1974 = vunpack.c.l.b16 %v1813
      %v1975 = vunpack.c.h.b16 %v1813
      %v1976 = vunpack.c.l.b16 %v1814
      %v1977 = vunpack.c.h.b16 %v1814
      %v1978 = vunpack.c.l.b16 %v1815
      %v1979 = vunpack.c.h.b16 %v1815
      %v1980 = vunpack.c.l.b16 %v1816
      %v1981 = vunpack.c.h.b16 %v1816
      %v1982 = vunpack.c.l.b16 %v1817
      %v1983 = vunpack.c.h.b16 %v1817
      %v1984 = vunpack.c.l.b16 %v1818
      %v1985 = vunpack.c.h.b16 %v1818
      %v1986 = vunpack.c.l.b16 %v1819
      %v1987 = vunpack.c.h.b16 %v1819
      %v1988 = vunpack.c.l.b16 %v1820
      %v1989 = vunpack.c.h.b16 %v1820
      %v1990 = vunpack.c.l.b16 %v1821
      %v1991 = vunpack.c.h.b16 %v1821
      %v1992 = vunpack.c.l.b16 %v1822
      %v1993 = vunpack.c.h.b16 %v1822
      %v1994 = vunpack.c.l.b16 %v1823
      %v1995 = vunpack.c.h.b16 %v1823
      %v1996 = vunpack.c.l.b16 %v1824
      %v1997 = vunpack.c.h.b16 %v1824
      %v1998 = vunpack.c.l.b16 %v1825
      %v1999 = vunpack.c.h.b16 %v1825
      %v2000 = vunpack.c.l.b16 %v1826
      %v2001 = vunpack.c.h.b16 %v1826
      %v2002 = vunpack.c.l.b16 %v1827
      %v2003 = vunpack.c.h.b16 %v1827
      %v2004 = vunpack.c.l.b16 %v1828
      %v2005 = vunpack.c.h.b16 %v1828
      %v2006 = vunpack.c.l.b16 %v1829
      %v2007 = vunpack.c.h.b16 %v1829
      %v2008 = vunpack.c.l.b16 %v1830
      %v2009 = vunpack.c.h.b16 %v1830
      %v2010 = vunpack.c.l.b16 %v1831
      %v2011 = vunpack.c.h.b16 %v1831
      %v2012 = vunpack.c.l.b16 %v1832
      %v2013 = vunpack.c.h.b16 %v1832
      %v2014 = vunpack.c.l.b16 %v1833
      %v2015 = vunpack.c.h.b16 %v1833
      %v2016 = vunpack.c.l.b16 %v1834
      %v2017 = vunpack.c.h.b16 %v1834
      %v2018 = vunpack.c.l.b16 %v1835
      %v2019 = vunpack.c.h.b16 %v1835
      %v2020 = vunpack.c.l.b16 %v1836
      %v2021 = vunpack.c.h.b16 %v1836
      %v2022 = vunpack.c.l.b16 %v1837
      %v2023 = vunpack.c.h.b16 %v1837
      %v2024 = vunpack.c.l.b16 %v1838
      %v2025 = vunpack.c.h.b16 %v1838
      %v2026 = vunpack.c.l.b16 %v1839
      %v2027 = vunpack.c.h.b16 %v1839
      %v2028 = vunpack.c.l.b16 %v1840
      %v2029 = vunpack.c.h.b16 %v1840
      %v2030 = vunpack.c.l.b16 %v1841
      %v2031 = vunpack.c.h.b16 %v1841
      %v2032 = vunpack.c.l.b16 %v1842
      %v2033 = vunpack.c.h.b16 %v1842
      %v2034 = vunpack.c.l.b16 %v1843
      %v2035 = vunpack.c.h.b16 %v1843
      %v2036 = vunpack.c.l.b16 %v1844
      %v2037 = vunpack.c.h.b16 %v1844
      %v2038 = vunpack.c.l.b16 %v1845
      %v2039 = vunpack.c.h.b16 %v1845
      %v2040 = vunpack.c.l.b16 %v1846
      %v2041 = vunpack.c.h.b16 %v1846
      %v2042 = vunpack.c.l.b16 %v1847
      %v2043 = vunpack.c.h.b16 %v1847
      %v2044 = vunpack.c.l.b16 %v1848
      %v2045 = vunpack.c.h.b16 %v1848
      %v2046 = vunpack.c.l.b16 %v1849
      %v2047 = vunpack.c.h.b16 %v1849
      %v2048 = vunpack.c.l.b16 %v1850
      %v2049 = vunpack.c.h.b16 %v1850
      %v2050 = vunpack.c.l.b16 %v1851
      %v2051 = vunpack.c.h.b16 %v1851
      %v2052 = vunpack.c.l.b16 %v1852
      %v2053 = vunpack.c.h.b16 %v1852
      %v2054 = vunpack.c.l.b16 %v1853
      %v2055 = vunpack.c.h.b16 %v1853
      %v2056 = vunpack.c.l.b16 %v1854
      %v2057 = vunpack.c.h.b16 %v1854
      %v2058 = vunpack.c.l.b16 %v1855
      %v2059 = vunpack.c.h.b16 %v1855
      %v2060 = vunpack.c.l.b16 %v1856
      %v2061 = vunpack.c.h.b16 %v1856
      %v2062 = vunpack.c.l.b16 %v1857
      %v2063 = vunpack.c.h.b16 %v1857
      %v2064 = vunpack.c.l.b16 %v1858
      %v2065 = vunpack.c.h.b16 %v1858
      %v2066 = vunpack.c.l.b16 %v1859
      %v2067 = vunpack.c.h.b16 %v1859
      %v2068 = vunpack.c.l.b16 %v1860
      %v2069 = vunpack.c.h.b16 %v1860
      %v2070 = vunpack.c.l.b16 %v1861
      %v2071 = vunpack.c.h.b16 %v1861
      %v2072 = vpack.c.b16 %v1946, %v1944
      %v2073 = vpack.c.b16 %v1947, %v1945
      %v2074 = vpack.c.b16 %v1950, %v1948
      %v2075 = vpack.c.b16 %v1951, %v1949
      %v2076 = vpack.c.b16 %v1954, %v1952
      %v2077 = vpack.c.b16 %v1955, %v1953
      %v2078 = vpack.c.b16 %v1958, %v1956
      %v2079 = vpack.c.b16 %v1959, %v1957
      %v2080 = vpack.c.b16 %v1962, %v1960
      %v2081 = vpack.c.b16 %v1963, %v1961
      %v2082 = vpack.c.b16 %v1966, %v1964
      %v2083 = vpack.c.b16 %v1967, %v1965
      %v2084 = vpack.c.b16 %v1970, %v1968
      %v2085 = vpack.c.b16 %v1971, %v1969
      %v2086 = vpack.c.b16 %v1974, %v1972
      %v2087 = vpack.c.b16 %v1975, %v1973
      %v2088 = vpack.c.b16 %v1978, %v1976
      %v2089 = vpack.c.b16 %v1979, %v1977
      %v2090 = vpack.c.b16 %v1982, %v1980
      %v2091 = vpack.c.b16 %v1983, %v1981
      %v2092 = vpack.c.b16 %v1986, %v1984
      %v2093 = vpack.c.b16 %v1987, %v1985
      %v2094 = vpack.c.b16 %v1990, %v1988
      %v2095 = vpack.c.b16 %v1991, %v1989
      %v2096 = vpack.c.b16 %v1994, %v1992
      %v2097 = vpack.c.b16 %v1995, %v1993
      %v2098 = vpack.c.b16 %v1998, %v1996
      %v2099 = vpack.c.b16 %v1999, %v1997
      %v2100 = vpack.c.b16 %v2002, %v2000
      %v2101 = vpack.c.b16 %v2003, %v2001
      %v2102 = vpack.c.b16 %v2006, %v2004
      %v2103 = vpack.c.b16 %v2007, %v2005
      %v2104 = vpack.c.b16 %v2010, %v2008
      %v2105 = vpack.c.b16 %v2011, %v2009
      %v2106 = vpack.c.b16 %v2014, %v2012
      %v2107 = vpack.c.b16 %v2015, %v2013
      %v2108 = vpack.c.b16 %v2018, %v2016
      %v2109 = vpack.c.b16 %v2019, %v2017
      %v2110 = vpack.c.b16 %v2022, %v2020
      %v2111 = vpack.c.b16 %v2023, %v2021
      %v2112 = vpack.c.b16 %v2026, %v2024
      %v2113 = vpack.c.b16 %v2027, %v2025
      %v2114 = vpack.c.b16 %v2030, %v2028
      %v2115 = vpack.c.b16 %v2031, %v2029
      %v2116 = vpack.c.b16 %v2034, %v2032
      %v2117 = vpack.c.b16 %v2035, %v2033
      %v2118 = vpack.c.b16 %v2038, %v2036
      %v2119 = vpack.c.b16 %v2039, %v2037
      %v2120 = vpack.c.b16 %v2042, %v2040
      %v2121 = vpack.c.b16 %v2043, %v2041
      %v2122 = vpack.c.b16 %v2046, %v2044
      %v2123 = vpack.c.b16 %v2047, %v2045
      %v2124 = vpack.c.b16 %v2050, %v2048
      %v2125 = vpack.c.b16 %v2051, %v2049
      %v2126 = vpack.c.b16 %v2054, %v2052
      %v2127 = vpack.c.b16 %v2055, %v2053
      %v2128 = vpack.c.b16 %v2058, %v2056
      %v2129 = vpack.c.b16 %v2059, %v2057
      %v2130 = vpack.c.b16 %v2062, %v2060
      %v2131 = vpack.c.b16 %v2063, %v2061
      %v2132 = vpack.c.b16 %v2066, %v2064
      %v2133 = vpack.c.b16 %v2067, %v2065
      %v2134 = vpack.c.b16 %v2070, %v2068
      %v2135 = vpack.c.b16 %v2071, %v2069
      %2200 = vmatpush.bf16.msra.mxu0 %v2086
      %2201 = vmatpush.bf16.msra.mxu0 %v2084
      %2202 = vmatpush.bf16.msra.mxu0 %v2082
      %2203 = vmatpush.bf16.msra.mxu0 %v2080
      %2204 = vmatpush.bf16.msra.mxu0 %v2078
      %2205 = vmatpush.bf16.msra.mxu0 %v2076
      %2206 = vmatpush.bf16.msra.mxu0 %v2074
      %2207 = vmatpush.bf16.msra.mxu0 %v2072
      %2208 = vmatmul.bf16.gmra.mxu0 %v1872
      %v2209 = vpop.f32.mrf.mxu0
      %v2210 = vadd.f32 0.0, %v2209
      %v2211 = vpop.f32.mrf.mxu0
      %2212 = vdwg.mxu0
      %2213 = vmatpush.bf16.msra.mxu0 %v2102
      %2214 = vmatpush.bf16.msra.mxu0 %v2100
      %2215 = vmatpush.bf16.msra.mxu0 %v2098
      %2216 = vmatpush.bf16.msra.mxu0 %v2096
      %2217 = vmatpush.bf16.msra.mxu0 %v2094
      %2218 = vmatpush.bf16.msra.mxu0 %v2092
      %2219 = vmatpush.bf16.msra.mxu0 %v2090
      %2220 = vmatpush.bf16.msra.mxu0 %v2088
      %2221 = vmatmul.bf16.gmra.mxu0 %v1873
      %v2222 = vpop.f32.mrf.mxu0
      %v2223 = vadd.f32 %v2210, %v2222
      %v2224 = vpop.f32.mrf.mxu0
      %2225 = vdwg.mxu0
      %2226 = vmatpush.bf16.msra.mxu0 %v2118
      %2227 = vmatpush.bf16.msra.mxu0 %v2116
      %2228 = vmatpush.bf16.msra.mxu0 %v2114
      %2229 = vmatpush.bf16.msra.mxu0 %v2112
      %2230 = vmatpush.bf16.msra.mxu0 %v2110
      %2231 = vmatpush.bf16.msra.mxu0 %v2108
      %2232 = vmatpush.bf16.msra.mxu0 %v2106
      %2233 = vmatpush.bf16.msra.mxu0 %v2104
      %2234 = vmatmul.bf16.gmra.mxu0 %v1874
      %v2235 = vpop.f32.mrf.mxu0
      %v2236 = vadd.f32 %v2223, %v2235
      %v2237 = vpop.f32.mrf.mxu0
      %2238 = vdwg.mxu0
      %2239 = vmatpush.bf16.msra.mxu0 %v2134
      %2240 = vmatpush.bf16.msra.mxu0 %v2132
      %2241 = vmatpush.bf16.msra.mxu0 %v2130
      %2242 = vmatpush.bf16.msra.mxu0 %v2128
      %2243 = vmatpush.bf16.msra.mxu0 %v2126
      %2244 = vmatpush.bf16.msra.mxu0 %v2124
      %2245 = vmatpush.bf16.msra.mxu0 %v2122
      %2246 = vmatpush.bf16.msra.mxu0 %v2120
      %2247 = vmatmul.bf16.gmra.mxu0 %v1875
      %v2248 = vpop.f32.mrf.mxu0
      %v2249 = vadd.f32 %v2236, %v2248
      %v2250 = vpop.f32.mrf.mxu0
      %2251 = vdwg.mxu0
      %2252 = vmatpush.bf16.msra.mxu0 %v2087
      %2253 = vmatpush.bf16.msra.mxu0 %v2085
      %2254 = vmatpush.bf16.msra.mxu0 %v2083
      %2255 = vmatpush.bf16.msra.mxu0 %v2081
      %2256 = vmatpush.bf16.msra.mxu0 %v2079
      %2257 = vmatpush.bf16.msra.mxu0 %v2077
      %2258 = vmatpush.bf16.msra.mxu0 %v2075
      %2259 = vmatpush.bf16.msra.mxu0 %v2073
      %2260 = vmatmul.bf16.gmra.mxu0 %v1872
      %v2261 = vpop.f32.mrf.mxu0
      %v2262 = vadd.f32 0.0, %v2261
      %v2263 = vpop.f32.mrf.mxu0
      %2264 = vdwg.mxu0
      %2265 = vmatpush.bf16.msra.mxu0 %v2103
      %2266 = vmatpush.bf16.msra.mxu0 %v2101
      %2267 = vmatpush.bf16.msra.mxu0 %v2099
      %2268 = vmatpush.bf16.msra.mxu0 %v2097
      %2269 = vmatpush.bf16.msra.mxu0 %v2095
      %2270 = vmatpush.bf16.msra.mxu0 %v2093
      %2271 = vmatpush.bf16.msra.mxu0 %v2091
      %2272 = vmatpush.bf16.msra.mxu0 %v2089
      %2273 = vmatmul.bf16.gmra.mxu0 %v1873
      %v2274 = vpop.f32.mrf.mxu0
      %v2275 = vadd.f32 %v2262, %v2274
      %v2276 = vpop.f32.mrf.mxu0
      %2277 = vdwg.mxu0
      %2278 = vmatpush.bf16.msra.mxu0 %v2119
      %2279 = vmatpush.bf16.msra.mxu0 %v2117
      %2280 = vmatpush.bf16.msra.mxu0 %v2115
      %2281 = vmatpush.bf16.msra.mxu0 %v2113
      %2282 = vmatpush.bf16.msra.mxu0 %v2111
      %2283 = vmatpush.bf16.msra.mxu0 %v2109
      %2284 = vmatpush.bf16.msra.mxu0 %v2107
      %2285 = vmatpush.bf16.msra.mxu0 %v2105
      %2286 = vmatmul.bf16.gmra.mxu0 %v1874
      %v2287 = vpop.f32.mrf.mxu0
      %v2288 = vadd.f32 %v2275, %v2287
      %v2289 = vpop.f32.mrf.mxu0
      %2290 = vdwg.mxu0
      %2291 = vmatpush.bf16.msra.mxu0 %v2135
      %2292 = vmatpush.bf16.msra.mxu0 %v2133
      %2293 = vmatpush.bf16.msra.mxu0 %v2131
      %2294 = vmatpush.bf16.msra.mxu0 %v2129
      %2295 = vmatpush.bf16.msra.mxu0 %v2127
      %2296 = vmatpush.bf16.msra.mxu0 %v2125
      %2297 = vmatpush.bf16.msra.mxu0 %v2123
      %2298 = vmatpush.bf16.msra.mxu0 %v2121
      %2299 = vmatmul.bf16.gmra.mxu0 %v1875
      %v2300 = vpop.f32.mrf.mxu0
      %v2301 = vadd.f32 %v2288, %v2300
      %v2302 = vpop.f32.mrf.mxu0
      %2303 = vdwg.mxu0
      %v2304 = vadd.f32 %v1793, %v2249
      %v2305 = vadd.f32 %v1794, %v2301
      %v2306 = vld [vmem:[%s2] sm:$0x3]
      %v2308 = vperm.slane %v2306, 0
      %v2309 = vperm.slane %v2306, 1
      %v2312 = vadd.f32 %v2304, %v2308
      %v2313 = vadd.f32 %v2305, %v2309
      %v2314 = vlaneseq
      %v2315 = vshrl.u32 %v2314, 7
      %vm2316 = vcmp.lt.s32.totalorder %v2315, 0
      %v2317 = vsub.s32 0, %v2315
      %v2318 = vsel %vm2316, %v2317, %v2315
      %v2319 = vand.u32 %v2318, 65535
      %v2320 = vshrl.u32 %v2318, 16
      %v2322 = vmul.u32 %v2319, 43691
      %v2323 = vmul.u32 %v2319, 43690
      %v2324 = vmul.u32 %v2320, 43691
      %v2325 = vmul.u32 %v2320, 43690
      %v2326 = vshll.u32 %v2323, 16
      %v2327 = vshrl.u32 %v2323, 16
      %v2328 = vshll.u32 %v2324, 16
      %v2329 = vshrl.u32 %v2324, 16
      %vm2330 = vc.u32 %v2322, %v2326
      %v2331 = vsel %vm2330, 1, 0
      %v2332 = vadd.s32 %v2322, %v2326
      %v2333 = vadd.s32 %v2325, %v2331
      %vm2334 = vc.u32 %v2332, %v2328
      %v2335 = vsel %vm2334, 1, 0
      %v2336 = vadd.s32 %v2332, %v2328
      %v2337 = vadd.s32 %v2333, %v2335
      %v2338 = vadd.s32 %v2337, %v2327
      %v2339 = vadd.s32 %v2338, %v2329
      %v2340 = vshrl.u32 %v2339, 1
      %v2341 = vmul.u32 %v2340, 3
      %v2342 = vsub.s32 %v2318, %v2341
      %v2343 = vsub.s32 0, %v2342
      %v2344 = vsel %vm2316, %v2343, %v2342
      %vm2345 = vcmp.ne.s32.totalorder %v2344, 0
      %vm2346 = vcmp.lt.s32.totalorder %v2344, 0
      %vm2347 = vmand %vm2346, %vm2345
      %v2348 = vadd.s32 %v2344, 3
      %v2349 = vsel %vm2347, %v2348, %v2344
      %vm2350 = vcmp.ne.s32.totalorder %v2349, 2
      %v2351 = vsel %vm2350, 1, 0
      %vm2352 = vcmp.eq.s32.totalorder %v2351, 1
      %v2353 = vsel %vm2352, %v2312, 0.0
      %v2354 = vsel %vm2352, %v2313, 0.0
      %vm2355 = vcmask 1045504
      %v2356 = vsel %vm2355, %v2353, 0.0
      %v2357 = vrot.slane %v2356, 4
      %v2358 = vadd.f32 %v2356, %v2357
      %v2359 = vrot.slane %v2358, 2
      %v2360 = vadd.f32 %v2358, %v2359
      %v2361 = vrot.slane %v2360, 1
      %v2362 = vadd.f32 %v2360, %v2361
      %v2363 = vsel %vm2355, %v2354, 0.0
      %v2364 = vrot.slane %v2363, 4
      %v2365 = vadd.f32 %v2363, %v2364
      %v2366 = vrot.slane %v2365, 2
      %v2367 = vadd.f32 %v2365, %v2366
      %v2368 = vrot.slane %v2367, 1
      %v2369 = vadd.f32 %v2367, %v2368
      %v2372 = vrot.slane %v2369, 7
      %vm2373 = vcmask 1040384
      %v2374 = vsel %vm2373, %v2362, %v2372
      %v2376 = vlaneseq
      %vm2377 = vcmp.ge.s32.totalorder %v2376, 0
      %vm2378 = vcmp.lt.s32.totalorder %v2376, 256
      %vm2379 = vmand %vm2377, %vm2378
      %2380 = vst.msk [vmem:[%s210] ss:$2 sm:$0x3] %vm2379, %v2374
      %v2381 = vmul.f32 %v2353, %v2353
      %v2382 = vmul.f32 %v2354, %v2354
      %v2383 = vsel %vm2355, %v2381, 0.0
      %v2384 = vrot.slane %v2383, 4
      %v2385 = vadd.f32 %v2383, %v2384
      %v2386 = vrot.slane %v2385, 2
      %v2387 = vadd.f32 %v2385, %v2386
      %v2388 = vrot.slane %v2387, 1
      %v2389 = vadd.f32 %v2387, %v2388
      %v2390 = vsel %vm2355, %v2382, 0.0
      %v2391 = vrot.slane %v2390, 4
      %v2392 = vadd.f32 %v2390, %v2391
      %v2393 = vrot.slane %v2392, 2
      %v2394 = vadd.f32 %v2392, %v2393
      %v2395 = vrot.slane %v2394, 1
      %v2396 = vadd.f32 %v2394, %v2395
      %v2399 = vrot.slane %v2396, 7
      %v2400 = vsel %vm2373, %v2389, %v2399
      %s2402 = scalar_lea.vmem %s210, 1
      %2403 = vst.msk [vmem:[%s2402] ss:$2 sm:$0x3] %vm2379, %v2400
      %v2404 = vpack.c.bf16 %v2313, %v2312
      %2405 = vst [vmem:[%s205] sm:$0x77] %v2404
      %p2406 = scmp.lt.s32.totalorder %s16, 1
      %s2407 = scalar_select %p2406, %s16, 1
      %s2408 = smul.addr %s2407, 2
      %s2409 = smul.addr %s2408, 4
      %s2410 = scalar_lea.vmem %s3, %s2409
      %p2411 = scmp.lt.s32.totalorder %s16, 1
      %s2412 = scalar_select %p2411, %s16, 1
      %s2413 = smul.addr %s2412, 2
      %s2414 = smul.addr %s2413, 2
      %s2415 = scalar_lea.vmem %s4, %s2414
      // Predicated region
      $region33: #{discriminator_forward.6} parent=31 // pred_check
        %p2416 = pneg %p102
      $region34: #{discriminator_forward.6} parent=31 // pred_check_branch
        %2418 = sbr.rel (%p2416) target = $region36
      $region35: #{discriminator_forward.6} parent=31 // pred_region
        _
      $region36: #{discriminator_forward.6} parent=31 // pred_fallthru
        _
      // Predicated region
      $region37: #{discriminator_forward.6} parent=31 // pred_check
        %p2419 = pneg %p128
      $region38: #{discriminator_forward.6} parent=31 // pred_check_branch
        %2421 = sbr.rel (%p2419) target = $region40
      $region39: #{discriminator_forward.6} parent=31 // pred_region
        _
      $region40: #{discriminator_forward.6} parent=31 // pred_fallthru
        _
    $region32: #{discriminator_forward.6} parent=5 // pred_fallthru
      _
    %p2422 = scmp.le.s32.totalorder 2, %s11
    // Predicated region
    $region41: #{discriminator_forward.6} parent=5 // pred_check
      %p2423 = pneg %p2422
    $region42: #{discriminator_forward.6} parent=5 // pred_check_branch
      %2425 = sbr.rel (%p2423) target = $region44
    $region43: #{discriminator_forward.6} parent=5 // pred_region
      %s2426 = ssub.s32 %s11, 2
      // Predicated region
      $region45: #{discriminator_forward.6} parent=43 // pred_check
        %p2427 = pneg %p108
      $region46: #{discriminator_forward.6} parent=43 // pred_check_branch
        %2429 = sbr.rel (%p2427) target = $region48
      $region47: #{discriminator_forward.6} parent=43 // pred_region
        %p2430 = scmp.lt.s32.totalorder %s17, 1
        %s2431 = scalar_select %p2430, %s17, 1
        %s2432 = smul.addr %s2431, 2
        %s2433 = smul.addr %s2432, 4
        %s2434 = scalar_lea.vmem %s3, %s2433
      $region48: #{discriminator_forward.6} parent=43 // pred_fallthru
        _
      // Predicated region
      $region49: #{discriminator_forward.6} parent=43 // pred_check
        %p2435 = pneg %p134
      $region50: #{discriminator_forward.6} parent=43 // pred_check_branch
        %2437 = sbr.rel (%p2435) target = $region52
      $region51: #{discriminator_forward.6} parent=43 // pred_region
        %p2438 = scmp.lt.s32.totalorder %s17, 1
        %s2439 = scalar_select %p2438, %s17, 1
        %s2440 = smul.addr %s2439, 2
        %s2441 = smul.addr %s2440, 2
        %s2442 = scalar_lea.vmem %s4, %s2441
      $region52: #{discriminator_forward.6} parent=43 // pred_fallthru
        _
    $region44: #{discriminator_forward.6} parent=5 // pred_fallthru
      _
  $region6: #{discriminator_forward.6} parent=0 // loop_footer
    %s15 = sadd.s32 1, %s11
  $region7: #{discriminator_forward.6} parent=0 // loop_footer_branch
    %10 = sbr.rel target = $region3
  $region8: #{discriminator_forward.6} parent=0 // loop_exit
    _

</llo_original>
